<compile_context>
chip_gen: v7x
topology: tpu7x:2x2x1
jax: 0.10.0
libtpu: 0.0.40
codegen_flags: <defaults>
</compile_context>

<pallas_src>
import math

import jax
import jax.numpy as jnp
from jax.experimental import pallas as pl
from jax.experimental.pallas import tpu as pltpu


# ---------------- model hyper-params (small, consistent with the module) --------------
VOCAB = 64
N_EMBD = 32                 # C
N_HEAD = 4
N_LAYER = 2
BLOCK_SIZE = 8              # max sequence length
PAD_IDX = 0
HEAD_DIM = N_EMBD // N_HEAD             # 8
QKV_DIM = 3 * N_EMBD                    # 96
FF_DIM = 4 * N_EMBD                     # 128
LN_EPS = 1e-5
HEAD_PAD = 128              # LM-head lane padding -> lane-dense stores
NEG_INF = -1e30

# ---------------- `misc` parameter-slab layout (rows of a (128, 128) f32 array) -------
TOK_ROW = 0                                   # 64 rows, lanes[:C]  : token embedding
HW_ROW = TOK_ROW + VOCAB                      # 32 rows, lanes[:128]: LM head (padded)
PE_ROW = HW_ROW + N_EMBD                      # 8 rows,  lanes[:C]  : positional encoding
VEC_ROW = PE_ROW + BLOCK_SIZE                 # per-layer vectors start here
ROWS_PER_LAYER = 7                            # ln1w, ln1b, bo, ln2w, ln2b, b1, b2
LNF_W_ROW = VEC_ROW + N_LAYER * ROWS_PER_LAYER
LNF_B_ROW = LNF_W_ROW + 1
HEAD_B_ROW = LNF_B_ROW + 1
MISC_ROWS = 128


# ------------------------------- in-kernel helpers ------------------------------------
def _layernorm(x, w, b):
    mu = jnp.mean(x, axis=-1, keepdims=True)
    var = jnp.mean((x - mu) ** 2, axis=-1, keepdims=True)
    inv = jax.lax.rsqrt(var + LN_EPS)
    return (x - mu) * inv * w + b


# ------------------------------- fully fused decoder kernel ----------------------------
def decoder_kernel(idx_ref, wattn_ref, w1_ref, w2_ref, misc_ref, o_ref):
    T = idx_ref.shape[1]
    C = N_EMBD
    Dh = HEAD_DIM
    scale = 1.0 / math.sqrt(Dh)

    # ---- token embedding as one-hot matmul on the (otherwise idle) MXU, + PE ----
    ids = idx_ref[0]                                                  # (T, 1) int32
    vocab_iota = jax.lax.broadcasted_iota(jnp.int32, (T, VOCAB), 1)
    onehot = (vocab_iota == ids).astype(jnp.float32)                  # (T, V)
    tok_tbl = misc_ref[TOK_ROW:TOK_ROW + VOCAB, :C]                   # (V, C)
    pe = misc_ref[PE_ROW:PE_ROW + T, :C]                              # (T, C)
    x = jnp.dot(onehot, tok_tbl, preferred_element_type=jnp.float32) + pe

    # ---- additive causal mask, computed in-kernel (no HBM input) ----
    rows = jax.lax.broadcasted_iota(jnp.int32, (T, T), 0)
    cols = jax.lax.broadcasted_iota(jnp.int32, (T, T), 1)
    mask = jnp.where(rows >= cols, jnp.float32(0.0), jnp.float32(NEG_INF))

    for li in range(N_LAYER):                                         # static unrolled
        base = VEC_ROW + li * ROWS_PER_LAYER
        ln1w = misc_ref[base + 0, :C]
        ln1b = misc_ref[base + 1, :C]
        bo = misc_ref[base + 2, :C]
        ln2w = misc_ref[base + 3, :C]
        ln2b = misc_ref[base + 4, :C]
        b1 = misc_ref[base + 5, :]                                    # (FF_DIM,) = (128,)
        b2 = misc_ref[base + 6, :C]

        # ---- multi-head causal self-attention (pre-LN), fused QKV + fused out-proj ----
        h = _layernorm(x, ln1w, ln1b)
        w_l = wattn_ref[li]                                           # (C, 128)
        wqkv = w_l[:, :QKV_DIM]                                       # (C, 96)
        wo = w_l[:, QKV_DIM:]                                         # (C, C)
        qkv = jnp.dot(h, wqkv, preferred_element_type=jnp.float32)    # (T, 96) one matmul
        heads = []
        for hh in range(N_HEAD):                                      # static unrolled
            q = qkv[:, hh * Dh:(hh + 1) * Dh]                         # (T, Dh)
            k = qkv[:, C + hh * Dh:C + (hh + 1) * Dh]
            v = qkv[:, 2 * C + hh * Dh:2 * C + (hh + 1) * Dh]
            s = jax.lax.dot_general(q, k, (((1,), (1,)), ((), ())),
                                    preferred_element_type=jnp.float32) * scale + mask
            s = s - jnp.max(s, axis=-1, keepdims=True)
            p = jnp.exp(s)
            p = p * pl.reciprocal(jnp.sum(p, axis=-1, keepdims=True), approx=True)
            heads.append(jnp.dot(p, v, preferred_element_type=jnp.float32))   # (T, Dh)
        att = jnp.concatenate(heads, axis=-1)                         # (T, C)
        x = x + jnp.dot(att, wo, preferred_element_type=jnp.float32) + bo

        # ---- feed-forward (pre-LN): Linear -> ReLU -> Linear ----
        h2 = _layernorm(x, ln2w, ln2b)
        y = jnp.maximum(
            jnp.dot(h2, w1_ref[li], preferred_element_type=jnp.float32) + b1, 0.0)
        x = x + jnp.dot(y, w2_ref[li], preferred_element_type=jnp.float32) + b2

    # ---- final LayerNorm + lane-padded LM head (lane-dense store) ----
    lnf_w = misc_ref[LNF_W_ROW, :C]
    lnf_b = misc_ref[LNF_B_ROW, :C]
    head_b = misc_ref[HEAD_B_ROW, :]
    hf = _layernorm(x, lnf_w, lnf_b)
    head_w = misc_ref[HW_ROW:HW_ROW + C, :]                           # (C, 128)
    logits = jnp.dot(hf, head_w, preferred_element_type=jnp.float32) + head_b
    o_ref[0] = logits.astype(o_ref.dtype)


# ------------------------------- pallas_call wrapper ------------------------------------
def _whole_vmem():
    return pl.BlockSpec(memory_space=pltpu.MemorySpace.VMEM)


@jax.jit
def decoder_forward(idx, params):
    """idx: (B, T) int32 token ids -> logits (B, T, VOCAB). Single fused pallas_call,
    grid over batch (parallel -> both TensorCores on v7x)."""
    B, T = idx.shape
    idx3 = idx.reshape(B, T, 1).astype(jnp.int32)

    logits_pad = pl.pallas_call(
        decoder_kernel,
        out_shape=jax.ShapeDtypeStruct((B, T, HEAD_PAD), jnp.float32),
        grid=(B,),
        in_specs=[
            pl.BlockSpec((1, T, 1), lambda b: (b, 0, 0)),   # token ids, one batch row
            _whole_vmem(),                                   # w_attn (L, C, 128)
            _whole_vmem(),                                   # w1     (L, C, 4C)
            _whole_vmem(),                                   # w2     (L, 4C, C)
            _whole_vmem(),                                   # misc slab (128, 128)
        ],
        out_specs=pl.BlockSpec((1, T, HEAD_PAD), lambda b: (b, 0, 0)),
        compiler_params=pltpu.CompilerParams(dimension_semantics=("parallel",)),
    )(idx3, params["w_attn"], params["w1"], params["w2"], params["misc"])

    return logits_pad[:, :, :VOCAB]


# ------------------------------- parameter init (deterministic) ------------------------
def sinusoidal_pe(max_len, d_model):
    pos = jnp.arange(max_len, dtype=jnp.float32)[:, None]
    div = jnp.exp(jnp.arange(0, d_model, 2, dtype=jnp.float32) *
                  (-math.log(10000.0) / d_model))
    pe = jnp.zeros((max_len, d_model), jnp.float32)
    pe = pe.at[:, 0::2].set(jnp.sin(pos * div))
    pe = pe.at[:, 1::2].set(jnp.cos(pos * div))
    return pe


def init_params(key):
    def normal(k, shape):
        return (0.02 * jax.random.normal(k, shape)).astype(jnp.float32)

    C, H, Dh, L, F = N_EMBD, N_HEAD, HEAD_DIM, N_LAYER, FF_DIM
    keys = jax.random.split(key, 8)

    # TODO(synk): PAD_IDX row is normal-initialized (matches Decoder._init_weights, which
    # re-normals the whole embedding), not the zeroed padding_idx row of a fresh nn.Embedding.
    tok_emb = normal(keys[0], (VOCAB, C))
    wq = normal(keys[1], (L, H, C, Dh))
    wk = normal(keys[2], (L, H, C, Dh))
    wv = normal(keys[3], (L, H, C, Dh))
    wo = normal(keys[4], (L, H, Dh, C))
    w1 = normal(keys[5], (L, C, F))
    w2 = normal(keys[6], (L, F, C))
    head_w = normal(keys[7], (C, VOCAB))

    # fused QKV weight: lanes = [q_h0..q_h3 | k_h0..k_h3 | v_h0..v_h3]
    wqkv = jnp.concatenate(
        [wq.transpose(0, 2, 1, 3).reshape(L, C, H * Dh),
         wk.transpose(0, 2, 1, 3).reshape(L, C, H * Dh),
         wv.transpose(0, 2, 1, 3).reshape(L, C, H * Dh)], axis=-1)     # (L, C, 96)
    wo_f = wo.reshape(L, H * Dh, C)                                    # (L, C, C)
    w_attn = jnp.concatenate([wqkv, wo_f], axis=-1)                    # (L, C, 128)

    # LayerNorm / bias vectors (LN: weight=1, bias=0; Linear biases zero-init)
    ln1w = jnp.ones((L, C), jnp.float32)
    ln1b = jnp.zeros((L, C), jnp.float32)
    ln2w = jnp.ones((L, C), jnp.float32)
    ln2b = jnp.zeros((L, C), jnp.float32)
    bo = jnp.zeros((L, C), jnp.float32)
    b1 = jnp.zeros((L, F), jnp.float32)
    b2 = jnp.zeros((L, C), jnp.float32)
    lnf_w = jnp.ones((C,), jnp.float32)
    lnf_b = jnp.zeros((C,), jnp.float32)
    head_b = jnp.zeros((HEAD_PAD,), jnp.float32)
    head_w_pad = jnp.concatenate(
        [head_w, jnp.zeros((C, HEAD_PAD - VOCAB), jnp.float32)], axis=1)
    pe = sinusoidal_pe(BLOCK_SIZE, C)

    # pack everything small into one (128, 128) slab
    misc = jnp.zeros((MISC_ROWS, 128), jnp.float32)
    misc = misc.at[TOK_ROW:TOK_ROW + VOCAB, :C].set(tok_emb)
    misc = misc.at[HW_ROW:HW_ROW + C, :].set(head_w_pad)
    misc = misc.at[PE_ROW:PE_ROW + BLOCK_SIZE, :C].set(pe)
    for li in range(L):
        base = VEC_ROW + li * ROWS_PER_LAYER
        misc = misc.at[base + 0, :C].set(ln1w[li])
        misc = misc.at[base + 1, :C].set(ln1b[li])
        misc = misc.at[base + 2, :C].set(bo[li])
        misc = misc.at[base + 3, :C].set(ln2w[li])
        misc = misc.at[base + 4, :C].set(ln2b[li])
        misc = misc.at[base + 5, :F].set(b1[li])
        misc = misc.at[base + 6, :C].set(b2[li])
    misc = misc.at[LNF_W_ROW, :C].set(lnf_w)
    misc = misc.at[LNF_B_ROW, :C].set(lnf_b)
    misc = misc.at[HEAD_B_ROW, :].set(head_b)

    return {"w_attn": w_attn, "w1": w1, "w2": w2, "misc": misc}


# ------------------------------- main ---------------------------------------------------
if __name__ == "__main__":
    key = jax.random.PRNGKey(0)
    pkey, dkey = jax.random.split(key)

    params = init_params(pkey)

    B, T = 2, BLOCK_SIZE
    idx = jax.random.randint(dkey, (B, T), 0, VOCAB, dtype=jnp.int32)

    logits = decoder_forward(idx, params)
    jax.block_until_ready(logits)

    assert logits.shape == (B, T, VOCAB), logits.shape
    assert bool(jnp.all(jnp.isfinite(logits)))
    print("KERNEL_OK")
</pallas_src>

<mosaic_0001>
module attributes {stable_mosaic.version = 11 : i64} {
  func.func @decoder_kernel(%arg0: i32, %arg1: memref<1x8x1xi32, #tpu.memory_space<vmem>>, %arg2: memref<2x32x128xf32, #tpu.memory_space<vmem>>, %arg3: memref<2x32x128xf32, #tpu.memory_space<vmem>>, %arg4: memref<2x128x32xf32, #tpu.memory_space<vmem>>, %arg5: memref<128x128xf32, #tpu.memory_space<vmem>>, %arg6: memref<1x8x128xf32, #tpu.memory_space<vmem>>) attributes {dimension_semantics = [#tpu.dimension_semantics<parallel>], iteration_bounds = array<i64: 2>, scalar_prefetch = 0 : i64, scratch_operands = 0 : i64, tpu.core_type = #tpu.core_type<tc>, window_params = [{transform_indices = @transform_0, window_bounds = array<i64: 1, 8, 1>}, {pipeline_mode = #tpu.pipeline_mode<synchronous>, transform_indices = @transform_1, window_bounds = array<i64: 2, 32, 128>}, {pipeline_mode = #tpu.pipeline_mode<synchronous>, transform_indices = @transform_2, window_bounds = array<i64: 2, 32, 128>}, {pipeline_mode = #tpu.pipeline_mode<synchronous>, transform_indices = @transform_3, window_bounds = array<i64: 2, 128, 32>}, {pipeline_mode = #tpu.pipeline_mode<synchronous>, transform_indices = @transform_4, window_bounds = array<i64: 128, 128>}, {transform_indices = @transform_5, window_bounds = array<i64: 1, 8, 128>}]} {
    %c0 = arith.constant 0 : index
    %c0_0 = arith.constant 0 : index
    %c0_1 = arith.constant 0 : index
    %0 = vector.load %arg1[%c0, %c0_0, %c0_1] : memref<1x8x1xi32, #tpu.memory_space<vmem>>, vector<1x8x1xi32>
    %1 = vector.shape_cast %0 : vector<1x8x1xi32> to vector<8x1xi32>
    %2 = tpu.iota {dimensions = array<i32: 1>} : vector<8x64xi32>
    %3 = vector.broadcast %1 : vector<8x1xi32> to vector<8x64xi32>
    %4 = arith.cmpi eq, %2, %3 : vector<8x64xi32>
    %5 = arith.extui %4 : vector<8x64xi1> to vector<8x64xi32>
    %6 = arith.sitofp %5 : vector<8x64xi32> to vector<8x64xf32>
    %c0_2 = arith.constant 0 : index
    %c0_3 = arith.constant 0 : index
    %7 = vector.load %arg5[%c0_2, %c0_3] : memref<128x128xf32, #tpu.memory_space<vmem>>, vector<64x32xf32>
    %c96 = arith.constant 96 : index
    %c0_4 = arith.constant 0 : index
    %8 = vector.load %arg5[%c96, %c0_4] : memref<128x128xf32, #tpu.memory_space<vmem>>, vector<8x32xf32>
    %cst = arith.constant dense<0.000000e+00> : vector<8x32xf32>
    %9 = tpu.matmul %6, %7, %cst {dimension_numbers = #tpu.dot_dimension_numbers<[1], [0], [0], [1], [0, 0, 1, 1], [], []>} : vector<8x64xf32>, vector<64x32xf32>, vector<8x32xf32> -> vector<8x32xf32>
    %10 = arith.addf %9, %8 : vector<8x32xf32>
    %11 = tpu.iota {dimensions = array<i32: 0>} : vector<8x8xi32>
    %12 = tpu.iota {dimensions = array<i32: 1>} : vector<8x8xi32>
    %13 = arith.cmpi sge, %11, %12 : vector<8x8xi32>
    %cst_5 = arith.constant 0.000000e+00 : f32
    %cst_6 = arith.constant -1.000000e+30 : f32
    %14 = vector.broadcast %cst_5 : f32 to vector<8x8xf32>
    %15 = vector.broadcast %cst_6 : f32 to vector<8x8xf32>
    %16 = arith.select %13, %14, %15 : vector<8x8xi1>, vector<8x8xf32>
    %c104 = arith.constant 104 : index
    %c0_7 = arith.constant 0 : index
    %17 = vector.load %arg5[%c104, %c0_7] : memref<128x128xf32, #tpu.memory_space<vmem>>, vector<1x32xf32>
    %18 = vector.shape_cast %17 : vector<1x32xf32> to vector<32xf32>
    %c105 = arith.constant 105 : index
    %c0_8 = arith.constant 0 : index
    %19 = vector.load %arg5[%c105, %c0_8] : memref<128x128xf32, #tpu.memory_space<vmem>>, vector<1x32xf32>
    %20 = vector.shape_cast %19 : vector<1x32xf32> to vector<32xf32>
    %c106 = arith.constant 106 : index
    %c0_9 = arith.constant 0 : index
    %21 = vector.load %arg5[%c106, %c0_9] : memref<128x128xf32, #tpu.memory_space<vmem>>, vector<1x32xf32>
    %22 = vector.shape_cast %21 : vector<1x32xf32> to vector<32xf32>
    %c107 = arith.constant 107 : index
    %c0_10 = arith.constant 0 : index
    %23 = vector.load %arg5[%c107, %c0_10] : memref<128x128xf32, #tpu.memory_space<vmem>>, vector<1x32xf32>
    %24 = vector.shape_cast %23 : vector<1x32xf32> to vector<32xf32>
    %c108 = arith.constant 108 : index
    %c0_11 = arith.constant 0 : index
    %25 = vector.load %arg5[%c108, %c0_11] : memref<128x128xf32, #tpu.memory_space<vmem>>, vector<1x32xf32>
    %26 = vector.shape_cast %25 : vector<1x32xf32> to vector<32xf32>
    %c109 = arith.constant 109 : index
    %c0_12 = arith.constant 0 : index
    %27 = vector.load %arg5[%c109, %c0_12] : memref<128x128xf32, #tpu.memory_space<vmem>>, vector<1x128xf32>
    %28 = vector.shape_cast %27 : vector<1x128xf32> to vector<128xf32>
    %c110 = arith.constant 110 : index
    %c0_13 = arith.constant 0 : index
    %29 = vector.load %arg5[%c110, %c0_13] : memref<128x128xf32, #tpu.memory_space<vmem>>, vector<1x32xf32>
    %30 = vector.shape_cast %29 : vector<1x32xf32> to vector<32xf32>
    %cst_14 = arith.constant dense<0.000000e+00> : vector<8xf32>
    %31 = vector.multi_reduction <add>, %10, %cst_14 [1] : vector<8x32xf32> to vector<8xf32>
    %32 = vector.shape_cast %31 : vector<8xf32> to vector<8x1xf32>
    %cst_15 = arith.constant 3.200000e+01 : f32
    %33 = vector.broadcast %cst_15 : f32 to vector<8x1xf32>
    %34 = arith.divf %32, %33 : vector<8x1xf32>
    %35 = vector.broadcast %34 : vector<8x1xf32> to vector<8x32xf32>
    %36 = arith.subf %10, %35 : vector<8x32xf32>
    %37 = arith.mulf %36, %36 : vector<8x32xf32>
    %cst_16 = arith.constant dense<0.000000e+00> : vector<8xf32>
    %38 = vector.multi_reduction <add>, %37, %cst_16 [1] : vector<8x32xf32> to vector<8xf32>
    %39 = vector.shape_cast %38 : vector<8xf32> to vector<8x1xf32>
    %cst_17 = arith.constant 3.200000e+01 : f32
    %40 = vector.broadcast %cst_17 : f32 to vector<8x1xf32>
    %41 = arith.divf %39, %40 : vector<8x1xf32>
    %cst_18 = arith.constant 9.99999974E-6 : f32
    %42 = vector.broadcast %cst_18 : f32 to vector<8x1xf32>
    %43 = arith.addf %41, %42 : vector<8x1xf32>
    %44 = math.rsqrt %43 : vector<8x1xf32>
    %45 = vector.broadcast %34 : vector<8x1xf32> to vector<8x32xf32>
    %46 = arith.subf %10, %45 : vector<8x32xf32>
    %47 = vector.broadcast %44 : vector<8x1xf32> to vector<8x32xf32>
    %48 = arith.mulf %46, %47 : vector<8x32xf32>
    %49 = vector.shape_cast %18 : vector<32xf32> to vector<1x32xf32>
    %50 = vector.broadcast %49 : vector<1x32xf32> to vector<8x32xf32>
    %51 = arith.mulf %48, %50 : vector<8x32xf32>
    %52 = vector.shape_cast %20 : vector<32xf32> to vector<1x32xf32>
    %53 = vector.broadcast %52 : vector<1x32xf32> to vector<8x32xf32>
    %54 = arith.addf %51, %53 : vector<8x32xf32>
    %c0_19 = arith.constant 0 : index
    %c0_20 = arith.constant 0 : index
    %c0_21 = arith.constant 0 : index
    %55 = vector.load %arg2[%c0_19, %c0_20, %c0_21] : memref<2x32x128xf32, #tpu.memory_space<vmem>>, vector<1x32x128xf32>
    %56 = vector.shape_cast %55 : vector<1x32x128xf32> to vector<32x128xf32>
    %57 = vector.extract_strided_slice %56 {offsets = [0, 0], sizes = [32, 96], strides = [1, 1]} : vector<32x128xf32> to vector<32x96xf32>
    %58 = vector.extract_strided_slice %56 {offsets = [0, 96], sizes = [32, 32], strides = [1, 1]} : vector<32x128xf32> to vector<32x32xf32>
    %cst_22 = arith.constant dense<0.000000e+00> : vector<8x96xf32>
    %59 = tpu.matmul %54, %57, %cst_22 {dimension_numbers = #tpu.dot_dimension_numbers<[1], [0], [0], [1], [0, 0, 1, 1], [], []>} : vector<8x32xf32>, vector<32x96xf32>, vector<8x96xf32> -> vector<8x96xf32>
    %60 = vector.extract_strided_slice %59 {offsets = [0, 0], sizes = [8, 8], strides = [1, 1]} : vector<8x96xf32> to vector<8x8xf32>
    %61 = vector.extract_strided_slice %59 {offsets = [0, 32], sizes = [8, 8], strides = [1, 1]} : vector<8x96xf32> to vector<8x8xf32>
    %62 = vector.extract_strided_slice %59 {offsets = [0, 64], sizes = [8, 8], strides = [1, 1]} : vector<8x96xf32> to vector<8x8xf32>
    %cst_23 = arith.constant dense<0.000000e+00> : vector<8x8xf32>
    %63 = tpu.matmul %60, %61, %cst_23 {dimension_numbers = #tpu.dot_dimension_numbers<[1], [1], [0], [0], [0, 0, 1, 0], [], []>} : vector<8x8xf32>, vector<8x8xf32>, vector<8x8xf32> -> vector<8x8xf32>
    %cst_24 = arith.constant 0.353553385 : f32
    %64 = vector.broadcast %cst_24 : f32 to vector<8x8xf32>
    %65 = arith.mulf %63, %64 : vector<8x8xf32>
    %66 = arith.addf %65, %16 : vector<8x8xf32>
    %cst_25 = arith.constant dense<0xFF800000> : vector<8xf32>
    %67 = vector.multi_reduction <maximumf>, %66, %cst_25 [1] : vector<8x8xf32> to vector<8xf32>
    %68 = vector.shape_cast %67 : vector<8xf32> to vector<8x1xf32>
    %69 = vector.broadcast %68 : vector<8x1xf32> to vector<8x8xf32>
    %70 = arith.subf %66, %69 : vector<8x8xf32>
    %71 = math.exp %70 : vector<8x8xf32>
    %cst_26 = arith.constant dense<0.000000e+00> : vector<8xf32>
    %72 = vector.multi_reduction <add>, %71, %cst_26 [1] : vector<8x8xf32> to vector<8xf32>
    %73 = vector.shape_cast %72 : vector<8xf32> to vector<8x1xf32>
    %74 = tpu.reciprocal %73 {approx = true} : vector<8x1xf32> -> vector<8x1xf32>
    %75 = vector.broadcast %74 : vector<8x1xf32> to vector<8x8xf32>
    %76 = arith.mulf %71, %75 : vector<8x8xf32>
    %cst_27 = arith.constant dense<0.000000e+00> : vector<8x8xf32>
    %77 = tpu.matmul %76, %62, %cst_27 {dimension_numbers = #tpu.dot_dimension_numbers<[1], [0], [0], [1], [0, 0, 1, 1], [], []>} : vector<8x8xf32>, vector<8x8xf32>, vector<8x8xf32> -> vector<8x8xf32>
    %78 = vector.extract_strided_slice %59 {offsets = [0, 8], sizes = [8, 8], strides = [1, 1]} : vector<8x96xf32> to vector<8x8xf32>
    %79 = vector.extract_strided_slice %59 {offsets = [0, 40], sizes = [8, 8], strides = [1, 1]} : vector<8x96xf32> to vector<8x8xf32>
    %80 = vector.extract_strided_slice %59 {offsets = [0, 72], sizes = [8, 8], strides = [1, 1]} : vector<8x96xf32> to vector<8x8xf32>
    %cst_28 = arith.constant dense<0.000000e+00> : vector<8x8xf32>
    %81 = tpu.matmul %78, %79, %cst_28 {dimension_numbers = #tpu.dot_dimension_numbers<[1], [1], [0], [0], [0, 0, 1, 0], [], []>} : vector<8x8xf32>, vector<8x8xf32>, vector<8x8xf32> -> vector<8x8xf32>
    %cst_29 = arith.constant 0.353553385 : f32
    %82 = vector.broadcast %cst_29 : f32 to vector<8x8xf32>
    %83 = arith.mulf %81, %82 : vector<8x8xf32>
    %84 = arith.addf %83, %16 : vector<8x8xf32>
    %cst_30 = arith.constant dense<0xFF800000> : vector<8xf32>
    %85 = vector.multi_reduction <maximumf>, %84, %cst_30 [1] : vector<8x8xf32> to vector<8xf32>
    %86 = vector.shape_cast %85 : vector<8xf32> to vector<8x1xf32>
    %87 = vector.broadcast %86 : vector<8x1xf32> to vector<8x8xf32>
    %88 = arith.subf %84, %87 : vector<8x8xf32>
    %89 = math.exp %88 : vector<8x8xf32>
    %cst_31 = arith.constant dense<0.000000e+00> : vector<8xf32>
    %90 = vector.multi_reduction <add>, %89, %cst_31 [1] : vector<8x8xf32> to vector<8xf32>
    %91 = vector.shape_cast %90 : vector<8xf32> to vector<8x1xf32>
    %92 = tpu.reciprocal %91 {approx = true} : vector<8x1xf32> -> vector<8x1xf32>
    %93 = vector.broadcast %92 : vector<8x1xf32> to vector<8x8xf32>
    %94 = arith.mulf %89, %93 : vector<8x8xf32>
    %cst_32 = arith.constant dense<0.000000e+00> : vector<8x8xf32>
    %95 = tpu.matmul %94, %80, %cst_32 {dimension_numbers = #tpu.dot_dimension_numbers<[1], [0], [0], [1], [0, 0, 1, 1], [], []>} : vector<8x8xf32>, vector<8x8xf32>, vector<8x8xf32> -> vector<8x8xf32>
    %96 = vector.extract_strided_slice %59 {offsets = [0, 16], sizes = [8, 8], strides = [1, 1]} : vector<8x96xf32> to vector<8x8xf32>
    %97 = vector.extract_strided_slice %59 {offsets = [0, 48], sizes = [8, 8], strides = [1, 1]} : vector<8x96xf32> to vector<8x8xf32>
    %98 = vector.extract_strided_slice %59 {offsets = [0, 80], sizes = [8, 8], strides = [1, 1]} : vector<8x96xf32> to vector<8x8xf32>
    %cst_33 = arith.constant dense<0.000000e+00> : vector<8x8xf32>
    %99 = tpu.matmul %96, %97, %cst_33 {dimension_numbers = #tpu.dot_dimension_numbers<[1], [1], [0], [0], [0, 0, 1, 0], [], []>} : vector<8x8xf32>, vector<8x8xf32>, vector<8x8xf32> -> vector<8x8xf32>
    %cst_34 = arith.constant 0.353553385 : f32
    %100 = vector.broadcast %cst_34 : f32 to vector<8x8xf32>
    %101 = arith.mulf %99, %100 : vector<8x8xf32>
    %102 = arith.addf %101, %16 : vector<8x8xf32>
    %cst_35 = arith.constant dense<0xFF800000> : vector<8xf32>
    %103 = vector.multi_reduction <maximumf>, %102, %cst_35 [1] : vector<8x8xf32> to vector<8xf32>
    %104 = vector.shape_cast %103 : vector<8xf32> to vector<8x1xf32>
    %105 = vector.broadcast %104 : vector<8x1xf32> to vector<8x8xf32>
    %106 = arith.subf %102, %105 : vector<8x8xf32>
    %107 = math.exp %106 : vector<8x8xf32>
    %cst_36 = arith.constant dense<0.000000e+00> : vector<8xf32>
    %108 = vector.multi_reduction <add>, %107, %cst_36 [1] : vector<8x8xf32> to vector<8xf32>
    %109 = vector.shape_cast %108 : vector<8xf32> to vector<8x1xf32>
    %110 = tpu.reciprocal %109 {approx = true} : vector<8x1xf32> -> vector<8x1xf32>
    %111 = vector.broadcast %110 : vector<8x1xf32> to vector<8x8xf32>
    %112 = arith.mulf %107, %111 : vector<8x8xf32>
    %cst_37 = arith.constant dense<0.000000e+00> : vector<8x8xf32>
    %113 = tpu.matmul %112, %98, %cst_37 {dimension_numbers = #tpu.dot_dimension_numbers<[1], [0], [0], [1], [0, 0, 1, 1], [], []>} : vector<8x8xf32>, vector<8x8xf32>, vector<8x8xf32> -> vector<8x8xf32>
    %114 = vector.extract_strided_slice %59 {offsets = [0, 24], sizes = [8, 8], strides = [1, 1]} : vector<8x96xf32> to vector<8x8xf32>
    %115 = vector.extract_strided_slice %59 {offsets = [0, 56], sizes = [8, 8], strides = [1, 1]} : vector<8x96xf32> to vector<8x8xf32>
    %116 = vector.extract_strided_slice %59 {offsets = [0, 88], sizes = [8, 8], strides = [1, 1]} : vector<8x96xf32> to vector<8x8xf32>
    %cst_38 = arith.constant dense<0.000000e+00> : vector<8x8xf32>
    %117 = tpu.matmul %114, %115, %cst_38 {dimension_numbers = #tpu.dot_dimension_numbers<[1], [1], [0], [0], [0, 0, 1, 0], [], []>} : vector<8x8xf32>, vector<8x8xf32>, vector<8x8xf32> -> vector<8x8xf32>
    %cst_39 = arith.constant 0.353553385 : f32
    %118 = vector.broadcast %cst_39 : f32 to vector<8x8xf32>
    %119 = arith.mulf %117, %118 : vector<8x8xf32>
    %120 = arith.addf %119, %16 : vector<8x8xf32>
    %cst_40 = arith.constant dense<0xFF800000> : vector<8xf32>
    %121 = vector.multi_reduction <maximumf>, %120, %cst_40 [1] : vector<8x8xf32> to vector<8xf32>
    %122 = vector.shape_cast %121 : vector<8xf32> to vector<8x1xf32>
    %123 = vector.broadcast %122 : vector<8x1xf32> to vector<8x8xf32>
    %124 = arith.subf %120, %123 : vector<8x8xf32>
    %125 = math.exp %124 : vector<8x8xf32>
    %cst_41 = arith.constant dense<0.000000e+00> : vector<8xf32>
    %126 = vector.multi_reduction <add>, %125, %cst_41 [1] : vector<8x8xf32> to vector<8xf32>
    %127 = vector.shape_cast %126 : vector<8xf32> to vector<8x1xf32>
    %128 = tpu.reciprocal %127 {approx = true} : vector<8x1xf32> -> vector<8x1xf32>
    %129 = vector.broadcast %128 : vector<8x1xf32> to vector<8x8xf32>
    %130 = arith.mulf %125, %129 : vector<8x8xf32>
    %cst_42 = arith.constant dense<0.000000e+00> : vector<8x8xf32>
    %131 = tpu.matmul %130, %116, %cst_42 {dimension_numbers = #tpu.dot_dimension_numbers<[1], [0], [0], [1], [0, 0, 1, 1], [], []>} : vector<8x8xf32>, vector<8x8xf32>, vector<8x8xf32> -> vector<8x8xf32>
    %132 = tpu.concatenate %77, %95, %113, %131 in 1 : vector<8x8xf32>, vector<8x8xf32>, vector<8x8xf32>, vector<8x8xf32> -> vector<8x32xf32>
    %cst_43 = arith.constant dense<0.000000e+00> : vector<8x32xf32>
    %133 = tpu.matmul %132, %58, %cst_43 {dimension_numbers = #tpu.dot_dimension_numbers<[1], [0], [0], [1], [0, 0, 1, 1], [], []>} : vector<8x32xf32>, vector<32x32xf32>, vector<8x32xf32> -> vector<8x32xf32>
    %134 = arith.addf %10, %133 : vector<8x32xf32>
    %135 = vector.shape_cast %22 : vector<32xf32> to vector<1x32xf32>
    %136 = vector.broadcast %135 : vector<1x32xf32> to vector<8x32xf32>
    %137 = arith.addf %134, %136 : vector<8x32xf32>
    %cst_44 = arith.constant dense<0.000000e+00> : vector<8xf32>
    %138 = vector.multi_reduction <add>, %137, %cst_44 [1] : vector<8x32xf32> to vector<8xf32>
    %139 = vector.shape_cast %138 : vector<8xf32> to vector<8x1xf32>
    %cst_45 = arith.constant 3.200000e+01 : f32
    %140 = vector.broadcast %cst_45 : f32 to vector<8x1xf32>
    %141 = arith.divf %139, %140 : vector<8x1xf32>
    %142 = vector.broadcast %141 : vector<8x1xf32> to vector<8x32xf32>
    %143 = arith.subf %137, %142 : vector<8x32xf32>
    %144 = arith.mulf %143, %143 : vector<8x32xf32>
    %cst_46 = arith.constant dense<0.000000e+00> : vector<8xf32>
    %145 = vector.multi_reduction <add>, %144, %cst_46 [1] : vector<8x32xf32> to vector<8xf32>
    %146 = vector.shape_cast %145 : vector<8xf32> to vector<8x1xf32>
    %cst_47 = arith.constant 3.200000e+01 : f32
    %147 = vector.broadcast %cst_47 : f32 to vector<8x1xf32>
    %148 = arith.divf %146, %147 : vector<8x1xf32>
    %cst_48 = arith.constant 9.99999974E-6 : f32
    %149 = vector.broadcast %cst_48 : f32 to vector<8x1xf32>
    %150 = arith.addf %148, %149 : vector<8x1xf32>
    %151 = math.rsqrt %150 : vector<8x1xf32>
    %152 = vector.broadcast %141 : vector<8x1xf32> to vector<8x32xf32>
    %153 = arith.subf %137, %152 : vector<8x32xf32>
    %154 = vector.broadcast %151 : vector<8x1xf32> to vector<8x32xf32>
    %155 = arith.mulf %153, %154 : vector<8x32xf32>
    %156 = vector.shape_cast %24 : vector<32xf32> to vector<1x32xf32>
    %157 = vector.broadcast %156 : vector<1x32xf32> to vector<8x32xf32>
    %158 = arith.mulf %155, %157 : vector<8x32xf32>
    %159 = vector.shape_cast %26 : vector<32xf32> to vector<1x32xf32>
    %160 = vector.broadcast %159 : vector<1x32xf32> to vector<8x32xf32>
    %161 = arith.addf %158, %160 : vector<8x32xf32>
    %c0_49 = arith.constant 0 : index
    %c0_50 = arith.constant 0 : index
    %c0_51 = arith.constant 0 : index
    %162 = vector.load %arg3[%c0_49, %c0_50, %c0_51] : memref<2x32x128xf32, #tpu.memory_space<vmem>>, vector<1x32x128xf32>
    %163 = vector.shape_cast %162 : vector<1x32x128xf32> to vector<32x128xf32>
    %cst_52 = arith.constant dense<0.000000e+00> : vector<8x128xf32>
    %164 = tpu.matmul %161, %163, %cst_52 {dimension_numbers = #tpu.dot_dimension_numbers<[1], [0], [0], [1], [0, 0, 1, 1], [], []>} : vector<8x32xf32>, vector<32x128xf32>, vector<8x128xf32> -> vector<8x128xf32>
    %165 = vector.shape_cast %28 : vector<128xf32> to vector<1x128xf32>
    %166 = vector.broadcast %165 : vector<1x128xf32> to vector<8x128xf32>
    %167 = arith.addf %164, %166 : vector<8x128xf32>
    %cst_53 = arith.constant 0.000000e+00 : f32
    %168 = vector.broadcast %cst_53 : f32 to vector<8x128xf32>
    %169 = arith.maximumf %167, %168 : vector<8x128xf32>
    %c0_54 = arith.constant 0 : index
    %c0_55 = arith.constant 0 : index
    %c0_56 = arith.constant 0 : index
    %170 = vector.load %arg4[%c0_54, %c0_55, %c0_56] : memref<2x128x32xf32, #tpu.memory_space<vmem>>, vector<1x128x32xf32>
    %171 = vector.shape_cast %170 : vector<1x128x32xf32> to vector<128x32xf32>
    %cst_57 = arith.constant dense<0.000000e+00> : vector<8x32xf32>
    %172 = tpu.matmul %169, %171, %cst_57 {dimension_numbers = #tpu.dot_dimension_numbers<[1], [0], [0], [1], [0, 0, 1, 1], [], []>} : vector<8x128xf32>, vector<128x32xf32>, vector<8x32xf32> -> vector<8x32xf32>
    %173 = arith.addf %137, %172 : vector<8x32xf32>
    %174 = vector.shape_cast %30 : vector<32xf32> to vector<1x32xf32>
    %175 = vector.broadcast %174 : vector<1x32xf32> to vector<8x32xf32>
    %176 = arith.addf %173, %175 : vector<8x32xf32>
    %c111 = arith.constant 111 : index
    %c0_58 = arith.constant 0 : index
    %177 = vector.load %arg5[%c111, %c0_58] : memref<128x128xf32, #tpu.memory_space<vmem>>, vector<1x32xf32>
    %178 = vector.shape_cast %177 : vector<1x32xf32> to vector<32xf32>
    %c112 = arith.constant 112 : index
    %c0_59 = arith.constant 0 : index
    %179 = vector.load %arg5[%c112, %c0_59] : memref<128x128xf32, #tpu.memory_space<vmem>>, vector<1x32xf32>
    %180 = vector.shape_cast %179 : vector<1x32xf32> to vector<32xf32>
    %c113 = arith.constant 113 : index
    %c0_60 = arith.constant 0 : index
    %181 = vector.load %arg5[%c113, %c0_60] : memref<128x128xf32, #tpu.memory_space<vmem>>, vector<1x32xf32>
    %182 = vector.shape_cast %181 : vector<1x32xf32> to vector<32xf32>
    %c114 = arith.constant 114 : index
    %c0_61 = arith.constant 0 : index
    %183 = vector.load %arg5[%c114, %c0_61] : memref<128x128xf32, #tpu.memory_space<vmem>>, vector<1x32xf32>
    %184 = vector.shape_cast %183 : vector<1x32xf32> to vector<32xf32>
    %c115 = arith.constant 115 : index
    %c0_62 = arith.constant 0 : index
    %185 = vector.load %arg5[%c115, %c0_62] : memref<128x128xf32, #tpu.memory_space<vmem>>, vector<1x32xf32>
    %186 = vector.shape_cast %185 : vector<1x32xf32> to vector<32xf32>
    %c116 = arith.constant 116 : index
    %c0_63 = arith.constant 0 : index
    %187 = vector.load %arg5[%c116, %c0_63] : memref<128x128xf32, #tpu.memory_space<vmem>>, vector<1x128xf32>
    %188 = vector.shape_cast %187 : vector<1x128xf32> to vector<128xf32>
    %c117 = arith.constant 117 : index
    %c0_64 = arith.constant 0 : index
    %189 = vector.load %arg5[%c117, %c0_64] : memref<128x128xf32, #tpu.memory_space<vmem>>, vector<1x32xf32>
    %190 = vector.shape_cast %189 : vector<1x32xf32> to vector<32xf32>
    %cst_65 = arith.constant dense<0.000000e+00> : vector<8xf32>
    %191 = vector.multi_reduction <add>, %176, %cst_65 [1] : vector<8x32xf32> to vector<8xf32>
    %192 = vector.shape_cast %191 : vector<8xf32> to vector<8x1xf32>
    %cst_66 = arith.constant 3.200000e+01 : f32
    %193 = vector.broadcast %cst_66 : f32 to vector<8x1xf32>
    %194 = arith.divf %192, %193 : vector<8x1xf32>
    %195 = vector.broadcast %194 : vector<8x1xf32> to vector<8x32xf32>
    %196 = arith.subf %176, %195 : vector<8x32xf32>
    %197 = arith.mulf %196, %196 : vector<8x32xf32>
    %cst_67 = arith.constant dense<0.000000e+00> : vector<8xf32>
    %198 = vector.multi_reduction <add>, %197, %cst_67 [1] : vector<8x32xf32> to vector<8xf32>
    %199 = vector.shape_cast %198 : vector<8xf32> to vector<8x1xf32>
    %cst_68 = arith.constant 3.200000e+01 : f32
    %200 = vector.broadcast %cst_68 : f32 to vector<8x1xf32>
    %201 = arith.divf %199, %200 : vector<8x1xf32>
    %cst_69 = arith.constant 9.99999974E-6 : f32
    %202 = vector.broadcast %cst_69 : f32 to vector<8x1xf32>
    %203 = arith.addf %201, %202 : vector<8x1xf32>
    %204 = math.rsqrt %203 : vector<8x1xf32>
    %205 = vector.broadcast %194 : vector<8x1xf32> to vector<8x32xf32>
    %206 = arith.subf %176, %205 : vector<8x32xf32>
    %207 = vector.broadcast %204 : vector<8x1xf32> to vector<8x32xf32>
    %208 = arith.mulf %206, %207 : vector<8x32xf32>
    %209 = vector.shape_cast %178 : vector<32xf32> to vector<1x32xf32>
    %210 = vector.broadcast %209 : vector<1x32xf32> to vector<8x32xf32>
    %211 = arith.mulf %208, %210 : vector<8x32xf32>
    %212 = vector.shape_cast %180 : vector<32xf32> to vector<1x32xf32>
    %213 = vector.broadcast %212 : vector<1x32xf32> to vector<8x32xf32>
    %214 = arith.addf %211, %213 : vector<8x32xf32>
    %c1 = arith.constant 1 : index
    %c0_70 = arith.constant 0 : index
    %c0_71 = arith.constant 0 : index
    %215 = vector.load %arg2[%c1, %c0_70, %c0_71] : memref<2x32x128xf32, #tpu.memory_space<vmem>>, vector<1x32x128xf32>
    %216 = vector.shape_cast %215 : vector<1x32x128xf32> to vector<32x128xf32>
    %217 = vector.extract_strided_slice %216 {offsets = [0, 0], sizes = [32, 96], strides = [1, 1]} : vector<32x128xf32> to vector<32x96xf32>
    %218 = vector.extract_strided_slice %216 {offsets = [0, 96], sizes = [32, 32], strides = [1, 1]} : vector<32x128xf32> to vector<32x32xf32>
    %cst_72 = arith.constant dense<0.000000e+00> : vector<8x96xf32>
    %219 = tpu.matmul %214, %217, %cst_72 {dimension_numbers = #tpu.dot_dimension_numbers<[1], [0], [0], [1], [0, 0, 1, 1], [], []>} : vector<8x32xf32>, vector<32x96xf32>, vector<8x96xf32> -> vector<8x96xf32>
    %220 = vector.extract_strided_slice %219 {offsets = [0, 0], sizes = [8, 8], strides = [1, 1]} : vector<8x96xf32> to vector<8x8xf32>
    %221 = vector.extract_strided_slice %219 {offsets = [0, 32], sizes = [8, 8], strides = [1, 1]} : vector<8x96xf32> to vector<8x8xf32>
    %222 = vector.extract_strided_slice %219 {offsets = [0, 64], sizes = [8, 8], strides = [1, 1]} : vector<8x96xf32> to vector<8x8xf32>
    %cst_73 = arith.constant dense<0.000000e+00> : vector<8x8xf32>
    %223 = tpu.matmul %220, %221, %cst_73 {dimension_numbers = #tpu.dot_dimension_numbers<[1], [1], [0], [0], [0, 0, 1, 0], [], []>} : vector<8x8xf32>, vector<8x8xf32>, vector<8x8xf32> -> vector<8x8xf32>
    %cst_74 = arith.constant 0.353553385 : f32
    %224 = vector.broadcast %cst_74 : f32 to vector<8x8xf32>
    %225 = arith.mulf %223, %224 : vector<8x8xf32>
    %226 = arith.addf %225, %16 : vector<8x8xf32>
    %cst_75 = arith.constant dense<0xFF800000> : vector<8xf32>
    %227 = vector.multi_reduction <maximumf>, %226, %cst_75 [1] : vector<8x8xf32> to vector<8xf32>
    %228 = vector.shape_cast %227 : vector<8xf32> to vector<8x1xf32>
    %229 = vector.broadcast %228 : vector<8x1xf32> to vector<8x8xf32>
    %230 = arith.subf %226, %229 : vector<8x8xf32>
    %231 = math.exp %230 : vector<8x8xf32>
    %cst_76 = arith.constant dense<0.000000e+00> : vector<8xf32>
    %232 = vector.multi_reduction <add>, %231, %cst_76 [1] : vector<8x8xf32> to vector<8xf32>
    %233 = vector.shape_cast %232 : vector<8xf32> to vector<8x1xf32>
    %234 = tpu.reciprocal %233 {approx = true} : vector<8x1xf32> -> vector<8x1xf32>
    %235 = vector.broadcast %234 : vector<8x1xf32> to vector<8x8xf32>
    %236 = arith.mulf %231, %235 : vector<8x8xf32>
    %cst_77 = arith.constant dense<0.000000e+00> : vector<8x8xf32>
    %237 = tpu.matmul %236, %222, %cst_77 {dimension_numbers = #tpu.dot_dimension_numbers<[1], [0], [0], [1], [0, 0, 1, 1], [], []>} : vector<8x8xf32>, vector<8x8xf32>, vector<8x8xf32> -> vector<8x8xf32>
    %238 = vector.extract_strided_slice %219 {offsets = [0, 8], sizes = [8, 8], strides = [1, 1]} : vector<8x96xf32> to vector<8x8xf32>
    %239 = vector.extract_strided_slice %219 {offsets = [0, 40], sizes = [8, 8], strides = [1, 1]} : vector<8x96xf32> to vector<8x8xf32>
    %240 = vector.extract_strided_slice %219 {offsets = [0, 72], sizes = [8, 8], strides = [1, 1]} : vector<8x96xf32> to vector<8x8xf32>
    %cst_78 = arith.constant dense<0.000000e+00> : vector<8x8xf32>
    %241 = tpu.matmul %238, %239, %cst_78 {dimension_numbers = #tpu.dot_dimension_numbers<[1], [1], [0], [0], [0, 0, 1, 0], [], []>} : vector<8x8xf32>, vector<8x8xf32>, vector<8x8xf32> -> vector<8x8xf32>
    %cst_79 = arith.constant 0.353553385 : f32
    %242 = vector.broadcast %cst_79 : f32 to vector<8x8xf32>
    %243 = arith.mulf %241, %242 : vector<8x8xf32>
    %244 = arith.addf %243, %16 : vector<8x8xf32>
    %cst_80 = arith.constant dense<0xFF800000> : vector<8xf32>
    %245 = vector.multi_reduction <maximumf>, %244, %cst_80 [1] : vector<8x8xf32> to vector<8xf32>
    %246 = vector.shape_cast %245 : vector<8xf32> to vector<8x1xf32>
    %247 = vector.broadcast %246 : vector<8x1xf32> to vector<8x8xf32>
    %248 = arith.subf %244, %247 : vector<8x8xf32>
    %249 = math.exp %248 : vector<8x8xf32>
    %cst_81 = arith.constant dense<0.000000e+00> : vector<8xf32>
    %250 = vector.multi_reduction <add>, %249, %cst_81 [1] : vector<8x8xf32> to vector<8xf32>
    %251 = vector.shape_cast %250 : vector<8xf32> to vector<8x1xf32>
    %252 = tpu.reciprocal %251 {approx = true} : vector<8x1xf32> -> vector<8x1xf32>
    %253 = vector.broadcast %252 : vector<8x1xf32> to vector<8x8xf32>
    %254 = arith.mulf %249, %253 : vector<8x8xf32>
    %cst_82 = arith.constant dense<0.000000e+00> : vector<8x8xf32>
    %255 = tpu.matmul %254, %240, %cst_82 {dimension_numbers = #tpu.dot_dimension_numbers<[1], [0], [0], [1], [0, 0, 1, 1], [], []>} : vector<8x8xf32>, vector<8x8xf32>, vector<8x8xf32> -> vector<8x8xf32>
    %256 = vector.extract_strided_slice %219 {offsets = [0, 16], sizes = [8, 8], strides = [1, 1]} : vector<8x96xf32> to vector<8x8xf32>
    %257 = vector.extract_strided_slice %219 {offsets = [0, 48], sizes = [8, 8], strides = [1, 1]} : vector<8x96xf32> to vector<8x8xf32>
    %258 = vector.extract_strided_slice %219 {offsets = [0, 80], sizes = [8, 8], strides = [1, 1]} : vector<8x96xf32> to vector<8x8xf32>
    %cst_83 = arith.constant dense<0.000000e+00> : vector<8x8xf32>
    %259 = tpu.matmul %256, %257, %cst_83 {dimension_numbers = #tpu.dot_dimension_numbers<[1], [1], [0], [0], [0, 0, 1, 0], [], []>} : vector<8x8xf32>, vector<8x8xf32>, vector<8x8xf32> -> vector<8x8xf32>
    %cst_84 = arith.constant 0.353553385 : f32
    %260 = vector.broadcast %cst_84 : f32 to vector<8x8xf32>
    %261 = arith.mulf %259, %260 : vector<8x8xf32>
    %262 = arith.addf %261, %16 : vector<8x8xf32>
    %cst_85 = arith.constant dense<0xFF800000> : vector<8xf32>
    %263 = vector.multi_reduction <maximumf>, %262, %cst_85 [1] : vector<8x8xf32> to vector<8xf32>
    %264 = vector.shape_cast %263 : vector<8xf32> to vector<8x1xf32>
    %265 = vector.broadcast %264 : vector<8x1xf32> to vector<8x8xf32>
    %266 = arith.subf %262, %265 : vector<8x8xf32>
    %267 = math.exp %266 : vector<8x8xf32>
    %cst_86 = arith.constant dense<0.000000e+00> : vector<8xf32>
    %268 = vector.multi_reduction <add>, %267, %cst_86 [1] : vector<8x8xf32> to vector<8xf32>
    %269 = vector.shape_cast %268 : vector<8xf32> to vector<8x1xf32>
    %270 = tpu.reciprocal %269 {approx = true} : vector<8x1xf32> -> vector<8x1xf32>
    %271 = vector.broadcast %270 : vector<8x1xf32> to vector<8x8xf32>
    %272 = arith.mulf %267, %271 : vector<8x8xf32>
    %cst_87 = arith.constant dense<0.000000e+00> : vector<8x8xf32>
    %273 = tpu.matmul %272, %258, %cst_87 {dimension_numbers = #tpu.dot_dimension_numbers<[1], [0], [0], [1], [0, 0, 1, 1], [], []>} : vector<8x8xf32>, vector<8x8xf32>, vector<8x8xf32> -> vector<8x8xf32>
    %274 = vector.extract_strided_slice %219 {offsets = [0, 24], sizes = [8, 8], strides = [1, 1]} : vector<8x96xf32> to vector<8x8xf32>
    %275 = vector.extract_strided_slice %219 {offsets = [0, 56], sizes = [8, 8], strides = [1, 1]} : vector<8x96xf32> to vector<8x8xf32>
    %276 = vector.extract_strided_slice %219 {offsets = [0, 88], sizes = [8, 8], strides = [1, 1]} : vector<8x96xf32> to vector<8x8xf32>
    %cst_88 = arith.constant dense<0.000000e+00> : vector<8x8xf32>
    %277 = tpu.matmul %274, %275, %cst_88 {dimension_numbers = #tpu.dot_dimension_numbers<[1], [1], [0], [0], [0, 0, 1, 0], [], []>} : vector<8x8xf32>, vector<8x8xf32>, vector<8x8xf32> -> vector<8x8xf32>
    %cst_89 = arith.constant 0.353553385 : f32
    %278 = vector.broadcast %cst_89 : f32 to vector<8x8xf32>
    %279 = arith.mulf %277, %278 : vector<8x8xf32>
    %280 = arith.addf %279, %16 : vector<8x8xf32>
    %cst_90 = arith.constant dense<0xFF800000> : vector<8xf32>
    %281 = vector.multi_reduction <maximumf>, %280, %cst_90 [1] : vector<8x8xf32> to vector<8xf32>
    %282 = vector.shape_cast %281 : vector<8xf32> to vector<8x1xf32>
    %283 = vector.broadcast %282 : vector<8x1xf32> to vector<8x8xf32>
    %284 = arith.subf %280, %283 : vector<8x8xf32>
    %285 = math.exp %284 : vector<8x8xf32>
    %cst_91 = arith.constant dense<0.000000e+00> : vector<8xf32>
    %286 = vector.multi_reduction <add>, %285, %cst_91 [1] : vector<8x8xf32> to vector<8xf32>
    %287 = vector.shape_cast %286 : vector<8xf32> to vector<8x1xf32>
    %288 = tpu.reciprocal %287 {approx = true} : vector<8x1xf32> -> vector<8x1xf32>
    %289 = vector.broadcast %288 : vector<8x1xf32> to vector<8x8xf32>
    %290 = arith.mulf %285, %289 : vector<8x8xf32>
    %cst_92 = arith.constant dense<0.000000e+00> : vector<8x8xf32>
    %291 = tpu.matmul %290, %276, %cst_92 {dimension_numbers = #tpu.dot_dimension_numbers<[1], [0], [0], [1], [0, 0, 1, 1], [], []>} : vector<8x8xf32>, vector<8x8xf32>, vector<8x8xf32> -> vector<8x8xf32>
    %292 = tpu.concatenate %237, %255, %273, %291 in 1 : vector<8x8xf32>, vector<8x8xf32>, vector<8x8xf32>, vector<8x8xf32> -> vector<8x32xf32>
    %cst_93 = arith.constant dense<0.000000e+00> : vector<8x32xf32>
    %293 = tpu.matmul %292, %218, %cst_93 {dimension_numbers = #tpu.dot_dimension_numbers<[1], [0], [0], [1], [0, 0, 1, 1], [], []>} : vector<8x32xf32>, vector<32x32xf32>, vector<8x32xf32> -> vector<8x32xf32>
    %294 = arith.addf %176, %293 : vector<8x32xf32>
    %295 = vector.shape_cast %182 : vector<32xf32> to vector<1x32xf32>
    %296 = vector.broadcast %295 : vector<1x32xf32> to vector<8x32xf32>
    %297 = arith.addf %294, %296 : vector<8x32xf32>
    %cst_94 = arith.constant dense<0.000000e+00> : vector<8xf32>
    %298 = vector.multi_reduction <add>, %297, %cst_94 [1] : vector<8x32xf32> to vector<8xf32>
    %299 = vector.shape_cast %298 : vector<8xf32> to vector<8x1xf32>
    %cst_95 = arith.constant 3.200000e+01 : f32
    %300 = vector.broadcast %cst_95 : f32 to vector<8x1xf32>
    %301 = arith.divf %299, %300 : vector<8x1xf32>
    %302 = vector.broadcast %301 : vector<8x1xf32> to vector<8x32xf32>
    %303 = arith.subf %297, %302 : vector<8x32xf32>
    %304 = arith.mulf %303, %303 : vector<8x32xf32>
    %cst_96 = arith.constant dense<0.000000e+00> : vector<8xf32>
    %305 = vector.multi_reduction <add>, %304, %cst_96 [1] : vector<8x32xf32> to vector<8xf32>
    %306 = vector.shape_cast %305 : vector<8xf32> to vector<8x1xf32>
    %cst_97 = arith.constant 3.200000e+01 : f32
    %307 = vector.broadcast %cst_97 : f32 to vector<8x1xf32>
    %308 = arith.divf %306, %307 : vector<8x1xf32>
    %cst_98 = arith.constant 9.99999974E-6 : f32
    %309 = vector.broadcast %cst_98 : f32 to vector<8x1xf32>
    %310 = arith.addf %308, %309 : vector<8x1xf32>
    %311 = math.rsqrt %310 : vector<8x1xf32>
    %312 = vector.broadcast %301 : vector<8x1xf32> to vector<8x32xf32>
    %313 = arith.subf %297, %312 : vector<8x32xf32>
    %314 = vector.broadcast %311 : vector<8x1xf32> to vector<8x32xf32>
    %315 = arith.mulf %313, %314 : vector<8x32xf32>
    %316 = vector.shape_cast %184 : vector<32xf32> to vector<1x32xf32>
    %317 = vector.broadcast %316 : vector<1x32xf32> to vector<8x32xf32>
    %318 = arith.mulf %315, %317 : vector<8x32xf32>
    %319 = vector.shape_cast %186 : vector<32xf32> to vector<1x32xf32>
    %320 = vector.broadcast %319 : vector<1x32xf32> to vector<8x32xf32>
    %321 = arith.addf %318, %320 : vector<8x32xf32>
    %c1_99 = arith.constant 1 : index
    %c0_100 = arith.constant 0 : index
    %c0_101 = arith.constant 0 : index
    %322 = vector.load %arg3[%c1_99, %c0_100, %c0_101] : memref<2x32x128xf32, #tpu.memory_space<vmem>>, vector<1x32x128xf32>
    %323 = vector.shape_cast %322 : vector<1x32x128xf32> to vector<32x128xf32>
    %cst_102 = arith.constant dense<0.000000e+00> : vector<8x128xf32>
    %324 = tpu.matmul %321, %323, %cst_102 {dimension_numbers = #tpu.dot_dimension_numbers<[1], [0], [0], [1], [0, 0, 1, 1], [], []>} : vector<8x32xf32>, vector<32x128xf32>, vector<8x128xf32> -> vector<8x128xf32>
    %325 = vector.shape_cast %188 : vector<128xf32> to vector<1x128xf32>
    %326 = vector.broadcast %325 : vector<1x128xf32> to vector<8x128xf32>
    %327 = arith.addf %324, %326 : vector<8x128xf32>
    %cst_103 = arith.constant 0.000000e+00 : f32
    %328 = vector.broadcast %cst_103 : f32 to vector<8x128xf32>
    %329 = arith.maximumf %327, %328 : vector<8x128xf32>
    %c1_104 = arith.constant 1 : index
    %c0_105 = arith.constant 0 : index
    %c0_106 = arith.constant 0 : index
    %330 = vector.load %arg4[%c1_104, %c0_105, %c0_106] : memref<2x128x32xf32, #tpu.memory_space<vmem>>, vector<1x128x32xf32>
    %331 = vector.shape_cast %330 : vector<1x128x32xf32> to vector<128x32xf32>
    %cst_107 = arith.constant dense<0.000000e+00> : vector<8x32xf32>
    %332 = tpu.matmul %329, %331, %cst_107 {dimension_numbers = #tpu.dot_dimension_numbers<[1], [0], [0], [1], [0, 0, 1, 1], [], []>} : vector<8x128xf32>, vector<128x32xf32>, vector<8x32xf32> -> vector<8x32xf32>
    %333 = arith.addf %297, %332 : vector<8x32xf32>
    %334 = vector.shape_cast %190 : vector<32xf32> to vector<1x32xf32>
    %335 = vector.broadcast %334 : vector<1x32xf32> to vector<8x32xf32>
    %336 = arith.addf %333, %335 : vector<8x32xf32>
    %c118 = arith.constant 118 : index
    %c0_108 = arith.constant 0 : index
    %337 = vector.load %arg5[%c118, %c0_108] : memref<128x128xf32, #tpu.memory_space<vmem>>, vector<1x32xf32>
    %338 = vector.shape_cast %337 : vector<1x32xf32> to vector<32xf32>
    %c119 = arith.constant 119 : index
    %c0_109 = arith.constant 0 : index
    %339 = vector.load %arg5[%c119, %c0_109] : memref<128x128xf32, #tpu.memory_space<vmem>>, vector<1x32xf32>
    %340 = vector.shape_cast %339 : vector<1x32xf32> to vector<32xf32>
    %c120 = arith.constant 120 : index
    %c0_110 = arith.constant 0 : index
    %341 = vector.load %arg5[%c120, %c0_110] : memref<128x128xf32, #tpu.memory_space<vmem>>, vector<1x128xf32>
    %342 = vector.shape_cast %341 : vector<1x128xf32> to vector<128xf32>
    %cst_111 = arith.constant dense<0.000000e+00> : vector<8xf32>
    %343 = vector.multi_reduction <add>, %336, %cst_111 [1] : vector<8x32xf32> to vector<8xf32>
    %344 = vector.shape_cast %343 : vector<8xf32> to vector<8x1xf32>
    %cst_112 = arith.constant 3.200000e+01 : f32
    %345 = vector.broadcast %cst_112 : f32 to vector<8x1xf32>
    %346 = arith.divf %344, %345 : vector<8x1xf32>
    %347 = vector.broadcast %346 : vector<8x1xf32> to vector<8x32xf32>
    %348 = arith.subf %336, %347 : vector<8x32xf32>
    %349 = arith.mulf %348, %348 : vector<8x32xf32>
    %cst_113 = arith.constant dense<0.000000e+00> : vector<8xf32>
    %350 = vector.multi_reduction <add>, %349, %cst_113 [1] : vector<8x32xf32> to vector<8xf32>
    %351 = vector.shape_cast %350 : vector<8xf32> to vector<8x1xf32>
    %cst_114 = arith.constant 3.200000e+01 : f32
    %352 = vector.broadcast %cst_114 : f32 to vector<8x1xf32>
    %353 = arith.divf %351, %352 : vector<8x1xf32>
    %cst_115 = arith.constant 9.99999974E-6 : f32
    %354 = vector.broadcast %cst_115 : f32 to vector<8x1xf32>
    %355 = arith.addf %353, %354 : vector<8x1xf32>
    %356 = math.rsqrt %355 : vector<8x1xf32>
    %357 = vector.broadcast %346 : vector<8x1xf32> to vector<8x32xf32>
    %358 = arith.subf %336, %357 : vector<8x32xf32>
    %359 = vector.broadcast %356 : vector<8x1xf32> to vector<8x32xf32>
    %360 = arith.mulf %358, %359 : vector<8x32xf32>
    %361 = vector.shape_cast %338 : vector<32xf32> to vector<1x32xf32>
    %362 = vector.broadcast %361 : vector<1x32xf32> to vector<8x32xf32>
    %363 = arith.mulf %360, %362 : vector<8x32xf32>
    %364 = vector.shape_cast %340 : vector<32xf32> to vector<1x32xf32>
    %365 = vector.broadcast %364 : vector<1x32xf32> to vector<8x32xf32>
    %366 = arith.addf %363, %365 : vector<8x32xf32>
    %c64 = arith.constant 64 : index
    %c0_116 = arith.constant 0 : index
    %367 = vector.load %arg5[%c64, %c0_116] : memref<128x128xf32, #tpu.memory_space<vmem>>, vector<32x128xf32>
    %cst_117 = arith.constant dense<0.000000e+00> : vector<8x128xf32>
    %368 = tpu.matmul %366, %367, %cst_117 {dimension_numbers = #tpu.dot_dimension_numbers<[1], [0], [0], [1], [0, 0, 1, 1], [], []>} : vector<8x32xf32>, vector<32x128xf32>, vector<8x128xf32> -> vector<8x128xf32>
    %369 = vector.shape_cast %342 : vector<128xf32> to vector<1x128xf32>
    %370 = vector.broadcast %369 : vector<1x128xf32> to vector<8x128xf32>
    %371 = arith.addf %368, %370 : vector<8x128xf32>
    %c0_118 = arith.constant 0 : index
    %c0_119 = arith.constant 0 : index
    %c0_120 = arith.constant 0 : index
    %372 = vector.load %arg6[%c0_118, %c0_119, %c0_120] : memref<1x8x128xf32, #tpu.memory_space<vmem>>, vector<1x8x128xf32>
    %373 = vector.shape_cast %372 : vector<1x8x128xf32> to vector<8x128xf32>
    %374 = vector.shape_cast %371 : vector<8x128xf32> to vector<1x8x128xf32>
    tpu.vector_store %arg6[%c0_118, %c0_119, %c0_120], %374 {strides = array<i32>} : memref<1x8x128xf32, #tpu.memory_space<vmem>>, vector<1x8x128xf32>,
    return
  }
  func.func @transform_0(%arg0: i32) -> (i32, i32, i32) {
    %c0_i32 = arith.constant 0 : i32
    %c0_i32_0 = arith.constant 0 : i32
    %c0_i32_1 = arith.constant 0 : i32
    return %arg0, %c0_i32, %c0_i32_0 : i32, i32, i32
  }
  func.func @transform_1(%arg0: i32) -> (i32, i32, i32) {
    %c0_i32 = arith.constant 0 : i32
    %c0_i32_0 = arith.constant 0 : i32
    %c0_i32_1 = arith.constant 0 : i32
    %c0_i32_2 = arith.constant 0 : i32
    return %c0_i32, %c0_i32_0, %c0_i32_1 : i32, i32, i32
  }
  func.func @transform_2(%arg0: i32) -> (i32, i32, i32) {
    %c0_i32 = arith.constant 0 : i32
    %c0_i32_0 = arith.constant 0 : i32
    %c0_i32_1 = arith.constant 0 : i32
    %c0_i32_2 = arith.constant 0 : i32
    return %c0_i32, %c0_i32_0, %c0_i32_1 : i32, i32, i32
  }
  func.func @transform_3(%arg0: i32) -> (i32, i32, i32) {
    %c0_i32 = arith.constant 0 : i32
    %c0_i32_0 = arith.constant 0 : i32
    %c0_i32_1 = arith.constant 0 : i32
    %c0_i32_2 = arith.constant 0 : i32
    return %c0_i32, %c0_i32_0, %c0_i32_1 : i32, i32, i32
  }
  func.func @transform_4(%arg0: i32) -> (i32, i32) {
    %c0_i32 = arith.constant 0 : i32
    %c0_i32_0 = arith.constant 0 : i32
    %c0_i32_1 = arith.constant 0 : i32
    return %c0_i32, %c0_i32_0 : i32, i32
  }
  func.func @transform_5(%arg0: i32) -> (i32, i32, i32) {
    %c0_i32 = arith.constant 0 : i32
    %c0_i32_0 = arith.constant 0 : i32
    %c0_i32_1 = arith.constant 0 : i32
    return %arg0, %c0_i32, %c0_i32_0 : i32, i32, i32
  }
}

</mosaic_0001>

<llo_original>
// kernel: decoder_forward.1
$region0: #{decoder_forward.1}
  #allocation0 [shape = 'u32[]', space=smem, size = 0x4, offset = 0x4, fixed_abs, tag = 'smem constant byte address 0x4 - core index']
  #allocation1 [shape = 'u32[144,128]{1,0:T(1,128)}', space=vmem, size = 0x12000, scoped, tag = 'internal scratch']
  %s0 = inlined_call_operand.vmem [shape: s32[2,8,1], index: 0, kind: input, shape index: {}]
  %s1 = inlined_call_operand.vmem [shape: f32[2,32,128], index: 1, kind: input, shape index: {}]
  %s2 = inlined_call_operand.vmem [shape: f32[2,32,128], index: 2, kind: input, shape index: {}]
  %s3 = inlined_call_operand.vmem [shape: f32[2,128,32], index: 3, kind: input, shape index: {}]
  %s4 = inlined_call_operand.vmem [shape: f32[128,128], index: 4, kind: input, shape index: {}]
  %s5 = inlined_call_operand.hbm [shape: f32[2,8,128], index: 5, kind: output, shape index: {}]
  %s6 = sld [smem:[#allocation0]]
  $region53: #{decoder_forward.1} parent=0
    _
  %s8 = ssub.s32 1, %s6
  %s9 = scalar_select 0, %s8, %s6
  $region1: #{decoder_forward.1} parent=0
    #allocation2 [shape = 'u8[8192]{0}', space=vmem, size = 0x2000, scoped, tag = 'output window, operand 0']
    #allocation3 [shape = 's32[2]{0}', space=sflag, size = 0x8, scoped, tag = 'scoped memory for decoder_forward.1']
    %10 = vsyncpa [#allocation3], 0
    %s11 = scalar_lea.sflag [#allocation3], 1
    %12 = vsyncpa %s11, 0
    loop: start=0, step=1, limit=4
    $region2: #{decoder_forward.1} parent=1 // loop_pre_header
      _
    $region3: #{decoder_forward.1} parent=1 // loop_header
      %s14 = sphi 0, %s18
      %p15 = scmp.ge.s32.totalorder %s14, 4
      %s24 = sphi 0, %s26
      %s27 = sphi 0, %s24
      %s28 = sphi 0, %s27
      %s44 = sphi 0, %s28
      %s48 = sphi 0, %s48
      %s50 = sphi 0, %s48
      %s51 = sphi 0, %s50
      %s65 = sphi 0, %s51
      %s69 = sphi 0, %s69
      %s71 = sphi 0, %s69
      %s72 = sphi 0, %s71
      %s86 = sphi 0, %s72
      %s90 = sphi 0, %s90
      %s92 = sphi 0, %s90
      %s93 = sphi 0, %s92
      %s107 = sphi 0, %s93
      %s111 = sphi 0, %s111
      %s113 = sphi 0, %s111
      %s114 = sphi 0, %s113
      %s128 = sphi 0, %s114
      %s134 = sphi 0, %s136
      %s137 = sphi 0, %s134
      %s138 = sphi 0, %s137
      %s154 = sphi 0, %s138
    $region4: #{decoder_forward.1} parent=1 // loop_header_branch
      %17 = sbr.rel (%p15) target = $region8
    $region5: #{decoder_forward.1} parent=1 // loop_body
      %s19 = ssub.s32 %s14, 1
      %s20 = ssub.s32 %s14, 2
      %s21 = sadd.s32 %s14, 1
      %s22 = ssub.s32 %s14, %s21
      %p23 = scmp.eq.s32.totalorder %s22, 0
      %s25 = sadd.s32 %s24, 1
      %s26 = scalar_select %p23, %s24, %s25
      %p29 = pneg %p23
      %p30 = scmp.eq.s32.totalorder %s14, 1
      %p31 = por %p29, %p30
      %p32 = scmp.ne.s32.totalorder %s24, %s27
      %p33 = scmp.eq.s32.totalorder %s14, 0
      %p34 = por %p32, %p33
      %p35 = scmp.ne.s32.totalorder %s24, %s27
      %p36 = scmp.eq.s32.totalorder %s19, 1
      %p37 = por %p35, %p36
      %p38 = scmp.ne.s32.totalorder %s27, %s28
      %p39 = scmp.eq.s32.totalorder %s19, 0
      %p40 = por %p38, %p39
      %p41 = scmp.ne.s32.totalorder %s27, %s28
      %p42 = scmp.eq.s32.totalorder %s20, 1
      %p43 = por %p41, %p42
      %p45 = scmp.ne.s32.totalorder %s28, %s44
      %p46 = scmp.eq.s32.totalorder %s20, 0
      %p47 = por %p45, %p46
      %s49 = sadd.s32 %s48, 1
      %p52 = scmp.eq.s32.totalorder %s14, 1
      %p53 = scmp.ne.s32.totalorder %s48, %s50
      %p54 = scmp.eq.s32.totalorder %s14, 0
      %p55 = por %p53, %p54
      %p56 = scmp.ne.s32.totalorder %s48, %s50
      %p57 = scmp.eq.s32.totalorder %s19, 1
      %p58 = por %p56, %p57
      %p59 = scmp.ne.s32.totalorder %s50, %s51
      %p60 = scmp.eq.s32.totalorder %s19, 0
      %p61 = por %p59, %p60
      %p62 = scmp.ne.s32.totalorder %s50, %s51
      %p63 = scmp.eq.s32.totalorder %s20, 1
      %p64 = por %p62, %p63
      %p66 = scmp.ne.s32.totalorder %s51, %s65
      %p67 = scmp.eq.s32.totalorder %s20, 0
      %p68 = por %p66, %p67
      %s70 = sadd.s32 %s69, 1
      %p73 = scmp.eq.s32.totalorder %s14, 1
      %p74 = scmp.ne.s32.totalorder %s69, %s71
      %p75 = scmp.eq.s32.totalorder %s14, 0
      %p76 = por %p74, %p75
      %p77 = scmp.ne.s32.totalorder %s69, %s71
      %p78 = scmp.eq.s32.totalorder %s19, 1
      %p79 = por %p77, %p78
      %p80 = scmp.ne.s32.totalorder %s71, %s72
      %p81 = scmp.eq.s32.totalorder %s19, 0
      %p82 = por %p80, %p81
      %p83 = scmp.ne.s32.totalorder %s71, %s72
      %p84 = scmp.eq.s32.totalorder %s20, 1
      %p85 = por %p83, %p84
      %p87 = scmp.ne.s32.totalorder %s72, %s86
      %p88 = scmp.eq.s32.totalorder %s20, 0
      %p89 = por %p87, %p88
      %s91 = sadd.s32 %s90, 1
      %p94 = scmp.eq.s32.totalorder %s14, 1
      %p95 = scmp.ne.s32.totalorder %s90, %s92
      %p96 = scmp.eq.s32.totalorder %s14, 0
      %p97 = por %p95, %p96
      %p98 = scmp.ne.s32.totalorder %s90, %s92
      %p99 = scmp.eq.s32.totalorder %s19, 1
      %p100 = por %p98, %p99
      %p101 = scmp.ne.s32.totalorder %s92, %s93
      %p102 = scmp.eq.s32.totalorder %s19, 0
      %p103 = por %p101, %p102
      %p104 = scmp.ne.s32.totalorder %s92, %s93
      %p105 = scmp.eq.s32.totalorder %s20, 1
      %p106 = por %p104, %p105
      %p108 = scmp.ne.s32.totalorder %s93, %s107
      %p109 = scmp.eq.s32.totalorder %s20, 0
      %p110 = por %p108, %p109
      %s112 = sadd.s32 %s111, 1
      %p115 = scmp.eq.s32.totalorder %s14, 1
      %p116 = scmp.ne.s32.totalorder %s111, %s113
      %p117 = scmp.eq.s32.totalorder %s14, 0
      %p118 = por %p116, %p117
      %p119 = scmp.ne.s32.totalorder %s111, %s113
      %p120 = scmp.eq.s32.totalorder %s19, 1
      %p121 = por %p119, %p120
      %p122 = scmp.ne.s32.totalorder %s113, %s114
      %p123 = scmp.eq.s32.totalorder %s19, 0
      %p124 = por %p122, %p123
      %p125 = scmp.ne.s32.totalorder %s113, %s114
      %p126 = scmp.eq.s32.totalorder %s20, 1
      %p127 = por %p125, %p126
      %p129 = scmp.ne.s32.totalorder %s114, %s128
      %p130 = scmp.eq.s32.totalorder %s20, 0
      %p131 = por %p129, %p130
      %s132 = ssub.s32 %s14, %s21
      %p133 = scmp.eq.s32.totalorder %s132, 0
      %s135 = sadd.s32 %s134, 1
      %s136 = scalar_select %p133, %s134, %s135
      %p139 = pneg %p133
      %p140 = scmp.eq.s32.totalorder %s14, 1
      %p141 = por %p139, %p140
      %p142 = scmp.ne.s32.totalorder %s134, %s137
      %p143 = scmp.eq.s32.totalorder %s14, 0
      %p144 = por %p142, %p143
      %p145 = scmp.ne.s32.totalorder %s134, %s137
      %p146 = scmp.eq.s32.totalorder %s19, 1
      %p147 = por %p145, %p146
      %p148 = scmp.ne.s32.totalorder %s137, %s138
      %p149 = scmp.eq.s32.totalorder %s19, 0
      %p150 = por %p148, %p149
      %p151 = scmp.ne.s32.totalorder %s137, %s138
      %p152 = scmp.eq.s32.totalorder %s20, 1
      %p153 = por %p151, %p152
      %p155 = scmp.ne.s32.totalorder %s138, %s154
      %p156 = scmp.eq.s32.totalorder %s20, 0
      %p157 = por %p155, %p156
      %p158 = scmp.le.s32.totalorder 1, %s14
      %p159 = scmp.lt.s32.totalorder %s14, 3
      %p160 = pnand %p158, %p159
      %p161 = pneg %p160
      // Predicated region
      $region9: #{decoder_forward.1} parent=5 // pred_check
        _
      $region10: #{decoder_forward.1} parent=5 // pred_check_branch
        %163 = sbr.rel (%p160) target = $region12
      $region11: #{decoder_forward.1} parent=5 // pred_region
        %s164 = ssub.s32 %s14, 1
        // Predicated region
        $region13: #{decoder_forward.1} parent=11 // pred_check
          %p165 = pneg %p61
        $region14: #{decoder_forward.1} parent=11 // pred_check_branch
          %167 = sbr.rel (%p165) target = $region16
        $region15: #{decoder_forward.1} parent=11 // pred_region
          _
        $region16: #{decoder_forward.1} parent=11 // pred_fallthru
          _
        // Predicated region
        $region17: #{decoder_forward.1} parent=11 // pred_check
          %p168 = pneg %p82
        $region18: #{decoder_forward.1} parent=11 // pred_check_branch
          %170 = sbr.rel (%p168) target = $region20
        $region19: #{decoder_forward.1} parent=11 // pred_region
          _
        $region20: #{decoder_forward.1} parent=11 // pred_fallthru
          _
        // Predicated region
        $region21: #{decoder_forward.1} parent=11 // pred_check
          %p171 = pneg %p103
        $region22: #{decoder_forward.1} parent=11 // pred_check_branch
          %173 = sbr.rel (%p171) target = $region24
        $region23: #{decoder_forward.1} parent=11 // pred_region
          _
        $region24: #{decoder_forward.1} parent=11 // pred_fallthru
          _
        // Predicated region
        $region25: #{decoder_forward.1} parent=11 // pred_check
          %p174 = pneg %p124
        $region26: #{decoder_forward.1} parent=11 // pred_check_branch
          %176 = sbr.rel (%p174) target = $region28
        $region27: #{decoder_forward.1} parent=11 // pred_region
          _
        $region28: #{decoder_forward.1} parent=11 // pred_fallthru
          _
      $region12: #{decoder_forward.1} parent=5 // pred_fallthru
        _
      %p177 = scmp.lt.s32.totalorder %s14, 2
      // Predicated region
      $region29: #{decoder_forward.1} parent=5 // pred_check
        %p178 = pneg %p177
      $region30: #{decoder_forward.1} parent=5 // pred_check_branch
        %180 = sbr.rel (%p178) target = $region32
      $region31: #{decoder_forward.1} parent=5 // pred_region
        // Predicated region
        $region33: #{decoder_forward.1} parent=31 // pred_check
          %p181 = pneg %p34
        $region34: #{decoder_forward.1} parent=31 // pred_check_branch
          %183 = sbr.rel (%p181) target = $region36
        $region35: #{decoder_forward.1} parent=31 // pred_region
          %p184 = scmp.lt.s32.totalorder %s14, 1
          %s185 = scalar_select %p184, %s14, 1
          %s186 = smul.addr %s185, 8
          %s187 = scalar_lea.vmem %s0, %s186
        $region36: #{decoder_forward.1} parent=31 // pred_fallthru
          _
      $region32: #{decoder_forward.1} parent=5 // pred_fallthru
        _
      %p188 = scmp.le.s32.totalorder 1, %s14
      %p189 = scmp.lt.s32.totalorder %s14, 3
      %p190 = pnand %p188, %p189
      %p191 = pneg %p190
      // Predicated region
      $region37: #{decoder_forward.1} parent=5 // pred_check
        _
      $region38: #{decoder_forward.1} parent=5 // pred_check_branch
        %193 = sbr.rel (%p190) target = $region40
      $region39: #{decoder_forward.1} parent=5 // pred_region
        %s194 = ssub.s32 %s14, 1
        %p195 = scmp.lt.s32.totalorder %s19, 1
        %s196 = scalar_select %p195, %s19, 1
        %s197 = smul.addr %s196, 8
        %s198 = scalar_lea.vmem %s0, %s197
        %p199 = pneg %p40
        %p200 = pneg %p37
        %p201 = pneg %p61
        %p202 = pneg %p58
        %p203 = pneg %p82
        %p204 = pneg %p79
        %p205 = pneg %p103
        %p206 = pneg %p100
        %p207 = pneg %p124
        %p208 = pneg %p121
        %p209 = pneg %p150
        %p210 = pneg %p147
        %s211 = sand.u32 %s137, 1
        %s212 = scalar_lea.sflag [#allocation3], %s211
        %s213 = sand.u32 %s137, 1
        %s214 = smul.addr %s213, 8
        %s215 = scalar_lea.vmem [#allocation2], %s214
        %p216 = scmp.lt.s32.totalorder %s19, 1
        %s217 = scalar_select %p216, %s19, 1
        %s218 = smul.addr %s217, 8
        %s219 = scalar_lea.vmem %s0, %s218
        %v220 = vld [vmem:[%s219] sm:$0xff]
        %v221 = vlaneseq
        %v222 = vand.u32 %v221, 127
        %223 = vset.pattern.permute.xlu0 0
        %224 = vperm.xlu0 %223, %v220
        %v225 = vpop.permute.xlu0 %224
        %vm226 = vcmp.eq.s32.totalorder %v222, %v225
        %v227 = vsel %vm226, 1, 0
        %v228 = vcvt.s32.f32 %v227
        %v229 = vld [vmem:[%s4] sm:$0xff]
        %v230 = vld [vmem:[%s4 + $0x8] sm:$0xff]
        %v231 = vld [vmem:[%s4 + $0x10] sm:$0xff]
        %v232 = vld [vmem:[%s4 + $0x18] sm:$0xff]
        %v233 = vld [vmem:[%s4 + $0x20] sm:$0xff]
        %v234 = vld [vmem:[%s4 + $0x28] sm:$0xff]
        %v235 = vld [vmem:[%s4 + $0x30] sm:$0xff]
        %v236 = vld [vmem:[%s4 + $0x38] sm:$0xff]
        %v237 = vld [vmem:[%s4 + $0x60] sm:$0xff]
        %vm238 = vcmask 523264
        %v240 = vsel %vm238, %v228, 0
        %242 = vmatprep.subr.mxu0 0.0
        %243 = vmatpush1.msra.mxu0 %v229
        %244 = vmatprep.subr.mxu0 0.0
        %245 = vmatpush1.msra.mxu0 %v230
        %246 = vmatprep.subr.mxu0 0.0
        %247 = vmatpush1.msra.mxu0 %v231
        %248 = vmatprep.subr.mxu0 0.0
        %249 = vmatpush1.msra.mxu0 %v232
        %250 = vmatprep.subr.mxu0 0.0
        %251 = vmatpush1.msra.mxu0 %v233
        %252 = vmatprep.subr.mxu0 0.0
        %253 = vmatpush1.msra.mxu0 %v234
        %254 = vmatprep.subr.mxu0 0.0
        %255 = vmatpush1.msra.mxu0 %v235
        %256 = vmatprep.subr.mxu0 0.0
        %257 = vmatpush1.msra.mxu0 %v236
        %258 = vmatprep.subr.mxu0 0.0
        %259 = vmatpush1.msra.mxu0 0.0
        %260 = vmatprep.subr.mxu0 0.0
        %261 = vmatpush1.msra.mxu0 0.0
        %262 = vmatprep.subr.mxu0 0.0
        %263 = vmatpush1.msra.mxu0 0.0
        %264 = vmatprep.subr.mxu0 0.0
        %265 = vmatpush1.msra.mxu0 0.0
        %266 = vmatprep.subr.mxu0 0.0
        %267 = vmatpush1.msra.mxu0 0.0
        %268 = vmatprep.subr.mxu0 0.0
        %269 = vmatpush1.msra.mxu0 0.0
        %270 = vmatprep.subr.mxu0 0.0
        %271 = vmatpush1.msra.mxu0 0.0
        %272 = vmatprep.subr.mxu0 0.0
        %273 = vmatpush1.msra.mxu0 0.0
        %274 = vmatprep.subr.mxu0 0.0
        %275 = vmatpush1.msra.mxu0 0.0
        %276 = vmatprep.subr.mxu0 0.0
        %277 = vmatpush1.msra.mxu0 0.0
        %278 = vmatprep.subr.mxu0 0.0
        %279 = vmatpush1.msra.mxu0 0.0
        %280 = vmatprep.subr.mxu0 0.0
        %281 = vmatpush1.msra.mxu0 0.0
        %282 = vmatprep.subr.mxu0 0.0
        %283 = vmatpush1.msra.mxu0 0.0
        %284 = vmatprep.subr.mxu0 0.0
        %285 = vmatpush1.msra.mxu0 0.0
        %286 = vmatprep.subr.mxu0 0.0
        %287 = vmatpush1.msra.mxu0 0.0
        %288 = vmatprep.subr.mxu0 0.0
        %289 = vmatpush1.msra.mxu0 0.0
        %290 = vmatprep.subr.mxu0 0.0
        %291 = vmatpush1.msra.mxu0 0.0
        %292 = vmatprep.subr.mxu0 0.0
        %293 = vmatpush1.msra.mxu0 0.0
        %294 = vmatprep.subr.mxu0 0.0
        %295 = vmatpush1.msra.mxu0 0.0
        %296 = vmatprep.subr.mxu0 0.0
        %297 = vmatpush1.msra.mxu0 0.0
        %298 = vmatprep.subr.mxu0 0.0
        %299 = vmatpush1.msra.mxu0 0.0
        %300 = vmatprep.subr.mxu0 0.0
        %301 = vmatpush1.msra.mxu0 0.0
        %302 = vmatprep.subr.mxu0 0.0
        %303 = vmatpush1.msra.mxu0 0.0
        %304 = vmatprep.subr.mxu0 0.0
        %305 = vmatpush1.msra.mxu0 0.0
        %306 = vmatprep.mubr.f32.mxu0 0.0
        %307 = vmatmul.mubr.f32.gmra.mrb[0].mxu0 %v240
        %v308 = vpop.f32.mrb[0].mxu0
        %v309 = vadd.f32 %v237, %v308
        %v310 = vpop.f32.mrb[0].mxu0
        %311 = vdwg.mxu0
        %v312 = vlaneseq
        %v313 = vshrl.u32 %v312, 7
        %vm314 = vcmp.ge.s32.totalorder %v313, %v222
        %v315 = vsel %vm314, 0.0, -1e+30
        %v316 = vld [vmem:[%s4 + $0x68] sm:$0x1]
        %v317 = vld [vmem:[%s4 + $0x69] sm:$0x1]
        %v318 = vld [vmem:[%s4 + $0x6a] sm:$0x1]
        %v319 = vld [vmem:[%s4 + $0x6b] sm:$0x1]
        %v320 = vld [vmem:[%s4 + $0x6c] sm:$0x1]
        %v321 = vld [vmem:[%s4 + $0x6d] sm:$0x1]
        %v322 = vld [vmem:[%s4 + $0x6e] sm:$0x1]
        %vm323 = vcmask 261120
        %v324 = vsel %vm323, %v309, 0.0
        %325 = vadd.xlane.f32.xlu0 %v324
        %v326 = vpop.xlane.xlu0 %325
        %v327 = vrcp.pop 32.0
        %v328 = vmul.f32 %v326, %v327
        %v329 = vsub.f32 %v309, %v328
        %v330 = vmul.f32 %v329, %v329
        %v331 = vsel %vm323, %v330, 0.0
        %332 = vadd.xlane.f32.xlu0 %v331
        %v333 = vpop.xlane.xlu0 %332
        %v334 = vmul.f32 %v333, %v327
        %v335 = vadd.f32 %v334, 1e-05
        %v336 = vrsqrt.pop %v335
        %v337 = vmul.f32 %v329, %v336
        %v338 = vlaneseq
        %v339 = vshrl.u32 %v338, 7
        %v340 = vsub.s32 0, %v339
        %v341 = vrot.slane %v316, %v340
        %v342 = vmul.f32 %v337, %v341
        %v343 = vlaneseq
        %v344 = vshrl.u32 %v343, 7
        %v345 = vsub.s32 0, %v344
        %v346 = vrot.slane %v317, %v345
        %v347 = vadd.f32 %v342, %v346
        %v348 = vld [vmem:[%s1] sm:$0xff]
        %v349 = vld [vmem:[%s1 + $0x8] sm:$0xff]
        %v350 = vld [vmem:[%s1 + $0x10] sm:$0xff]
        %v351 = vld [vmem:[%s1 + $0x18] sm:$0xff]
        %v353 = vsel %vm323, %v347, 0
        %355 = vmatprep.subr.mxu0 0.0
        %356 = vmatpush1.msra.mxu0 %v348
        %357 = vmatprep.subr.mxu0 0.0
        %358 = vmatpush1.msra.mxu0 %v349
        %359 = vmatprep.subr.mxu0 0.0
        %360 = vmatpush1.msra.mxu0 %v350
        %361 = vmatprep.subr.mxu0 0.0
        %362 = vmatpush1.msra.mxu0 %v351
        %363 = vmatprep.subr.mxu0 0.0
        %364 = vmatpush1.msra.mxu0 0.0
        %365 = vmatprep.subr.mxu0 0.0
        %366 = vmatpush1.msra.mxu0 0.0
        %367 = vmatprep.subr.mxu0 0.0
        %368 = vmatpush1.msra.mxu0 0.0
        %369 = vmatprep.subr.mxu0 0.0
        %370 = vmatpush1.msra.mxu0 0.0
        %371 = vmatprep.subr.mxu0 0.0
        %372 = vmatpush1.msra.mxu0 0.0
        %373 = vmatprep.subr.mxu0 0.0
        %374 = vmatpush1.msra.mxu0 0.0
        %375 = vmatprep.subr.mxu0 0.0
        %376 = vmatpush1.msra.mxu0 0.0
        %377 = vmatprep.subr.mxu0 0.0
        %378 = vmatpush1.msra.mxu0 0.0
        %379 = vmatprep.subr.mxu0 0.0
        %380 = vmatpush1.msra.mxu0 0.0
        %381 = vmatprep.subr.mxu0 0.0
        %382 = vmatpush1.msra.mxu0 0.0
        %383 = vmatprep.subr.mxu0 0.0
        %384 = vmatpush1.msra.mxu0 0.0
        %385 = vmatprep.subr.mxu0 0.0
        %386 = vmatpush1.msra.mxu0 0.0
        %387 = vmatprep.subr.mxu0 0.0
        %388 = vmatpush1.msra.mxu0 0.0
        %389 = vmatprep.subr.mxu0 0.0
        %390 = vmatpush1.msra.mxu0 0.0
        %391 = vmatprep.subr.mxu0 0.0
        %392 = vmatpush1.msra.mxu0 0.0
        %393 = vmatprep.subr.mxu0 0.0
        %394 = vmatpush1.msra.mxu0 0.0
        %395 = vmatprep.subr.mxu0 0.0
        %396 = vmatpush1.msra.mxu0 0.0
        %397 = vmatprep.subr.mxu0 0.0
        %398 = vmatpush1.msra.mxu0 0.0
        %399 = vmatprep.subr.mxu0 0.0
        %400 = vmatpush1.msra.mxu0 0.0
        %401 = vmatprep.subr.mxu0 0.0
        %402 = vmatpush1.msra.mxu0 0.0
        %403 = vmatprep.subr.mxu0 0.0
        %404 = vmatpush1.msra.mxu0 0.0
        %405 = vmatprep.subr.mxu0 0.0
        %406 = vmatpush1.msra.mxu0 0.0
        %407 = vmatprep.subr.mxu0 0.0
        %408 = vmatpush1.msra.mxu0 0.0
        %409 = vmatprep.subr.mxu0 0.0
        %410 = vmatpush1.msra.mxu0 0.0
        %411 = vmatprep.subr.mxu0 0.0
        %412 = vmatpush1.msra.mxu0 0.0
        %413 = vmatprep.subr.mxu0 0.0
        %414 = vmatpush1.msra.mxu0 0.0
        %415 = vmatprep.subr.mxu0 0.0
        %416 = vmatpush1.msra.mxu0 0.0
        %417 = vmatprep.subr.mxu0 0.0
        %418 = vmatpush1.msra.mxu0 0.0
        %419 = vmatprep.mubr.f32.mxu0 0.0
        %420 = vmatmul.mubr.f32.gmra.mrb[0].mxu0 %v353
        %v421 = vpop.f32.mrb[0].mxu0
        %v422 = vadd.f32 0.0, %v421
        %v423 = vpop.f32.mrb[0].mxu0
        %424 = vdwg.mxu0
        %426 = vrot.lane.b32.xlu0 %v422, 96
        %v427 = vpop.permute.xlu0 %426
        %vm428 = vcmask 64512
        %v429 = vsel %vm428, %v422, 0
        %v431 = vsel %vm428, %v427, 0
        %433 = vmatprep.subr.mxu0 0.0
        %434 = vmatpush1.xpose.msra.mxu0 %v431
        %435 = vmatprep.subr.mxu0 0.0
        %436 = vmatpush1.xpose.msra.mxu0 0.0
        %437 = vmatprep.subr.mxu0 0.0
        %438 = vmatpush1.xpose.msra.mxu0 0.0
        %439 = vmatprep.subr.mxu0 0.0
        %440 = vmatpush1.xpose.msra.mxu0 0.0
        %441 = vmatprep.subr.mxu0 0.0
        %442 = vmatpush1.xpose.msra.mxu0 0.0
        %443 = vmatprep.subr.mxu0 0.0
        %444 = vmatpush1.xpose.msra.mxu0 0.0
        %445 = vmatprep.subr.mxu0 0.0
        %446 = vmatpush1.xpose.msra.mxu0 0.0
        %447 = vmatprep.subr.mxu0 0.0
        %448 = vmatpush1.xpose.msra.mxu0 0.0
        %449 = vmatprep.subr.mxu0 0.0
        %450 = vmatpush1.xpose.msra.mxu0 0.0
        %451 = vmatprep.subr.mxu0 0.0
        %452 = vmatpush1.xpose.msra.mxu0 0.0
        %453 = vmatprep.subr.mxu0 0.0
        %454 = vmatpush1.xpose.msra.mxu0 0.0
        %455 = vmatprep.subr.mxu0 0.0
        %456 = vmatpush1.xpose.msra.mxu0 0.0
        %457 = vmatprep.subr.mxu0 0.0
        %458 = vmatpush1.xpose.msra.mxu0 0.0
        %459 = vmatprep.subr.mxu0 0.0
        %460 = vmatpush1.xpose.msra.mxu0 0.0
        %461 = vmatprep.subr.mxu0 0.0
        %462 = vmatpush1.xpose.msra.mxu0 0.0
        %463 = vmatprep.subr.mxu0 0.0
        %464 = vmatpush1.xpose.msra.mxu0 0.0
        %465 = vmatprep.subr.mxu0 0.0
        %466 = vmatpush1.xpose.msra.mxu0 0.0
        %467 = vmatprep.subr.mxu0 0.0
        %468 = vmatpush1.xpose.msra.mxu0 0.0
        %469 = vmatprep.subr.mxu0 0.0
        %470 = vmatpush1.xpose.msra.mxu0 0.0
        %471 = vmatprep.subr.mxu0 0.0
        %472 = vmatpush1.xpose.msra.mxu0 0.0
        %473 = vmatprep.subr.mxu0 0.0
        %474 = vmatpush1.xpose.msra.mxu0 0.0
        %475 = vmatprep.subr.mxu0 0.0
        %476 = vmatpush1.xpose.msra.mxu0 0.0
        %477 = vmatprep.subr.mxu0 0.0
        %478 = vmatpush1.xpose.msra.mxu0 0.0
        %479 = vmatprep.subr.mxu0 0.0
        %480 = vmatpush1.xpose.msra.mxu0 0.0
        %481 = vmatprep.subr.mxu0 0.0
        %482 = vmatpush1.xpose.msra.mxu0 0.0
        %483 = vmatprep.subr.mxu0 0.0
        %484 = vmatpush1.xpose.msra.mxu0 0.0
        %485 = vmatprep.subr.mxu0 0.0
        %486 = vmatpush1.xpose.msra.mxu0 0.0
        %487 = vmatprep.subr.mxu0 0.0
        %488 = vmatpush1.xpose.msra.mxu0 0.0
        %489 = vmatprep.subr.mxu0 0.0
        %490 = vmatpush1.xpose.msra.mxu0 0.0
        %491 = vmatprep.subr.mxu0 0.0
        %492 = vmatpush1.xpose.msra.mxu0 0.0
        %493 = vmatprep.subr.mxu0 0.0
        %494 = vmatpush1.xpose.msra.mxu0 0.0
        %495 = vmatprep.subr.mxu0 0.0
        %496 = vmatpush1.xpose.msra.mxu0 0.0
        %497 = vmatprep.mubr.f32.mxu0 0.0
        %498 = vmatmul.mubr.f32.gmra.mrb[0].mxu0 %v429
        %v499 = vpop.f32.mrb[0].mxu0
        %v500 = vadd.f32 0.0, %v499
        %v501 = vpop.f32.mrb[0].mxu0
        %502 = vdwg.mxu0
        %v503 = vmul.f32 %v500, 0.35355338
        %v504 = vadd.f32 %v503, %v315
        %v505 = vsel %vm428, %v504, -inf
        %506 = vmax.xlane.f32.xlu0 %v505
        %v507 = vpop.xlane.xlu0 %506
        %v508 = vsub.f32 %v504, %v507
        %v509 = vmul.f32 %v508, 1.442695
        %v510 = vpow.pop %v509
        %v511 = vsel %vm428, %v510, 0.0
        %512 = vadd.xlane.f32.xlu0 %v511
        %v513 = vpop.xlane.xlu0 %512
        %v514 = vrcp.pop %v513
        %v515 = vmul.f32 %v510, %v514
        %516 = vrot.lane.b32.xlu0 %v422, 64
        %v517 = vpop.permute.xlu0 %516
        %v520 = vsel %vm428, %v515, 0
        %522 = vmatprep.subr.mxu0 0.0
        %523 = vmatpush1.msra.mxu0 %v517
        %524 = vmatprep.subr.mxu0 0.0
        %525 = vmatpush1.msra.mxu0 0.0
        %526 = vmatprep.subr.mxu0 0.0
        %527 = vmatpush1.msra.mxu0 0.0
        %528 = vmatprep.subr.mxu0 0.0
        %529 = vmatpush1.msra.mxu0 0.0
        %530 = vmatprep.subr.mxu0 0.0
        %531 = vmatpush1.msra.mxu0 0.0
        %532 = vmatprep.subr.mxu0 0.0
        %533 = vmatpush1.msra.mxu0 0.0
        %534 = vmatprep.subr.mxu0 0.0
        %535 = vmatpush1.msra.mxu0 0.0
        %536 = vmatprep.subr.mxu0 0.0
        %537 = vmatpush1.msra.mxu0 0.0
        %538 = vmatprep.subr.mxu0 0.0
        %539 = vmatpush1.msra.mxu0 0.0
        %540 = vmatprep.subr.mxu0 0.0
        %541 = vmatpush1.msra.mxu0 0.0
        %542 = vmatprep.subr.mxu0 0.0
        %543 = vmatpush1.msra.mxu0 0.0
        %544 = vmatprep.subr.mxu0 0.0
        %545 = vmatpush1.msra.mxu0 0.0
        %546 = vmatprep.subr.mxu0 0.0
        %547 = vmatpush1.msra.mxu0 0.0
        %548 = vmatprep.subr.mxu0 0.0
        %549 = vmatpush1.msra.mxu0 0.0
        %550 = vmatprep.subr.mxu0 0.0
        %551 = vmatpush1.msra.mxu0 0.0
        %552 = vmatprep.subr.mxu0 0.0
        %553 = vmatpush1.msra.mxu0 0.0
        %554 = vmatprep.subr.mxu0 0.0
        %555 = vmatpush1.msra.mxu0 0.0
        %556 = vmatprep.subr.mxu0 0.0
        %557 = vmatpush1.msra.mxu0 0.0
        %558 = vmatprep.subr.mxu0 0.0
        %559 = vmatpush1.msra.mxu0 0.0
        %560 = vmatprep.subr.mxu0 0.0
        %561 = vmatpush1.msra.mxu0 0.0
        %562 = vmatprep.subr.mxu0 0.0
        %563 = vmatpush1.msra.mxu0 0.0
        %564 = vmatprep.subr.mxu0 0.0
        %565 = vmatpush1.msra.mxu0 0.0
        %566 = vmatprep.subr.mxu0 0.0
        %567 = vmatpush1.msra.mxu0 0.0
        %568 = vmatprep.subr.mxu0 0.0
        %569 = vmatpush1.msra.mxu0 0.0
        %570 = vmatprep.subr.mxu0 0.0
        %571 = vmatpush1.msra.mxu0 0.0
        %572 = vmatprep.subr.mxu0 0.0
        %573 = vmatpush1.msra.mxu0 0.0
        %574 = vmatprep.subr.mxu0 0.0
        %575 = vmatpush1.msra.mxu0 0.0
        %576 = vmatprep.subr.mxu0 0.0
        %577 = vmatpush1.msra.mxu0 0.0
        %578 = vmatprep.subr.mxu0 0.0
        %579 = vmatpush1.msra.mxu0 0.0
        %580 = vmatprep.subr.mxu0 0.0
        %581 = vmatpush1.msra.mxu0 0.0
        %582 = vmatprep.subr.mxu0 0.0
        %583 = vmatpush1.msra.mxu0 0.0
        %584 = vmatprep.subr.mxu0 0.0
        %585 = vmatpush1.msra.mxu0 0.0
        %586 = vmatprep.mubr.f32.mxu0 0.0
        %587 = vmatmul.mubr.f32.gmra.mrb[0].mxu0 %v520
        %v588 = vpop.f32.mrb[0].mxu0
        %v589 = vadd.f32 0.0, %v588
        %v590 = vpop.f32.mrb[0].mxu0
        %591 = vdwg.mxu0
        %592 = vrot.lane.b32.xlu0 %v422, 120
        %v593 = vpop.permute.xlu0 %592
        %594 = vrot.lane.b32.xlu0 %v422, 88
        %v595 = vpop.permute.xlu0 %594
        %v596 = vsel %vm428, %v593, 0
        %v598 = vsel %vm428, %v595, 0
        %600 = vmatprep.subr.mxu0 0.0
        %601 = vmatpush1.xpose.msra.mxu0 %v598
        %602 = vmatprep.subr.mxu0 0.0
        %603 = vmatpush1.xpose.msra.mxu0 0.0
        %604 = vmatprep.subr.mxu0 0.0
        %605 = vmatpush1.xpose.msra.mxu0 0.0
        %606 = vmatprep.subr.mxu0 0.0
        %607 = vmatpush1.xpose.msra.mxu0 0.0
        %608 = vmatprep.subr.mxu0 0.0
        %609 = vmatpush1.xpose.msra.mxu0 0.0
        %610 = vmatprep.subr.mxu0 0.0
        %611 = vmatpush1.xpose.msra.mxu0 0.0
        %612 = vmatprep.subr.mxu0 0.0
        %613 = vmatpush1.xpose.msra.mxu0 0.0
        %614 = vmatprep.subr.mxu0 0.0
        %615 = vmatpush1.xpose.msra.mxu0 0.0
        %616 = vmatprep.subr.mxu0 0.0
        %617 = vmatpush1.xpose.msra.mxu0 0.0
        %618 = vmatprep.subr.mxu0 0.0
        %619 = vmatpush1.xpose.msra.mxu0 0.0
        %620 = vmatprep.subr.mxu0 0.0
        %621 = vmatpush1.xpose.msra.mxu0 0.0
        %622 = vmatprep.subr.mxu0 0.0
        %623 = vmatpush1.xpose.msra.mxu0 0.0
        %624 = vmatprep.subr.mxu0 0.0
        %625 = vmatpush1.xpose.msra.mxu0 0.0
        %626 = vmatprep.subr.mxu0 0.0
        %627 = vmatpush1.xpose.msra.mxu0 0.0
        %628 = vmatprep.subr.mxu0 0.0
        %629 = vmatpush1.xpose.msra.mxu0 0.0
        %630 = vmatprep.subr.mxu0 0.0
        %631 = vmatpush1.xpose.msra.mxu0 0.0
        %632 = vmatprep.subr.mxu0 0.0
        %633 = vmatpush1.xpose.msra.mxu0 0.0
        %634 = vmatprep.subr.mxu0 0.0
        %635 = vmatpush1.xpose.msra.mxu0 0.0
        %636 = vmatprep.subr.mxu0 0.0
        %637 = vmatpush1.xpose.msra.mxu0 0.0
        %638 = vmatprep.subr.mxu0 0.0
        %639 = vmatpush1.xpose.msra.mxu0 0.0
        %640 = vmatprep.subr.mxu0 0.0
        %641 = vmatpush1.xpose.msra.mxu0 0.0
        %642 = vmatprep.subr.mxu0 0.0
        %643 = vmatpush1.xpose.msra.mxu0 0.0
        %644 = vmatprep.subr.mxu0 0.0
        %645 = vmatpush1.xpose.msra.mxu0 0.0
        %646 = vmatprep.subr.mxu0 0.0
        %647 = vmatpush1.xpose.msra.mxu0 0.0
        %648 = vmatprep.subr.mxu0 0.0
        %649 = vmatpush1.xpose.msra.mxu0 0.0
        %650 = vmatprep.subr.mxu0 0.0
        %651 = vmatpush1.xpose.msra.mxu0 0.0
        %652 = vmatprep.subr.mxu0 0.0
        %653 = vmatpush1.xpose.msra.mxu0 0.0
        %654 = vmatprep.subr.mxu0 0.0
        %655 = vmatpush1.xpose.msra.mxu0 0.0
        %656 = vmatprep.subr.mxu0 0.0
        %657 = vmatpush1.xpose.msra.mxu0 0.0
        %658 = vmatprep.subr.mxu0 0.0
        %659 = vmatpush1.xpose.msra.mxu0 0.0
        %660 = vmatprep.subr.mxu0 0.0
        %661 = vmatpush1.xpose.msra.mxu0 0.0
        %662 = vmatprep.subr.mxu0 0.0
        %663 = vmatpush1.xpose.msra.mxu0 0.0
        %664 = vmatprep.mubr.f32.mxu0 0.0
        %665 = vmatmul.mubr.f32.gmra.mrb[0].mxu0 %v596
        %v666 = vpop.f32.mrb[0].mxu0
        %v667 = vadd.f32 0.0, %v666
        %v668 = vpop.f32.mrb[0].mxu0
        %669 = vdwg.mxu0
        %v670 = vmul.f32 %v667, 0.35355338
        %v671 = vadd.f32 %v670, %v315
        %v672 = vsel %vm428, %v671, -inf
        %673 = vmax.xlane.f32.xlu0 %v672
        %v674 = vpop.xlane.xlu0 %673
        %v675 = vsub.f32 %v671, %v674
        %v676 = vmul.f32 %v675, 1.442695
        %v677 = vpow.pop %v676
        %v678 = vsel %vm428, %v677, 0.0
        %679 = vadd.xlane.f32.xlu0 %v678
        %v680 = vpop.xlane.xlu0 %679
        %v681 = vrcp.pop %v680
        %v682 = vmul.f32 %v677, %v681
        %683 = vrot.lane.b32.xlu0 %v422, 56
        %v684 = vpop.permute.xlu0 %683
        %v687 = vsel %vm428, %v682, 0
        %689 = vmatprep.subr.mxu0 0.0
        %690 = vmatpush1.msra.mxu0 %v684
        %691 = vmatprep.subr.mxu0 0.0
        %692 = vmatpush1.msra.mxu0 0.0
        %693 = vmatprep.subr.mxu0 0.0
        %694 = vmatpush1.msra.mxu0 0.0
        %695 = vmatprep.subr.mxu0 0.0
        %696 = vmatpush1.msra.mxu0 0.0
        %697 = vmatprep.subr.mxu0 0.0
        %698 = vmatpush1.msra.mxu0 0.0
        %699 = vmatprep.subr.mxu0 0.0
        %700 = vmatpush1.msra.mxu0 0.0
        %701 = vmatprep.subr.mxu0 0.0
        %702 = vmatpush1.msra.mxu0 0.0
        %703 = vmatprep.subr.mxu0 0.0
        %704 = vmatpush1.msra.mxu0 0.0
        %705 = vmatprep.subr.mxu0 0.0
        %706 = vmatpush1.msra.mxu0 0.0
        %707 = vmatprep.subr.mxu0 0.0
        %708 = vmatpush1.msra.mxu0 0.0
        %709 = vmatprep.subr.mxu0 0.0
        %710 = vmatpush1.msra.mxu0 0.0
        %711 = vmatprep.subr.mxu0 0.0
        %712 = vmatpush1.msra.mxu0 0.0
        %713 = vmatprep.subr.mxu0 0.0
        %714 = vmatpush1.msra.mxu0 0.0
        %715 = vmatprep.subr.mxu0 0.0
        %716 = vmatpush1.msra.mxu0 0.0
        %717 = vmatprep.subr.mxu0 0.0
        %718 = vmatpush1.msra.mxu0 0.0
        %719 = vmatprep.subr.mxu0 0.0
        %720 = vmatpush1.msra.mxu0 0.0
        %721 = vmatprep.subr.mxu0 0.0
        %722 = vmatpush1.msra.mxu0 0.0
        %723 = vmatprep.subr.mxu0 0.0
        %724 = vmatpush1.msra.mxu0 0.0
        %725 = vmatprep.subr.mxu0 0.0
        %726 = vmatpush1.msra.mxu0 0.0
        %727 = vmatprep.subr.mxu0 0.0
        %728 = vmatpush1.msra.mxu0 0.0
        %729 = vmatprep.subr.mxu0 0.0
        %730 = vmatpush1.msra.mxu0 0.0
        %731 = vmatprep.subr.mxu0 0.0
        %732 = vmatpush1.msra.mxu0 0.0
        %733 = vmatprep.subr.mxu0 0.0
        %734 = vmatpush1.msra.mxu0 0.0
        %735 = vmatprep.subr.mxu0 0.0
        %736 = vmatpush1.msra.mxu0 0.0
        %737 = vmatprep.subr.mxu0 0.0
        %738 = vmatpush1.msra.mxu0 0.0
        %739 = vmatprep.subr.mxu0 0.0
        %740 = vmatpush1.msra.mxu0 0.0
        %741 = vmatprep.subr.mxu0 0.0
        %742 = vmatpush1.msra.mxu0 0.0
        %743 = vmatprep.subr.mxu0 0.0
        %744 = vmatpush1.msra.mxu0 0.0
        %745 = vmatprep.subr.mxu0 0.0
        %746 = vmatpush1.msra.mxu0 0.0
        %747 = vmatprep.subr.mxu0 0.0
        %748 = vmatpush1.msra.mxu0 0.0
        %749 = vmatprep.subr.mxu0 0.0
        %750 = vmatpush1.msra.mxu0 0.0
        %751 = vmatprep.subr.mxu0 0.0
        %752 = vmatpush1.msra.mxu0 0.0
        %753 = vmatprep.mubr.f32.mxu0 0.0
        %754 = vmatmul.mubr.f32.gmra.mrb[0].mxu0 %v687
        %v755 = vpop.f32.mrb[0].mxu0
        %v756 = vadd.f32 0.0, %v755
        %v757 = vpop.f32.mrb[0].mxu0
        %758 = vdwg.mxu0
        %759 = vrot.lane.b32.xlu0 %v422, 112
        %v760 = vpop.permute.xlu0 %759
        %761 = vrot.lane.b32.xlu0 %v422, 80
        %v762 = vpop.permute.xlu0 %761
        %v763 = vsel %vm428, %v760, 0
        %v765 = vsel %vm428, %v762, 0
        %767 = vmatprep.subr.mxu0 0.0
        %768 = vmatpush1.xpose.msra.mxu0 %v765
        %769 = vmatprep.subr.mxu0 0.0
        %770 = vmatpush1.xpose.msra.mxu0 0.0
        %771 = vmatprep.subr.mxu0 0.0
        %772 = vmatpush1.xpose.msra.mxu0 0.0
        %773 = vmatprep.subr.mxu0 0.0
        %774 = vmatpush1.xpose.msra.mxu0 0.0
        %775 = vmatprep.subr.mxu0 0.0
        %776 = vmatpush1.xpose.msra.mxu0 0.0
        %777 = vmatprep.subr.mxu0 0.0
        %778 = vmatpush1.xpose.msra.mxu0 0.0
        %779 = vmatprep.subr.mxu0 0.0
        %780 = vmatpush1.xpose.msra.mxu0 0.0
        %781 = vmatprep.subr.mxu0 0.0
        %782 = vmatpush1.xpose.msra.mxu0 0.0
        %783 = vmatprep.subr.mxu0 0.0
        %784 = vmatpush1.xpose.msra.mxu0 0.0
        %785 = vmatprep.subr.mxu0 0.0
        %786 = vmatpush1.xpose.msra.mxu0 0.0
        %787 = vmatprep.subr.mxu0 0.0
        %788 = vmatpush1.xpose.msra.mxu0 0.0
        %789 = vmatprep.subr.mxu0 0.0
        %790 = vmatpush1.xpose.msra.mxu0 0.0
        %791 = vmatprep.subr.mxu0 0.0
        %792 = vmatpush1.xpose.msra.mxu0 0.0
        %793 = vmatprep.subr.mxu0 0.0
        %794 = vmatpush1.xpose.msra.mxu0 0.0
        %795 = vmatprep.subr.mxu0 0.0
        %796 = vmatpush1.xpose.msra.mxu0 0.0
        %797 = vmatprep.subr.mxu0 0.0
        %798 = vmatpush1.xpose.msra.mxu0 0.0
        %799 = vmatprep.subr.mxu0 0.0
        %800 = vmatpush1.xpose.msra.mxu0 0.0
        %801 = vmatprep.subr.mxu0 0.0
        %802 = vmatpush1.xpose.msra.mxu0 0.0
        %803 = vmatprep.subr.mxu0 0.0
        %804 = vmatpush1.xpose.msra.mxu0 0.0
        %805 = vmatprep.subr.mxu0 0.0
        %806 = vmatpush1.xpose.msra.mxu0 0.0
        %807 = vmatprep.subr.mxu0 0.0
        %808 = vmatpush1.xpose.msra.mxu0 0.0
        %809 = vmatprep.subr.mxu0 0.0
        %810 = vmatpush1.xpose.msra.mxu0 0.0
        %811 = vmatprep.subr.mxu0 0.0
        %812 = vmatpush1.xpose.msra.mxu0 0.0
        %813 = vmatprep.subr.mxu0 0.0
        %814 = vmatpush1.xpose.msra.mxu0 0.0
        %815 = vmatprep.subr.mxu0 0.0
        %816 = vmatpush1.xpose.msra.mxu0 0.0
        %817 = vmatprep.subr.mxu0 0.0
        %818 = vmatpush1.xpose.msra.mxu0 0.0
        %819 = vmatprep.subr.mxu0 0.0
        %820 = vmatpush1.xpose.msra.mxu0 0.0
        %821 = vmatprep.subr.mxu0 0.0
        %822 = vmatpush1.xpose.msra.mxu0 0.0
        %823 = vmatprep.subr.mxu0 0.0
        %824 = vmatpush1.xpose.msra.mxu0 0.0
        %825 = vmatprep.subr.mxu0 0.0
        %826 = vmatpush1.xpose.msra.mxu0 0.0
        %827 = vmatprep.subr.mxu0 0.0
        %828 = vmatpush1.xpose.msra.mxu0 0.0
        %829 = vmatprep.subr.mxu0 0.0
        %830 = vmatpush1.xpose.msra.mxu0 0.0
        %831 = vmatprep.mubr.f32.mxu0 0.0
        %832 = vmatmul.mubr.f32.gmra.mrb[0].mxu0 %v763
        %v833 = vpop.f32.mrb[0].mxu0
        %v834 = vadd.f32 0.0, %v833
        %v835 = vpop.f32.mrb[0].mxu0
        %836 = vdwg.mxu0
        %v837 = vmul.f32 %v834, 0.35355338
        %v838 = vadd.f32 %v837, %v315
        %v839 = vsel %vm428, %v838, -inf
        %840 = vmax.xlane.f32.xlu0 %v839
        %v841 = vpop.xlane.xlu0 %840
        %v842 = vsub.f32 %v838, %v841
        %v843 = vmul.f32 %v842, 1.442695
        %v844 = vpow.pop %v843
        %v845 = vsel %vm428, %v844, 0.0
        %846 = vadd.xlane.f32.xlu0 %v845
        %v847 = vpop.xlane.xlu0 %846
        %v848 = vrcp.pop %v847
        %v849 = vmul.f32 %v844, %v848
        %850 = vrot.lane.b32.xlu0 %v422, 48
        %v851 = vpop.permute.xlu0 %850
        %v854 = vsel %vm428, %v849, 0
        %856 = vmatprep.subr.mxu0 0.0
        %857 = vmatpush1.msra.mxu0 %v851
        %858 = vmatprep.subr.mxu0 0.0
        %859 = vmatpush1.msra.mxu0 0.0
        %860 = vmatprep.subr.mxu0 0.0
        %861 = vmatpush1.msra.mxu0 0.0
        %862 = vmatprep.subr.mxu0 0.0
        %863 = vmatpush1.msra.mxu0 0.0
        %864 = vmatprep.subr.mxu0 0.0
        %865 = vmatpush1.msra.mxu0 0.0
        %866 = vmatprep.subr.mxu0 0.0
        %867 = vmatpush1.msra.mxu0 0.0
        %868 = vmatprep.subr.mxu0 0.0
        %869 = vmatpush1.msra.mxu0 0.0
        %870 = vmatprep.subr.mxu0 0.0
        %871 = vmatpush1.msra.mxu0 0.0
        %872 = vmatprep.subr.mxu0 0.0
        %873 = vmatpush1.msra.mxu0 0.0
        %874 = vmatprep.subr.mxu0 0.0
        %875 = vmatpush1.msra.mxu0 0.0
        %876 = vmatprep.subr.mxu0 0.0
        %877 = vmatpush1.msra.mxu0 0.0
        %878 = vmatprep.subr.mxu0 0.0
        %879 = vmatpush1.msra.mxu0 0.0
        %880 = vmatprep.subr.mxu0 0.0
        %881 = vmatpush1.msra.mxu0 0.0
        %882 = vmatprep.subr.mxu0 0.0
        %883 = vmatpush1.msra.mxu0 0.0
        %884 = vmatprep.subr.mxu0 0.0
        %885 = vmatpush1.msra.mxu0 0.0
        %886 = vmatprep.subr.mxu0 0.0
        %887 = vmatpush1.msra.mxu0 0.0
        %888 = vmatprep.subr.mxu0 0.0
        %889 = vmatpush1.msra.mxu0 0.0
        %890 = vmatprep.subr.mxu0 0.0
        %891 = vmatpush1.msra.mxu0 0.0
        %892 = vmatprep.subr.mxu0 0.0
        %893 = vmatpush1.msra.mxu0 0.0
        %894 = vmatprep.subr.mxu0 0.0
        %895 = vmatpush1.msra.mxu0 0.0
        %896 = vmatprep.subr.mxu0 0.0
        %897 = vmatpush1.msra.mxu0 0.0
        %898 = vmatprep.subr.mxu0 0.0
        %899 = vmatpush1.msra.mxu0 0.0
        %900 = vmatprep.subr.mxu0 0.0
        %901 = vmatpush1.msra.mxu0 0.0
        %902 = vmatprep.subr.mxu0 0.0
        %903 = vmatpush1.msra.mxu0 0.0
        %904 = vmatprep.subr.mxu0 0.0
        %905 = vmatpush1.msra.mxu0 0.0
        %906 = vmatprep.subr.mxu0 0.0
        %907 = vmatpush1.msra.mxu0 0.0
        %908 = vmatprep.subr.mxu0 0.0
        %909 = vmatpush1.msra.mxu0 0.0
        %910 = vmatprep.subr.mxu0 0.0
        %911 = vmatpush1.msra.mxu0 0.0
        %912 = vmatprep.subr.mxu0 0.0
        %913 = vmatpush1.msra.mxu0 0.0
        %914 = vmatprep.subr.mxu0 0.0
        %915 = vmatpush1.msra.mxu0 0.0
        %916 = vmatprep.subr.mxu0 0.0
        %917 = vmatpush1.msra.mxu0 0.0
        %918 = vmatprep.subr.mxu0 0.0
        %919 = vmatpush1.msra.mxu0 0.0
        %920 = vmatprep.mubr.f32.mxu0 0.0
        %921 = vmatmul.mubr.f32.gmra.mrb[0].mxu0 %v854
        %v922 = vpop.f32.mrb[0].mxu0
        %v923 = vadd.f32 0.0, %v922
        %v924 = vpop.f32.mrb[0].mxu0
        %925 = vdwg.mxu0
        %926 = vrot.lane.b32.xlu0 %v422, 104
        %v927 = vpop.permute.xlu0 %926
        %928 = vrot.lane.b32.xlu0 %v422, 72
        %v929 = vpop.permute.xlu0 %928
        %v930 = vsel %vm428, %v927, 0
        %v932 = vsel %vm428, %v929, 0
        %934 = vmatprep.subr.mxu0 0.0
        %935 = vmatpush1.xpose.msra.mxu0 %v932
        %936 = vmatprep.subr.mxu0 0.0
        %937 = vmatpush1.xpose.msra.mxu0 0.0
        %938 = vmatprep.subr.mxu0 0.0
        %939 = vmatpush1.xpose.msra.mxu0 0.0
        %940 = vmatprep.subr.mxu0 0.0
        %941 = vmatpush1.xpose.msra.mxu0 0.0
        %942 = vmatprep.subr.mxu0 0.0
        %943 = vmatpush1.xpose.msra.mxu0 0.0
        %944 = vmatprep.subr.mxu0 0.0
        %945 = vmatpush1.xpose.msra.mxu0 0.0
        %946 = vmatprep.subr.mxu0 0.0
        %947 = vmatpush1.xpose.msra.mxu0 0.0
        %948 = vmatprep.subr.mxu0 0.0
        %949 = vmatpush1.xpose.msra.mxu0 0.0
        %950 = vmatprep.subr.mxu0 0.0
        %951 = vmatpush1.xpose.msra.mxu0 0.0
        %952 = vmatprep.subr.mxu0 0.0
        %953 = vmatpush1.xpose.msra.mxu0 0.0
        %954 = vmatprep.subr.mxu0 0.0
        %955 = vmatpush1.xpose.msra.mxu0 0.0
        %956 = vmatprep.subr.mxu0 0.0
        %957 = vmatpush1.xpose.msra.mxu0 0.0
        %958 = vmatprep.subr.mxu0 0.0
        %959 = vmatpush1.xpose.msra.mxu0 0.0
        %960 = vmatprep.subr.mxu0 0.0
        %961 = vmatpush1.xpose.msra.mxu0 0.0
        %962 = vmatprep.subr.mxu0 0.0
        %963 = vmatpush1.xpose.msra.mxu0 0.0
        %964 = vmatprep.subr.mxu0 0.0
        %965 = vmatpush1.xpose.msra.mxu0 0.0
        %966 = vmatprep.subr.mxu0 0.0
        %967 = vmatpush1.xpose.msra.mxu0 0.0
        %968 = vmatprep.subr.mxu0 0.0
        %969 = vmatpush1.xpose.msra.mxu0 0.0
        %970 = vmatprep.subr.mxu0 0.0
        %971 = vmatpush1.xpose.msra.mxu0 0.0
        %972 = vmatprep.subr.mxu0 0.0
        %973 = vmatpush1.xpose.msra.mxu0 0.0
        %974 = vmatprep.subr.mxu0 0.0
        %975 = vmatpush1.xpose.msra.mxu0 0.0
        %976 = vmatprep.subr.mxu0 0.0
        %977 = vmatpush1.xpose.msra.mxu0 0.0
        %978 = vmatprep.subr.mxu0 0.0
        %979 = vmatpush1.xpose.msra.mxu0 0.0
        %980 = vmatprep.subr.mxu0 0.0
        %981 = vmatpush1.xpose.msra.mxu0 0.0
        %982 = vmatprep.subr.mxu0 0.0
        %983 = vmatpush1.xpose.msra.mxu0 0.0
        %984 = vmatprep.subr.mxu0 0.0
        %985 = vmatpush1.xpose.msra.mxu0 0.0
        %986 = vmatprep.subr.mxu0 0.0
        %987 = vmatpush1.xpose.msra.mxu0 0.0
        %988 = vmatprep.subr.mxu0 0.0
        %989 = vmatpush1.xpose.msra.mxu0 0.0
        %990 = vmatprep.subr.mxu0 0.0
        %991 = vmatpush1.xpose.msra.mxu0 0.0
        %992 = vmatprep.subr.mxu0 0.0
        %993 = vmatpush1.xpose.msra.mxu0 0.0
        %994 = vmatprep.subr.mxu0 0.0
        %995 = vmatpush1.xpose.msra.mxu0 0.0
        %996 = vmatprep.subr.mxu0 0.0
        %997 = vmatpush1.xpose.msra.mxu0 0.0
        %998 = vmatprep.mubr.f32.mxu0 0.0
        %999 = vmatmul.mubr.f32.gmra.mrb[0].mxu0 %v930
        %v1000 = vpop.f32.mrb[0].mxu0
        %v1001 = vadd.f32 0.0, %v1000
        %v1002 = vpop.f32.mrb[0].mxu0
        %1003 = vdwg.mxu0
        %v1004 = vmul.f32 %v1001, 0.35355338
        %v1005 = vadd.f32 %v1004, %v315
        %v1006 = vsel %vm428, %v1005, -inf
        %1007 = vmax.xlane.f32.xlu0 %v1006
        %v1008 = vpop.xlane.xlu0 %1007
        %v1009 = vsub.f32 %v1005, %v1008
        %v1010 = vmul.f32 %v1009, 1.442695
        %v1011 = vpow.pop %v1010
        %v1012 = vsel %vm428, %v1011, 0.0
        %1013 = vadd.xlane.f32.xlu0 %v1012
        %v1014 = vpop.xlane.xlu0 %1013
        %v1015 = vrcp.pop %v1014
        %v1016 = vmul.f32 %v1011, %v1015
        %1017 = vrot.lane.b32.xlu0 %v422, 40
        %v1018 = vpop.permute.xlu0 %1017
        %v1021 = vsel %vm428, %v1016, 0
        %1023 = vmatprep.subr.mxu0 0.0
        %1024 = vmatpush1.msra.mxu0 %v1018
        %1025 = vmatprep.subr.mxu0 0.0
        %1026 = vmatpush1.msra.mxu0 0.0
        %1027 = vmatprep.subr.mxu0 0.0
        %1028 = vmatpush1.msra.mxu0 0.0
        %1029 = vmatprep.subr.mxu0 0.0
        %1030 = vmatpush1.msra.mxu0 0.0
        %1031 = vmatprep.subr.mxu0 0.0
        %1032 = vmatpush1.msra.mxu0 0.0
        %1033 = vmatprep.subr.mxu0 0.0
        %1034 = vmatpush1.msra.mxu0 0.0
        %1035 = vmatprep.subr.mxu0 0.0
        %1036 = vmatpush1.msra.mxu0 0.0
        %1037 = vmatprep.subr.mxu0 0.0
        %1038 = vmatpush1.msra.mxu0 0.0
        %1039 = vmatprep.subr.mxu0 0.0
        %1040 = vmatpush1.msra.mxu0 0.0
        %1041 = vmatprep.subr.mxu0 0.0
        %1042 = vmatpush1.msra.mxu0 0.0
        %1043 = vmatprep.subr.mxu0 0.0
        %1044 = vmatpush1.msra.mxu0 0.0
        %1045 = vmatprep.subr.mxu0 0.0
        %1046 = vmatpush1.msra.mxu0 0.0
        %1047 = vmatprep.subr.mxu0 0.0
        %1048 = vmatpush1.msra.mxu0 0.0
        %1049 = vmatprep.subr.mxu0 0.0
        %1050 = vmatpush1.msra.mxu0 0.0
        %1051 = vmatprep.subr.mxu0 0.0
        %1052 = vmatpush1.msra.mxu0 0.0
        %1053 = vmatprep.subr.mxu0 0.0
        %1054 = vmatpush1.msra.mxu0 0.0
        %1055 = vmatprep.subr.mxu0 0.0
        %1056 = vmatpush1.msra.mxu0 0.0
        %1057 = vmatprep.subr.mxu0 0.0
        %1058 = vmatpush1.msra.mxu0 0.0
        %1059 = vmatprep.subr.mxu0 0.0
        %1060 = vmatpush1.msra.mxu0 0.0
        %1061 = vmatprep.subr.mxu0 0.0
        %1062 = vmatpush1.msra.mxu0 0.0
        %1063 = vmatprep.subr.mxu0 0.0
        %1064 = vmatpush1.msra.mxu0 0.0
        %1065 = vmatprep.subr.mxu0 0.0
        %1066 = vmatpush1.msra.mxu0 0.0
        %1067 = vmatprep.subr.mxu0 0.0
        %1068 = vmatpush1.msra.mxu0 0.0
        %1069 = vmatprep.subr.mxu0 0.0
        %1070 = vmatpush1.msra.mxu0 0.0
        %1071 = vmatprep.subr.mxu0 0.0
        %1072 = vmatpush1.msra.mxu0 0.0
        %1073 = vmatprep.subr.mxu0 0.0
        %1074 = vmatpush1.msra.mxu0 0.0
        %1075 = vmatprep.subr.mxu0 0.0
        %1076 = vmatpush1.msra.mxu0 0.0
        %1077 = vmatprep.subr.mxu0 0.0
        %1078 = vmatpush1.msra.mxu0 0.0
        %1079 = vmatprep.subr.mxu0 0.0
        %1080 = vmatpush1.msra.mxu0 0.0
        %1081 = vmatprep.subr.mxu0 0.0
        %1082 = vmatpush1.msra.mxu0 0.0
        %1083 = vmatprep.subr.mxu0 0.0
        %1084 = vmatpush1.msra.mxu0 0.0
        %1085 = vmatprep.subr.mxu0 0.0
        %1086 = vmatpush1.msra.mxu0 0.0
        %1087 = vmatprep.mubr.f32.mxu0 0.0
        %1088 = vmatmul.mubr.f32.gmra.mrb[0].mxu0 %v1021
        %v1089 = vpop.f32.mrb[0].mxu0
        %v1090 = vadd.f32 0.0, %v1089
        %v1091 = vpop.f32.mrb[0].mxu0
        %1092 = vdwg.mxu0
        %1094 = vrot.lane.b32.xlu0 %v756, 8
        %v1095 = vpop.permute.xlu0 %1094
        %1098 = vrot.lane.b32.xlu0 %v923, 16
        %v1099 = vpop.permute.xlu0 %1098
        %1102 = vrot.lane.b32.xlu0 %v1090, 24
        %v1103 = vpop.permute.xlu0 %1102
        %v1105 = vsel %vm428, %v589, %v1095
        %vm1106 = vcmask 130048
        %v1107 = vsel %vm1106, %v1105, %v1099
        %vm1108 = vcmask 195584
        %v1109 = vsel %vm1108, %v1107, %v1103
        %1114 = vrot.lane.b32.xlu0 %v348, 32
        %v1115 = vpop.permute.xlu0 %1114
        %1116 = vrot.lane.b32.xlu0 %v349, 32
        %v1117 = vpop.permute.xlu0 %1116
        %1118 = vrot.lane.b32.xlu0 %v350, 32
        %v1119 = vpop.permute.xlu0 %1118
        %1120 = vrot.lane.b32.xlu0 %v351, 32
        %v1121 = vpop.permute.xlu0 %1120
        %v1127 = vsel %vm323, %v1109, 0
        %1129 = vmatprep.subr.mxu0 0.0
        %1130 = vmatpush1.msra.mxu0 %v1115
        %1131 = vmatprep.subr.mxu0 0.0
        %1132 = vmatpush1.msra.mxu0 %v1117
        %1133 = vmatprep.subr.mxu0 0.0
        %1134 = vmatpush1.msra.mxu0 %v1119
        %1135 = vmatprep.subr.mxu0 0.0
        %1136 = vmatpush1.msra.mxu0 %v1121
        %1137 = vmatprep.subr.mxu0 0.0
        %1138 = vmatpush1.msra.mxu0 0.0
        %1139 = vmatprep.subr.mxu0 0.0
        %1140 = vmatpush1.msra.mxu0 0.0
        %1141 = vmatprep.subr.mxu0 0.0
        %1142 = vmatpush1.msra.mxu0 0.0
        %1143 = vmatprep.subr.mxu0 0.0
        %1144 = vmatpush1.msra.mxu0 0.0
        %1145 = vmatprep.subr.mxu0 0.0
        %1146 = vmatpush1.msra.mxu0 0.0
        %1147 = vmatprep.subr.mxu0 0.0
        %1148 = vmatpush1.msra.mxu0 0.0
        %1149 = vmatprep.subr.mxu0 0.0
        %1150 = vmatpush1.msra.mxu0 0.0
        %1151 = vmatprep.subr.mxu0 0.0
        %1152 = vmatpush1.msra.mxu0 0.0
        %1153 = vmatprep.subr.mxu0 0.0
        %1154 = vmatpush1.msra.mxu0 0.0
        %1155 = vmatprep.subr.mxu0 0.0
        %1156 = vmatpush1.msra.mxu0 0.0
        %1157 = vmatprep.subr.mxu0 0.0
        %1158 = vmatpush1.msra.mxu0 0.0
        %1159 = vmatprep.subr.mxu0 0.0
        %1160 = vmatpush1.msra.mxu0 0.0
        %1161 = vmatprep.subr.mxu0 0.0
        %1162 = vmatpush1.msra.mxu0 0.0
        %1163 = vmatprep.subr.mxu0 0.0
        %1164 = vmatpush1.msra.mxu0 0.0
        %1165 = vmatprep.subr.mxu0 0.0
        %1166 = vmatpush1.msra.mxu0 0.0
        %1167 = vmatprep.subr.mxu0 0.0
        %1168 = vmatpush1.msra.mxu0 0.0
        %1169 = vmatprep.subr.mxu0 0.0
        %1170 = vmatpush1.msra.mxu0 0.0
        %1171 = vmatprep.subr.mxu0 0.0
        %1172 = vmatpush1.msra.mxu0 0.0
        %1173 = vmatprep.subr.mxu0 0.0
        %1174 = vmatpush1.msra.mxu0 0.0
        %1175 = vmatprep.subr.mxu0 0.0
        %1176 = vmatpush1.msra.mxu0 0.0
        %1177 = vmatprep.subr.mxu0 0.0
        %1178 = vmatpush1.msra.mxu0 0.0
        %1179 = vmatprep.subr.mxu0 0.0
        %1180 = vmatpush1.msra.mxu0 0.0
        %1181 = vmatprep.subr.mxu0 0.0
        %1182 = vmatpush1.msra.mxu0 0.0
        %1183 = vmatprep.subr.mxu0 0.0
        %1184 = vmatpush1.msra.mxu0 0.0
        %1185 = vmatprep.subr.mxu0 0.0
        %1186 = vmatpush1.msra.mxu0 0.0
        %1187 = vmatprep.subr.mxu0 0.0
        %1188 = vmatpush1.msra.mxu0 0.0
        %1189 = vmatprep.subr.mxu0 0.0
        %1190 = vmatpush1.msra.mxu0 0.0
        %1191 = vmatprep.subr.mxu0 0.0
        %1192 = vmatpush1.msra.mxu0 0.0
        %1193 = vmatprep.mubr.f32.mxu0 0.0
        %1194 = vmatmul.mubr.f32.gmra.mrb[0].mxu0 %v1127
        %v1195 = vpop.f32.mrb[0].mxu0
        %v1196 = vadd.f32 0.0, %v1195
        %v1197 = vpop.f32.mrb[0].mxu0
        %1198 = vdwg.mxu0
        %v1199 = vadd.f32 %v309, %v1196
        %v1200 = vlaneseq
        %v1201 = vshrl.u32 %v1200, 7
        %v1202 = vsub.s32 0, %v1201
        %v1203 = vrot.slane %v318, %v1202
        %v1204 = vadd.f32 %v1199, %v1203
        %v1205 = vsel %vm323, %v1204, 0.0
        %1206 = vadd.xlane.f32.xlu0 %v1205
        %v1207 = vpop.xlane.xlu0 %1206
        %v1208 = vmul.f32 %v1207, %v327
        %v1209 = vsub.f32 %v1204, %v1208
        %v1210 = vmul.f32 %v1209, %v1209
        %v1211 = vsel %vm323, %v1210, 0.0
        %1212 = vadd.xlane.f32.xlu0 %v1211
        %v1213 = vpop.xlane.xlu0 %1212
        %v1214 = vmul.f32 %v1213, %v327
        %v1215 = vadd.f32 %v1214, 1e-05
        %v1216 = vrsqrt.pop %v1215
        %v1217 = vmul.f32 %v1209, %v1216
        %v1218 = vlaneseq
        %v1219 = vshrl.u32 %v1218, 7
        %v1220 = vsub.s32 0, %v1219
        %v1221 = vrot.slane %v319, %v1220
        %v1222 = vmul.f32 %v1217, %v1221
        %v1223 = vlaneseq
        %v1224 = vshrl.u32 %v1223, 7
        %v1225 = vsub.s32 0, %v1224
        %v1226 = vrot.slane %v320, %v1225
        %v1227 = vadd.f32 %v1222, %v1226
        %v1228 = vld [vmem:[%s2] sm:$0xff]
        %v1229 = vld [vmem:[%s2 + $0x8] sm:$0xff]
        %v1230 = vld [vmem:[%s2 + $0x10] sm:$0xff]
        %v1231 = vld [vmem:[%s2 + $0x18] sm:$0xff]
        %v1232 = vlaneseq
        %v1233 = vshrl.u32 %v1232, 7
        %v1234 = vsub.s32 0, %v1233
        %v1235 = vrot.slane %v321, %v1234
        %v1237 = vsel %vm323, %v1227, 0
        %1239 = vmatprep.subr.mxu0 0.0
        %1240 = vmatpush1.msra.mxu0 %v1228
        %1241 = vmatprep.subr.mxu0 0.0
        %1242 = vmatpush1.msra.mxu0 %v1229
        %1243 = vmatprep.subr.mxu0 0.0
        %1244 = vmatpush1.msra.mxu0 %v1230
        %1245 = vmatprep.subr.mxu0 0.0
        %1246 = vmatpush1.msra.mxu0 %v1231
        %1247 = vmatprep.subr.mxu0 0.0
        %1248 = vmatpush1.msra.mxu0 0.0
        %1249 = vmatprep.subr.mxu0 0.0
        %1250 = vmatpush1.msra.mxu0 0.0
        %1251 = vmatprep.subr.mxu0 0.0
        %1252 = vmatpush1.msra.mxu0 0.0
        %1253 = vmatprep.subr.mxu0 0.0
        %1254 = vmatpush1.msra.mxu0 0.0
        %1255 = vmatprep.subr.mxu0 0.0
        %1256 = vmatpush1.msra.mxu0 0.0
        %1257 = vmatprep.subr.mxu0 0.0
        %1258 = vmatpush1.msra.mxu0 0.0
        %1259 = vmatprep.subr.mxu0 0.0
        %1260 = vmatpush1.msra.mxu0 0.0
        %1261 = vmatprep.subr.mxu0 0.0
        %1262 = vmatpush1.msra.mxu0 0.0
        %1263 = vmatprep.subr.mxu0 0.0
        %1264 = vmatpush1.msra.mxu0 0.0
        %1265 = vmatprep.subr.mxu0 0.0
        %1266 = vmatpush1.msra.mxu0 0.0
        %1267 = vmatprep.subr.mxu0 0.0
        %1268 = vmatpush1.msra.mxu0 0.0
        %1269 = vmatprep.subr.mxu0 0.0
        %1270 = vmatpush1.msra.mxu0 0.0
        %1271 = vmatprep.subr.mxu0 0.0
        %1272 = vmatpush1.msra.mxu0 0.0
        %1273 = vmatprep.subr.mxu0 0.0
        %1274 = vmatpush1.msra.mxu0 0.0
        %1275 = vmatprep.subr.mxu0 0.0
        %1276 = vmatpush1.msra.mxu0 0.0
        %1277 = vmatprep.subr.mxu0 0.0
        %1278 = vmatpush1.msra.mxu0 0.0
        %1279 = vmatprep.subr.mxu0 0.0
        %1280 = vmatpush1.msra.mxu0 0.0
        %1281 = vmatprep.subr.mxu0 0.0
        %1282 = vmatpush1.msra.mxu0 0.0
        %1283 = vmatprep.subr.mxu0 0.0
        %1284 = vmatpush1.msra.mxu0 0.0
        %1285 = vmatprep.subr.mxu0 0.0
        %1286 = vmatpush1.msra.mxu0 0.0
        %1287 = vmatprep.subr.mxu0 0.0
        %1288 = vmatpush1.msra.mxu0 0.0
        %1289 = vmatprep.subr.mxu0 0.0
        %1290 = vmatpush1.msra.mxu0 0.0
        %1291 = vmatprep.subr.mxu0 0.0
        %1292 = vmatpush1.msra.mxu0 0.0
        %1293 = vmatprep.subr.mxu0 0.0
        %1294 = vmatpush1.msra.mxu0 0.0
        %1295 = vmatprep.subr.mxu0 0.0
        %1296 = vmatpush1.msra.mxu0 0.0
        %1297 = vmatprep.subr.mxu0 0.0
        %1298 = vmatpush1.msra.mxu0 0.0
        %1299 = vmatprep.subr.mxu0 0.0
        %1300 = vmatpush1.msra.mxu0 0.0
        %1301 = vmatprep.subr.mxu0 0.0
        %1302 = vmatpush1.msra.mxu0 0.0
        %1303 = vmatprep.mubr.f32.mxu0 0.0
        %1304 = vmatmul.mubr.f32.gmra.mrb[0].mxu0 %v1237
        %v1305 = vpop.f32.mrb[0].mxu0
        %v1306 = vadd.f32 %v1235, %v1305
        %v1307 = vpop.f32.mrb[0].mxu0
        %1308 = vdwg.mxu0
        %v1309 = vmax.f32 %v1306, 0.0
        %v1310 = vld [vmem:[%s3] sm:$0xff]
        %v1311 = vld [vmem:[%s3 + $0x8] sm:$0xff]
        %v1312 = vld [vmem:[%s3 + $0x10] sm:$0xff]
        %v1313 = vld [vmem:[%s3 + $0x18] sm:$0xff]
        %v1314 = vld [vmem:[%s3 + $0x20] sm:$0xff]
        %v1315 = vld [vmem:[%s3 + $0x28] sm:$0xff]
        %v1316 = vld [vmem:[%s3 + $0x30] sm:$0xff]
        %v1317 = vld [vmem:[%s3 + $0x38] sm:$0xff]
        %v1318 = vld [vmem:[%s3 + $0x40] sm:$0xff]
        %v1319 = vld [vmem:[%s3 + $0x48] sm:$0xff]
        %v1320 = vld [vmem:[%s3 + $0x50] sm:$0xff]
        %v1321 = vld [vmem:[%s3 + $0x58] sm:$0xff]
        %v1322 = vld [vmem:[%s3 + $0x60] sm:$0xff]
        %v1323 = vld [vmem:[%s3 + $0x68] sm:$0xff]
        %v1324 = vld [vmem:[%s3 + $0x70] sm:$0xff]
        %v1325 = vld [vmem:[%s3 + $0x78] sm:$0xff]
        %1326 = vmatprep.subr.mxu0 0.0
        %1327 = vmatpush1.msra.mxu0 %v1310
        %1328 = vmatprep.subr.mxu0 0.0
        %1329 = vmatpush1.msra.mxu0 %v1311
        %1330 = vmatprep.subr.mxu0 0.0
        %1331 = vmatpush1.msra.mxu0 %v1312
        %1332 = vmatprep.subr.mxu0 0.0
        %1333 = vmatpush1.msra.mxu0 %v1313
        %1334 = vmatprep.subr.mxu0 0.0
        %1335 = vmatpush1.msra.mxu0 %v1314
        %1336 = vmatprep.subr.mxu0 0.0
        %1337 = vmatpush1.msra.mxu0 %v1315
        %1338 = vmatprep.subr.mxu0 0.0
        %1339 = vmatpush1.msra.mxu0 %v1316
        %1340 = vmatprep.subr.mxu0 0.0
        %1341 = vmatpush1.msra.mxu0 %v1317
        %1342 = vmatprep.subr.mxu0 0.0
        %1343 = vmatpush1.msra.mxu0 %v1318
        %1344 = vmatprep.subr.mxu0 0.0
        %1345 = vmatpush1.msra.mxu0 %v1319
        %1346 = vmatprep.subr.mxu0 0.0
        %1347 = vmatpush1.msra.mxu0 %v1320
        %1348 = vmatprep.subr.mxu0 0.0
        %1349 = vmatpush1.msra.mxu0 %v1321
        %1350 = vmatprep.subr.mxu0 0.0
        %1351 = vmatpush1.msra.mxu0 %v1322
        %1352 = vmatprep.subr.mxu0 0.0
        %1353 = vmatpush1.msra.mxu0 %v1323
        %1354 = vmatprep.subr.mxu0 0.0
        %1355 = vmatpush1.msra.mxu0 %v1324
        %1356 = vmatprep.subr.mxu0 0.0
        %1357 = vmatpush1.msra.mxu0 %v1325
        %1358 = vmatprep.subr.mxu0 0.0
        %1359 = vmatpush1.msra.mxu0 0.0
        %1360 = vmatprep.subr.mxu0 0.0
        %1361 = vmatpush1.msra.mxu0 0.0
        %1362 = vmatprep.subr.mxu0 0.0
        %1363 = vmatpush1.msra.mxu0 0.0
        %1364 = vmatprep.subr.mxu0 0.0
        %1365 = vmatpush1.msra.mxu0 0.0
        %1366 = vmatprep.subr.mxu0 0.0
        %1367 = vmatpush1.msra.mxu0 0.0
        %1368 = vmatprep.subr.mxu0 0.0
        %1369 = vmatpush1.msra.mxu0 0.0
        %1370 = vmatprep.subr.mxu0 0.0
        %1371 = vmatpush1.msra.mxu0 0.0
        %1372 = vmatprep.subr.mxu0 0.0
        %1373 = vmatpush1.msra.mxu0 0.0
        %1374 = vmatprep.subr.mxu0 0.0
        %1375 = vmatpush1.msra.mxu0 0.0
        %1376 = vmatprep.subr.mxu0 0.0
        %1377 = vmatpush1.msra.mxu0 0.0
        %1378 = vmatprep.subr.mxu0 0.0
        %1379 = vmatpush1.msra.mxu0 0.0
        %1380 = vmatprep.subr.mxu0 0.0
        %1381 = vmatpush1.msra.mxu0 0.0
        %1382 = vmatprep.subr.mxu0 0.0
        %1383 = vmatpush1.msra.mxu0 0.0
        %1384 = vmatprep.subr.mxu0 0.0
        %1385 = vmatpush1.msra.mxu0 0.0
        %1386 = vmatprep.subr.mxu0 0.0
        %1387 = vmatpush1.msra.mxu0 0.0
        %1388 = vmatprep.subr.mxu0 0.0
        %1389 = vmatpush1.msra.mxu0 0.0
        %1390 = vmatprep.mubr.f32.mxu0 0.0
        %1391 = vmatmul.mubr.f32.gmra.mrb[0].mxu0 %v1309
        %v1392 = vpop.f32.mrb[0].mxu0
        %v1393 = vadd.f32 0.0, %v1392
        %v1394 = vpop.f32.mrb[0].mxu0
        %1395 = vdwg.mxu0
        %v1396 = vadd.f32 %v1204, %v1393
        %v1397 = vlaneseq
        %v1398 = vshrl.u32 %v1397, 7
        %v1399 = vsub.s32 0, %v1398
        %v1400 = vrot.slane %v322, %v1399
        %v1401 = vadd.f32 %v1396, %v1400
        %v1402 = vld [vmem:[%s4 + $0x6f] sm:$0x1]
        %v1403 = vld [vmem:[%s4 + $0x70] sm:$0x1]
        %v1404 = vld [vmem:[%s4 + $0x71] sm:$0x1]
        %v1405 = vld [vmem:[%s4 + $0x72] sm:$0x1]
        %v1406 = vld [vmem:[%s4 + $0x73] sm:$0x1]
        %v1407 = vld [vmem:[%s4 + $0x74] sm:$0x1]
        %v1408 = vld [vmem:[%s4 + $0x75] sm:$0x1]
        %v1409 = vsel %vm323, %v1401, 0.0
        %1410 = vadd.xlane.f32.xlu0 %v1409
        %v1411 = vpop.xlane.xlu0 %1410
        %v1412 = vmul.f32 %v1411, %v327
        %v1413 = vsub.f32 %v1401, %v1412
        %v1414 = vmul.f32 %v1413, %v1413
        %v1415 = vsel %vm323, %v1414, 0.0
        %1416 = vadd.xlane.f32.xlu0 %v1415
        %v1417 = vpop.xlane.xlu0 %1416
        %v1418 = vmul.f32 %v1417, %v327
        %v1419 = vadd.f32 %v1418, 1e-05
        %v1420 = vrsqrt.pop %v1419
        %v1421 = vmul.f32 %v1413, %v1420
        %v1422 = vlaneseq
        %v1423 = vshrl.u32 %v1422, 7
        %v1424 = vsub.s32 0, %v1423
        %v1425 = vrot.slane %v1402, %v1424
        %v1426 = vmul.f32 %v1421, %v1425
        %v1427 = vlaneseq
        %v1428 = vshrl.u32 %v1427, 7
        %v1429 = vsub.s32 0, %v1428
        %v1430 = vrot.slane %v1403, %v1429
        %v1431 = vadd.f32 %v1426, %v1430
        %s1432 = scalar_lea.vmem %s1, 32
        %v1433 = vld [vmem:[%s1432] sm:$0xff]
        %v1434 = vld [vmem:[%s1432 + $0x8] sm:$0xff]
        %v1435 = vld [vmem:[%s1432 + $0x10] sm:$0xff]
        %v1436 = vld [vmem:[%s1432 + $0x18] sm:$0xff]
        %v1438 = vsel %vm323, %v1431, 0
        %1440 = vmatprep.subr.mxu0 0.0
        %1441 = vmatpush1.msra.mxu0 %v1433
        %1442 = vmatprep.subr.mxu0 0.0
        %1443 = vmatpush1.msra.mxu0 %v1434
        %1444 = vmatprep.subr.mxu0 0.0
        %1445 = vmatpush1.msra.mxu0 %v1435
        %1446 = vmatprep.subr.mxu0 0.0
        %1447 = vmatpush1.msra.mxu0 %v1436
        %1448 = vmatprep.subr.mxu0 0.0
        %1449 = vmatpush1.msra.mxu0 0.0
        %1450 = vmatprep.subr.mxu0 0.0
        %1451 = vmatpush1.msra.mxu0 0.0
        %1452 = vmatprep.subr.mxu0 0.0
        %1453 = vmatpush1.msra.mxu0 0.0
        %1454 = vmatprep.subr.mxu0 0.0
        %1455 = vmatpush1.msra.mxu0 0.0
        %1456 = vmatprep.subr.mxu0 0.0
        %1457 = vmatpush1.msra.mxu0 0.0
        %1458 = vmatprep.subr.mxu0 0.0
        %1459 = vmatpush1.msra.mxu0 0.0
        %1460 = vmatprep.subr.mxu0 0.0
        %1461 = vmatpush1.msra.mxu0 0.0
        %1462 = vmatprep.subr.mxu0 0.0
        %1463 = vmatpush1.msra.mxu0 0.0
        %1464 = vmatprep.subr.mxu0 0.0
        %1465 = vmatpush1.msra.mxu0 0.0
        %1466 = vmatprep.subr.mxu0 0.0
        %1467 = vmatpush1.msra.mxu0 0.0
        %1468 = vmatprep.subr.mxu0 0.0
        %1469 = vmatpush1.msra.mxu0 0.0
        %1470 = vmatprep.subr.mxu0 0.0
        %1471 = vmatpush1.msra.mxu0 0.0
        %1472 = vmatprep.subr.mxu0 0.0
        %1473 = vmatpush1.msra.mxu0 0.0
        %1474 = vmatprep.subr.mxu0 0.0
        %1475 = vmatpush1.msra.mxu0 0.0
        %1476 = vmatprep.subr.mxu0 0.0
        %1477 = vmatpush1.msra.mxu0 0.0
        %1478 = vmatprep.subr.mxu0 0.0
        %1479 = vmatpush1.msra.mxu0 0.0
        %1480 = vmatprep.subr.mxu0 0.0
        %1481 = vmatpush1.msra.mxu0 0.0
        %1482 = vmatprep.subr.mxu0 0.0
        %1483 = vmatpush1.msra.mxu0 0.0
        %1484 = vmatprep.subr.mxu0 0.0
        %1485 = vmatpush1.msra.mxu0 0.0
        %1486 = vmatprep.subr.mxu0 0.0
        %1487 = vmatpush1.msra.mxu0 0.0
        %1488 = vmatprep.subr.mxu0 0.0
        %1489 = vmatpush1.msra.mxu0 0.0
        %1490 = vmatprep.subr.mxu0 0.0
        %1491 = vmatpush1.msra.mxu0 0.0
        %1492 = vmatprep.subr.mxu0 0.0
        %1493 = vmatpush1.msra.mxu0 0.0
        %1494 = vmatprep.subr.mxu0 0.0
        %1495 = vmatpush1.msra.mxu0 0.0
        %1496 = vmatprep.subr.mxu0 0.0
        %1497 = vmatpush1.msra.mxu0 0.0
        %1498 = vmatprep.subr.mxu0 0.0
        %1499 = vmatpush1.msra.mxu0 0.0
        %1500 = vmatprep.subr.mxu0 0.0
        %1501 = vmatpush1.msra.mxu0 0.0
        %1502 = vmatprep.subr.mxu0 0.0
        %1503 = vmatpush1.msra.mxu0 0.0
        %1504 = vmatprep.mubr.f32.mxu0 0.0
        %1505 = vmatmul.mubr.f32.gmra.mrb[0].mxu0 %v1438
        %v1506 = vpop.f32.mrb[0].mxu0
        %v1507 = vadd.f32 0.0, %v1506
        %v1508 = vpop.f32.mrb[0].mxu0
        %1509 = vdwg.mxu0
        %1511 = vrot.lane.b32.xlu0 %v1507, 96
        %v1512 = vpop.permute.xlu0 %1511
        %v1513 = vsel %vm428, %v1507, 0
        %v1515 = vsel %vm428, %v1512, 0
        %1517 = vmatprep.subr.mxu0 0.0
        %1518 = vmatpush1.xpose.msra.mxu0 %v1515
        %1519 = vmatprep.subr.mxu0 0.0
        %1520 = vmatpush1.xpose.msra.mxu0 0.0
        %1521 = vmatprep.subr.mxu0 0.0
        %1522 = vmatpush1.xpose.msra.mxu0 0.0
        %1523 = vmatprep.subr.mxu0 0.0
        %1524 = vmatpush1.xpose.msra.mxu0 0.0
        %1525 = vmatprep.subr.mxu0 0.0
        %1526 = vmatpush1.xpose.msra.mxu0 0.0
        %1527 = vmatprep.subr.mxu0 0.0
        %1528 = vmatpush1.xpose.msra.mxu0 0.0
        %1529 = vmatprep.subr.mxu0 0.0
        %1530 = vmatpush1.xpose.msra.mxu0 0.0
        %1531 = vmatprep.subr.mxu0 0.0
        %1532 = vmatpush1.xpose.msra.mxu0 0.0
        %1533 = vmatprep.subr.mxu0 0.0
        %1534 = vmatpush1.xpose.msra.mxu0 0.0
        %1535 = vmatprep.subr.mxu0 0.0
        %1536 = vmatpush1.xpose.msra.mxu0 0.0
        %1537 = vmatprep.subr.mxu0 0.0
        %1538 = vmatpush1.xpose.msra.mxu0 0.0
        %1539 = vmatprep.subr.mxu0 0.0
        %1540 = vmatpush1.xpose.msra.mxu0 0.0
        %1541 = vmatprep.subr.mxu0 0.0
        %1542 = vmatpush1.xpose.msra.mxu0 0.0
        %1543 = vmatprep.subr.mxu0 0.0
        %1544 = vmatpush1.xpose.msra.mxu0 0.0
        %1545 = vmatprep.subr.mxu0 0.0
        %1546 = vmatpush1.xpose.msra.mxu0 0.0
        %1547 = vmatprep.subr.mxu0 0.0
        %1548 = vmatpush1.xpose.msra.mxu0 0.0
        %1549 = vmatprep.subr.mxu0 0.0
        %1550 = vmatpush1.xpose.msra.mxu0 0.0
        %1551 = vmatprep.subr.mxu0 0.0
        %1552 = vmatpush1.xpose.msra.mxu0 0.0
        %1553 = vmatprep.subr.mxu0 0.0
        %1554 = vmatpush1.xpose.msra.mxu0 0.0
        %1555 = vmatprep.subr.mxu0 0.0
        %1556 = vmatpush1.xpose.msra.mxu0 0.0
        %1557 = vmatprep.subr.mxu0 0.0
        %1558 = vmatpush1.xpose.msra.mxu0 0.0
        %1559 = vmatprep.subr.mxu0 0.0
        %1560 = vmatpush1.xpose.msra.mxu0 0.0
        %1561 = vmatprep.subr.mxu0 0.0
        %1562 = vmatpush1.xpose.msra.mxu0 0.0
        %1563 = vmatprep.subr.mxu0 0.0
        %1564 = vmatpush1.xpose.msra.mxu0 0.0
        %1565 = vmatprep.subr.mxu0 0.0
        %1566 = vmatpush1.xpose.msra.mxu0 0.0
        %1567 = vmatprep.subr.mxu0 0.0
        %1568 = vmatpush1.xpose.msra.mxu0 0.0
        %1569 = vmatprep.subr.mxu0 0.0
        %1570 = vmatpush1.xpose.msra.mxu0 0.0
        %1571 = vmatprep.subr.mxu0 0.0
        %1572 = vmatpush1.xpose.msra.mxu0 0.0
        %1573 = vmatprep.subr.mxu0 0.0
        %1574 = vmatpush1.xpose.msra.mxu0 0.0
        %1575 = vmatprep.subr.mxu0 0.0
        %1576 = vmatpush1.xpose.msra.mxu0 0.0
        %1577 = vmatprep.subr.mxu0 0.0
        %1578 = vmatpush1.xpose.msra.mxu0 0.0
        %1579 = vmatprep.subr.mxu0 0.0
        %1580 = vmatpush1.xpose.msra.mxu0 0.0
        %1581 = vmatprep.mubr.f32.mxu0 0.0
        %1582 = vmatmul.mubr.f32.gmra.mrb[0].mxu0 %v1513
        %v1583 = vpop.f32.mrb[0].mxu0
        %v1584 = vadd.f32 0.0, %v1583
        %v1585 = vpop.f32.mrb[0].mxu0
        %1586 = vdwg.mxu0
        %v1587 = vmul.f32 %v1584, 0.35355338
        %v1588 = vadd.f32 %v1587, %v315
        %v1589 = vsel %vm428, %v1588, -inf
        %1590 = vmax.xlane.f32.xlu0 %v1589
        %v1591 = vpop.xlane.xlu0 %1590
        %v1592 = vsub.f32 %v1588, %v1591
        %v1593 = vmul.f32 %v1592, 1.442695
        %v1594 = vpow.pop %v1593
        %v1595 = vsel %vm428, %v1594, 0.0
        %1596 = vadd.xlane.f32.xlu0 %v1595
        %v1597 = vpop.xlane.xlu0 %1596
        %v1598 = vrcp.pop %v1597
        %v1599 = vmul.f32 %v1594, %v1598
        %1600 = vrot.lane.b32.xlu0 %v1507, 64
        %v1601 = vpop.permute.xlu0 %1600
        %v1604 = vsel %vm428, %v1599, 0
        %1606 = vmatprep.subr.mxu0 0.0
        %1607 = vmatpush1.msra.mxu0 %v1601
        %1608 = vmatprep.subr.mxu0 0.0
        %1609 = vmatpush1.msra.mxu0 0.0
        %1610 = vmatprep.subr.mxu0 0.0
        %1611 = vmatpush1.msra.mxu0 0.0
        %1612 = vmatprep.subr.mxu0 0.0
        %1613 = vmatpush1.msra.mxu0 0.0
        %1614 = vmatprep.subr.mxu0 0.0
        %1615 = vmatpush1.msra.mxu0 0.0
        %1616 = vmatprep.subr.mxu0 0.0
        %1617 = vmatpush1.msra.mxu0 0.0
        %1618 = vmatprep.subr.mxu0 0.0
        %1619 = vmatpush1.msra.mxu0 0.0
        %1620 = vmatprep.subr.mxu0 0.0
        %1621 = vmatpush1.msra.mxu0 0.0
        %1622 = vmatprep.subr.mxu0 0.0
        %1623 = vmatpush1.msra.mxu0 0.0
        %1624 = vmatprep.subr.mxu0 0.0
        %1625 = vmatpush1.msra.mxu0 0.0
        %1626 = vmatprep.subr.mxu0 0.0
        %1627 = vmatpush1.msra.mxu0 0.0
        %1628 = vmatprep.subr.mxu0 0.0
        %1629 = vmatpush1.msra.mxu0 0.0
        %1630 = vmatprep.subr.mxu0 0.0
        %1631 = vmatpush1.msra.mxu0 0.0
        %1632 = vmatprep.subr.mxu0 0.0
        %1633 = vmatpush1.msra.mxu0 0.0
        %1634 = vmatprep.subr.mxu0 0.0
        %1635 = vmatpush1.msra.mxu0 0.0
        %1636 = vmatprep.subr.mxu0 0.0
        %1637 = vmatpush1.msra.mxu0 0.0
        %1638 = vmatprep.subr.mxu0 0.0
        %1639 = vmatpush1.msra.mxu0 0.0
        %1640 = vmatprep.subr.mxu0 0.0
        %1641 = vmatpush1.msra.mxu0 0.0
        %1642 = vmatprep.subr.mxu0 0.0
        %1643 = vmatpush1.msra.mxu0 0.0
        %1644 = vmatprep.subr.mxu0 0.0
        %1645 = vmatpush1.msra.mxu0 0.0
        %1646 = vmatprep.subr.mxu0 0.0
        %1647 = vmatpush1.msra.mxu0 0.0
        %1648 = vmatprep.subr.mxu0 0.0
        %1649 = vmatpush1.msra.mxu0 0.0
        %1650 = vmatprep.subr.mxu0 0.0
        %1651 = vmatpush1.msra.mxu0 0.0
        %1652 = vmatprep.subr.mxu0 0.0
        %1653 = vmatpush1.msra.mxu0 0.0
        %1654 = vmatprep.subr.mxu0 0.0
        %1655 = vmatpush1.msra.mxu0 0.0
        %1656 = vmatprep.subr.mxu0 0.0
        %1657 = vmatpush1.msra.mxu0 0.0
        %1658 = vmatprep.subr.mxu0 0.0
        %1659 = vmatpush1.msra.mxu0 0.0
        %1660 = vmatprep.subr.mxu0 0.0
        %1661 = vmatpush1.msra.mxu0 0.0
        %1662 = vmatprep.subr.mxu0 0.0
        %1663 = vmatpush1.msra.mxu0 0.0
        %1664 = vmatprep.subr.mxu0 0.0
        %1665 = vmatpush1.msra.mxu0 0.0
        %1666 = vmatprep.subr.mxu0 0.0
        %1667 = vmatpush1.msra.mxu0 0.0
        %1668 = vmatprep.subr.mxu0 0.0
        %1669 = vmatpush1.msra.mxu0 0.0
        %1670 = vmatprep.mubr.f32.mxu0 0.0
        %1671 = vmatmul.mubr.f32.gmra.mrb[0].mxu0 %v1604
        %v1672 = vpop.f32.mrb[0].mxu0
        %v1673 = vadd.f32 0.0, %v1672
        %v1674 = vpop.f32.mrb[0].mxu0
        %1675 = vdwg.mxu0
        %1676 = vrot.lane.b32.xlu0 %v1507, 120
        %v1677 = vpop.permute.xlu0 %1676
        %1678 = vrot.lane.b32.xlu0 %v1507, 88
        %v1679 = vpop.permute.xlu0 %1678
        %v1680 = vsel %vm428, %v1677, 0
        %v1682 = vsel %vm428, %v1679, 0
        %1684 = vmatprep.subr.mxu0 0.0
        %1685 = vmatpush1.xpose.msra.mxu0 %v1682
        %1686 = vmatprep.subr.mxu0 0.0
        %1687 = vmatpush1.xpose.msra.mxu0 0.0
        %1688 = vmatprep.subr.mxu0 0.0
        %1689 = vmatpush1.xpose.msra.mxu0 0.0
        %1690 = vmatprep.subr.mxu0 0.0
        %1691 = vmatpush1.xpose.msra.mxu0 0.0
        %1692 = vmatprep.subr.mxu0 0.0
        %1693 = vmatpush1.xpose.msra.mxu0 0.0
        %1694 = vmatprep.subr.mxu0 0.0
        %1695 = vmatpush1.xpose.msra.mxu0 0.0
        %1696 = vmatprep.subr.mxu0 0.0
        %1697 = vmatpush1.xpose.msra.mxu0 0.0
        %1698 = vmatprep.subr.mxu0 0.0
        %1699 = vmatpush1.xpose.msra.mxu0 0.0
        %1700 = vmatprep.subr.mxu0 0.0
        %1701 = vmatpush1.xpose.msra.mxu0 0.0
        %1702 = vmatprep.subr.mxu0 0.0
        %1703 = vmatpush1.xpose.msra.mxu0 0.0
        %1704 = vmatprep.subr.mxu0 0.0
        %1705 = vmatpush1.xpose.msra.mxu0 0.0
        %1706 = vmatprep.subr.mxu0 0.0
        %1707 = vmatpush1.xpose.msra.mxu0 0.0
        %1708 = vmatprep.subr.mxu0 0.0
        %1709 = vmatpush1.xpose.msra.mxu0 0.0
        %1710 = vmatprep.subr.mxu0 0.0
        %1711 = vmatpush1.xpose.msra.mxu0 0.0
        %1712 = vmatprep.subr.mxu0 0.0
        %1713 = vmatpush1.xpose.msra.mxu0 0.0
        %1714 = vmatprep.subr.mxu0 0.0
        %1715 = vmatpush1.xpose.msra.mxu0 0.0
        %1716 = vmatprep.subr.mxu0 0.0
        %1717 = vmatpush1.xpose.msra.mxu0 0.0
        %1718 = vmatprep.subr.mxu0 0.0
        %1719 = vmatpush1.xpose.msra.mxu0 0.0
        %1720 = vmatprep.subr.mxu0 0.0
        %1721 = vmatpush1.xpose.msra.mxu0 0.0
        %1722 = vmatprep.subr.mxu0 0.0
        %1723 = vmatpush1.xpose.msra.mxu0 0.0
        %1724 = vmatprep.subr.mxu0 0.0
        %1725 = vmatpush1.xpose.msra.mxu0 0.0
        %1726 = vmatprep.subr.mxu0 0.0
        %1727 = vmatpush1.xpose.msra.mxu0 0.0
        %1728 = vmatprep.subr.mxu0 0.0
        %1729 = vmatpush1.xpose.msra.mxu0 0.0
        %1730 = vmatprep.subr.mxu0 0.0
        %1731 = vmatpush1.xpose.msra.mxu0 0.0
        %1732 = vmatprep.subr.mxu0 0.0
        %1733 = vmatpush1.xpose.msra.mxu0 0.0
        %1734 = vmatprep.subr.mxu0 0.0
        %1735 = vmatpush1.xpose.msra.mxu0 0.0
        %1736 = vmatprep.subr.mxu0 0.0
        %1737 = vmatpush1.xpose.msra.mxu0 0.0
        %1738 = vmatprep.subr.mxu0 0.0
        %1739 = vmatpush1.xpose.msra.mxu0 0.0
        %1740 = vmatprep.subr.mxu0 0.0
        %1741 = vmatpush1.xpose.msra.mxu0 0.0
        %1742 = vmatprep.subr.mxu0 0.0
        %1743 = vmatpush1.xpose.msra.mxu0 0.0
        %1744 = vmatprep.subr.mxu0 0.0
        %1745 = vmatpush1.xpose.msra.mxu0 0.0
        %1746 = vmatprep.subr.mxu0 0.0
        %1747 = vmatpush1.xpose.msra.mxu0 0.0
        %1748 = vmatprep.mubr.f32.mxu0 0.0
        %1749 = vmatmul.mubr.f32.gmra.mrb[0].mxu0 %v1680
        %v1750 = vpop.f32.mrb[0].mxu0
        %v1751 = vadd.f32 0.0, %v1750
        %v1752 = vpop.f32.mrb[0].mxu0
        %1753 = vdwg.mxu0
        %v1754 = vmul.f32 %v1751, 0.35355338
        %v1755 = vadd.f32 %v1754, %v315
        %v1756 = vsel %vm428, %v1755, -inf
        %1757 = vmax.xlane.f32.xlu0 %v1756
        %v1758 = vpop.xlane.xlu0 %1757
        %v1759 = vsub.f32 %v1755, %v1758
        %v1760 = vmul.f32 %v1759, 1.442695
        %v1761 = vpow.pop %v1760
        %v1762 = vsel %vm428, %v1761, 0.0
        %1763 = vadd.xlane.f32.xlu0 %v1762
        %v1764 = vpop.xlane.xlu0 %1763
        %v1765 = vrcp.pop %v1764
        %v1766 = vmul.f32 %v1761, %v1765
        %1767 = vrot.lane.b32.xlu0 %v1507, 56
        %v1768 = vpop.permute.xlu0 %1767
        %v1771 = vsel %vm428, %v1766, 0
        %1773 = vmatprep.subr.mxu0 0.0
        %1774 = vmatpush1.msra.mxu0 %v1768
        %1775 = vmatprep.subr.mxu0 0.0
        %1776 = vmatpush1.msra.mxu0 0.0
        %1777 = vmatprep.subr.mxu0 0.0
        %1778 = vmatpush1.msra.mxu0 0.0
        %1779 = vmatprep.subr.mxu0 0.0
        %1780 = vmatpush1.msra.mxu0 0.0
        %1781 = vmatprep.subr.mxu0 0.0
        %1782 = vmatpush1.msra.mxu0 0.0
        %1783 = vmatprep.subr.mxu0 0.0
        %1784 = vmatpush1.msra.mxu0 0.0
        %1785 = vmatprep.subr.mxu0 0.0
        %1786 = vmatpush1.msra.mxu0 0.0
        %1787 = vmatprep.subr.mxu0 0.0
        %1788 = vmatpush1.msra.mxu0 0.0
        %1789 = vmatprep.subr.mxu0 0.0
        %1790 = vmatpush1.msra.mxu0 0.0
        %1791 = vmatprep.subr.mxu0 0.0
        %1792 = vmatpush1.msra.mxu0 0.0
        %1793 = vmatprep.subr.mxu0 0.0
        %1794 = vmatpush1.msra.mxu0 0.0
        %1795 = vmatprep.subr.mxu0 0.0
        %1796 = vmatpush1.msra.mxu0 0.0
        %1797 = vmatprep.subr.mxu0 0.0
        %1798 = vmatpush1.msra.mxu0 0.0
        %1799 = vmatprep.subr.mxu0 0.0
        %1800 = vmatpush1.msra.mxu0 0.0
        %1801 = vmatprep.subr.mxu0 0.0
        %1802 = vmatpush1.msra.mxu0 0.0
        %1803 = vmatprep.subr.mxu0 0.0
        %1804 = vmatpush1.msra.mxu0 0.0
        %1805 = vmatprep.subr.mxu0 0.0
        %1806 = vmatpush1.msra.mxu0 0.0
        %1807 = vmatprep.subr.mxu0 0.0
        %1808 = vmatpush1.msra.mxu0 0.0
        %1809 = vmatprep.subr.mxu0 0.0
        %1810 = vmatpush1.msra.mxu0 0.0
        %1811 = vmatprep.subr.mxu0 0.0
        %1812 = vmatpush1.msra.mxu0 0.0
        %1813 = vmatprep.subr.mxu0 0.0
        %1814 = vmatpush1.msra.mxu0 0.0
        %1815 = vmatprep.subr.mxu0 0.0
        %1816 = vmatpush1.msra.mxu0 0.0
        %1817 = vmatprep.subr.mxu0 0.0
        %1818 = vmatpush1.msra.mxu0 0.0
        %1819 = vmatprep.subr.mxu0 0.0
        %1820 = vmatpush1.msra.mxu0 0.0
        %1821 = vmatprep.subr.mxu0 0.0
        %1822 = vmatpush1.msra.mxu0 0.0
        %1823 = vmatprep.subr.mxu0 0.0
        %1824 = vmatpush1.msra.mxu0 0.0
        %1825 = vmatprep.subr.mxu0 0.0
        %1826 = vmatpush1.msra.mxu0 0.0
        %1827 = vmatprep.subr.mxu0 0.0
        %1828 = vmatpush1.msra.mxu0 0.0
        %1829 = vmatprep.subr.mxu0 0.0
        %1830 = vmatpush1.msra.mxu0 0.0
        %1831 = vmatprep.subr.mxu0 0.0
        %1832 = vmatpush1.msra.mxu0 0.0
        %1833 = vmatprep.subr.mxu0 0.0
        %1834 = vmatpush1.msra.mxu0 0.0
        %1835 = vmatprep.subr.mxu0 0.0
        %1836 = vmatpush1.msra.mxu0 0.0
        %1837 = vmatprep.mubr.f32.mxu0 0.0
        %1838 = vmatmul.mubr.f32.gmra.mrb[0].mxu0 %v1771
        %v1839 = vpop.f32.mrb[0].mxu0
        %v1840 = vadd.f32 0.0, %v1839
        %v1841 = vpop.f32.mrb[0].mxu0
        %1842 = vdwg.mxu0
        %1843 = vrot.lane.b32.xlu0 %v1507, 112
        %v1844 = vpop.permute.xlu0 %1843
        %1845 = vrot.lane.b32.xlu0 %v1507, 80
        %v1846 = vpop.permute.xlu0 %1845
        %v1847 = vsel %vm428, %v1844, 0
        %v1849 = vsel %vm428, %v1846, 0
        %1851 = vmatprep.subr.mxu0 0.0
        %1852 = vmatpush1.xpose.msra.mxu0 %v1849
        %1853 = vmatprep.subr.mxu0 0.0
        %1854 = vmatpush1.xpose.msra.mxu0 0.0
        %1855 = vmatprep.subr.mxu0 0.0
        %1856 = vmatpush1.xpose.msra.mxu0 0.0
        %1857 = vmatprep.subr.mxu0 0.0
        %1858 = vmatpush1.xpose.msra.mxu0 0.0
        %1859 = vmatprep.subr.mxu0 0.0
        %1860 = vmatpush1.xpose.msra.mxu0 0.0
        %1861 = vmatprep.subr.mxu0 0.0
        %1862 = vmatpush1.xpose.msra.mxu0 0.0
        %1863 = vmatprep.subr.mxu0 0.0
        %1864 = vmatpush1.xpose.msra.mxu0 0.0
        %1865 = vmatprep.subr.mxu0 0.0
        %1866 = vmatpush1.xpose.msra.mxu0 0.0
        %1867 = vmatprep.subr.mxu0 0.0
        %1868 = vmatpush1.xpose.msra.mxu0 0.0
        %1869 = vmatprep.subr.mxu0 0.0
        %1870 = vmatpush1.xpose.msra.mxu0 0.0
        %1871 = vmatprep.subr.mxu0 0.0
        %1872 = vmatpush1.xpose.msra.mxu0 0.0
        %1873 = vmatprep.subr.mxu0 0.0
        %1874 = vmatpush1.xpose.msra.mxu0 0.0
        %1875 = vmatprep.subr.mxu0 0.0
        %1876 = vmatpush1.xpose.msra.mxu0 0.0
        %1877 = vmatprep.subr.mxu0 0.0
        %1878 = vmatpush1.xpose.msra.mxu0 0.0
        %1879 = vmatprep.subr.mxu0 0.0
        %1880 = vmatpush1.xpose.msra.mxu0 0.0
        %1881 = vmatprep.subr.mxu0 0.0
        %1882 = vmatpush1.xpose.msra.mxu0 0.0
        %1883 = vmatprep.subr.mxu0 0.0
        %1884 = vmatpush1.xpose.msra.mxu0 0.0
        %1885 = vmatprep.subr.mxu0 0.0
        %1886 = vmatpush1.xpose.msra.mxu0 0.0
        %1887 = vmatprep.subr.mxu0 0.0
        %1888 = vmatpush1.xpose.msra.mxu0 0.0
        %1889 = vmatprep.subr.mxu0 0.0
        %1890 = vmatpush1.xpose.msra.mxu0 0.0
        %1891 = vmatprep.subr.mxu0 0.0
        %1892 = vmatpush1.xpose.msra.mxu0 0.0
        %1893 = vmatprep.subr.mxu0 0.0
        %1894 = vmatpush1.xpose.msra.mxu0 0.0
        %1895 = vmatprep.subr.mxu0 0.0
        %1896 = vmatpush1.xpose.msra.mxu0 0.0
        %1897 = vmatprep.subr.mxu0 0.0
        %1898 = vmatpush1.xpose.msra.mxu0 0.0
        %1899 = vmatprep.subr.mxu0 0.0
        %1900 = vmatpush1.xpose.msra.mxu0 0.0
        %1901 = vmatprep.subr.mxu0 0.0
        %1902 = vmatpush1.xpose.msra.mxu0 0.0
        %1903 = vmatprep.subr.mxu0 0.0
        %1904 = vmatpush1.xpose.msra.mxu0 0.0
        %1905 = vmatprep.subr.mxu0 0.0
        %1906 = vmatpush1.xpose.msra.mxu0 0.0
        %1907 = vmatprep.subr.mxu0 0.0
        %1908 = vmatpush1.xpose.msra.mxu0 0.0
        %1909 = vmatprep.subr.mxu0 0.0
        %1910 = vmatpush1.xpose.msra.mxu0 0.0
        %1911 = vmatprep.subr.mxu0 0.0
        %1912 = vmatpush1.xpose.msra.mxu0 0.0
        %1913 = vmatprep.subr.mxu0 0.0
        %1914 = vmatpush1.xpose.msra.mxu0 0.0
        %1915 = vmatprep.mubr.f32.mxu0 0.0
        %1916 = vmatmul.mubr.f32.gmra.mrb[0].mxu0 %v1847
        %v1917 = vpop.f32.mrb[0].mxu0
        %v1918 = vadd.f32 0.0, %v1917
        %v1919 = vpop.f32.mrb[0].mxu0
        %1920 = vdwg.mxu0
        %v1921 = vmul.f32 %v1918, 0.35355338
        %v1922 = vadd.f32 %v1921, %v315
        %v1923 = vsel %vm428, %v1922, -inf
        %1924 = vmax.xlane.f32.xlu0 %v1923
        %v1925 = vpop.xlane.xlu0 %1924
        %v1926 = vsub.f32 %v1922, %v1925
        %v1927 = vmul.f32 %v1926, 1.442695
        %v1928 = vpow.pop %v1927
        %v1929 = vsel %vm428, %v1928, 0.0
        %1930 = vadd.xlane.f32.xlu0 %v1929
        %v1931 = vpop.xlane.xlu0 %1930
        %v1932 = vrcp.pop %v1931
        %v1933 = vmul.f32 %v1928, %v1932
        %1934 = vrot.lane.b32.xlu0 %v1507, 48
        %v1935 = vpop.permute.xlu0 %1934
        %v1938 = vsel %vm428, %v1933, 0
        %1940 = vmatprep.subr.mxu0 0.0
        %1941 = vmatpush1.msra.mxu0 %v1935
        %1942 = vmatprep.subr.mxu0 0.0
        %1943 = vmatpush1.msra.mxu0 0.0
        %1944 = vmatprep.subr.mxu0 0.0
        %1945 = vmatpush1.msra.mxu0 0.0
        %1946 = vmatprep.subr.mxu0 0.0
        %1947 = vmatpush1.msra.mxu0 0.0
        %1948 = vmatprep.subr.mxu0 0.0
        %1949 = vmatpush1.msra.mxu0 0.0
        %1950 = vmatprep.subr.mxu0 0.0
        %1951 = vmatpush1.msra.mxu0 0.0
        %1952 = vmatprep.subr.mxu0 0.0
        %1953 = vmatpush1.msra.mxu0 0.0
        %1954 = vmatprep.subr.mxu0 0.0
        %1955 = vmatpush1.msra.mxu0 0.0
        %1956 = vmatprep.subr.mxu0 0.0
        %1957 = vmatpush1.msra.mxu0 0.0
        %1958 = vmatprep.subr.mxu0 0.0
        %1959 = vmatpush1.msra.mxu0 0.0
        %1960 = vmatprep.subr.mxu0 0.0
        %1961 = vmatpush1.msra.mxu0 0.0
        %1962 = vmatprep.subr.mxu0 0.0
        %1963 = vmatpush1.msra.mxu0 0.0
        %1964 = vmatprep.subr.mxu0 0.0
        %1965 = vmatpush1.msra.mxu0 0.0
        %1966 = vmatprep.subr.mxu0 0.0
        %1967 = vmatpush1.msra.mxu0 0.0
        %1968 = vmatprep.subr.mxu0 0.0
        %1969 = vmatpush1.msra.mxu0 0.0
        %1970 = vmatprep.subr.mxu0 0.0
        %1971 = vmatpush1.msra.mxu0 0.0
        %1972 = vmatprep.subr.mxu0 0.0
        %1973 = vmatpush1.msra.mxu0 0.0
        %1974 = vmatprep.subr.mxu0 0.0
        %1975 = vmatpush1.msra.mxu0 0.0
        %1976 = vmatprep.subr.mxu0 0.0
        %1977 = vmatpush1.msra.mxu0 0.0
        %1978 = vmatprep.subr.mxu0 0.0
        %1979 = vmatpush1.msra.mxu0 0.0
        %1980 = vmatprep.subr.mxu0 0.0
        %1981 = vmatpush1.msra.mxu0 0.0
        %1982 = vmatprep.subr.mxu0 0.0
        %1983 = vmatpush1.msra.mxu0 0.0
        %1984 = vmatprep.subr.mxu0 0.0
        %1985 = vmatpush1.msra.mxu0 0.0
        %1986 = vmatprep.subr.mxu0 0.0
        %1987 = vmatpush1.msra.mxu0 0.0
        %1988 = vmatprep.subr.mxu0 0.0
        %1989 = vmatpush1.msra.mxu0 0.0
        %1990 = vmatprep.subr.mxu0 0.0
        %1991 = vmatpush1.msra.mxu0 0.0
        %1992 = vmatprep.subr.mxu0 0.0
        %1993 = vmatpush1.msra.mxu0 0.0
        %1994 = vmatprep.subr.mxu0 0.0
        %1995 = vmatpush1.msra.mxu0 0.0
        %1996 = vmatprep.subr.mxu0 0.0
        %1997 = vmatpush1.msra.mxu0 0.0
        %1998 = vmatprep.subr.mxu0 0.0
        %1999 = vmatpush1.msra.mxu0 0.0
        %2000 = vmatprep.subr.mxu0 0.0
        %2001 = vmatpush1.msra.mxu0 0.0
        %2002 = vmatprep.subr.mxu0 0.0
        %2003 = vmatpush1.msra.mxu0 0.0
        %2004 = vmatprep.mubr.f32.mxu0 0.0
        %2005 = vmatmul.mubr.f32.gmra.mrb[0].mxu0 %v1938
        %v2006 = vpop.f32.mrb[0].mxu0
        %v2007 = vadd.f32 0.0, %v2006
        %v2008 = vpop.f32.mrb[0].mxu0
        %2009 = vdwg.mxu0
        %2010 = vrot.lane.b32.xlu0 %v1507, 104
        %v2011 = vpop.permute.xlu0 %2010
        %2012 = vrot.lane.b32.xlu0 %v1507, 72
        %v2013 = vpop.permute.xlu0 %2012
        %v2014 = vsel %vm428, %v2011, 0
        %v2016 = vsel %vm428, %v2013, 0
        %2018 = vmatprep.subr.mxu0 0.0
        %2019 = vmatpush1.xpose.msra.mxu0 %v2016
        %2020 = vmatprep.subr.mxu0 0.0
        %2021 = vmatpush1.xpose.msra.mxu0 0.0
        %2022 = vmatprep.subr.mxu0 0.0
        %2023 = vmatpush1.xpose.msra.mxu0 0.0
        %2024 = vmatprep.subr.mxu0 0.0
        %2025 = vmatpush1.xpose.msra.mxu0 0.0
        %2026 = vmatprep.subr.mxu0 0.0
        %2027 = vmatpush1.xpose.msra.mxu0 0.0
        %2028 = vmatprep.subr.mxu0 0.0
        %2029 = vmatpush1.xpose.msra.mxu0 0.0
        %2030 = vmatprep.subr.mxu0 0.0
        %2031 = vmatpush1.xpose.msra.mxu0 0.0
        %2032 = vmatprep.subr.mxu0 0.0
        %2033 = vmatpush1.xpose.msra.mxu0 0.0
        %2034 = vmatprep.subr.mxu0 0.0
        %2035 = vmatpush1.xpose.msra.mxu0 0.0
        %2036 = vmatprep.subr.mxu0 0.0
        %2037 = vmatpush1.xpose.msra.mxu0 0.0
        %2038 = vmatprep.subr.mxu0 0.0
        %2039 = vmatpush1.xpose.msra.mxu0 0.0
        %2040 = vmatprep.subr.mxu0 0.0
        %2041 = vmatpush1.xpose.msra.mxu0 0.0
        %2042 = vmatprep.subr.mxu0 0.0
        %2043 = vmatpush1.xpose.msra.mxu0 0.0
        %2044 = vmatprep.subr.mxu0 0.0
        %2045 = vmatpush1.xpose.msra.mxu0 0.0
        %2046 = vmatprep.subr.mxu0 0.0
        %2047 = vmatpush1.xpose.msra.mxu0 0.0
        %2048 = vmatprep.subr.mxu0 0.0
        %2049 = vmatpush1.xpose.msra.mxu0 0.0
        %2050 = vmatprep.subr.mxu0 0.0
        %2051 = vmatpush1.xpose.msra.mxu0 0.0
        %2052 = vmatprep.subr.mxu0 0.0
        %2053 = vmatpush1.xpose.msra.mxu0 0.0
        %2054 = vmatprep.subr.mxu0 0.0
        %2055 = vmatpush1.xpose.msra.mxu0 0.0
        %2056 = vmatprep.subr.mxu0 0.0
        %2057 = vmatpush1.xpose.msra.mxu0 0.0
        %2058 = vmatprep.subr.mxu0 0.0
        %2059 = vmatpush1.xpose.msra.mxu0 0.0
        %2060 = vmatprep.subr.mxu0 0.0
        %2061 = vmatpush1.xpose.msra.mxu0 0.0
        %2062 = vmatprep.subr.mxu0 0.0
        %2063 = vmatpush1.xpose.msra.mxu0 0.0
        %2064 = vmatprep.subr.mxu0 0.0
        %2065 = vmatpush1.xpose.msra.mxu0 0.0
        %2066 = vmatprep.subr.mxu0 0.0
        %2067 = vmatpush1.xpose.msra.mxu0 0.0
        %2068 = vmatprep.subr.mxu0 0.0
        %2069 = vmatpush1.xpose.msra.mxu0 0.0
        %2070 = vmatprep.subr.mxu0 0.0
        %2071 = vmatpush1.xpose.msra.mxu0 0.0
        %2072 = vmatprep.subr.mxu0 0.0
        %2073 = vmatpush1.xpose.msra.mxu0 0.0
        %2074 = vmatprep.subr.mxu0 0.0
        %2075 = vmatpush1.xpose.msra.mxu0 0.0
        %2076 = vmatprep.subr.mxu0 0.0
        %2077 = vmatpush1.xpose.msra.mxu0 0.0
        %2078 = vmatprep.subr.mxu0 0.0
        %2079 = vmatpush1.xpose.msra.mxu0 0.0
        %2080 = vmatprep.subr.mxu0 0.0
        %2081 = vmatpush1.xpose.msra.mxu0 0.0
        %2082 = vmatprep.mubr.f32.mxu0 0.0
        %2083 = vmatmul.mubr.f32.gmra.mrb[0].mxu0 %v2014
        %v2084 = vpop.f32.mrb[0].mxu0
        %v2085 = vadd.f32 0.0, %v2084
        %v2086 = vpop.f32.mrb[0].mxu0
        %2087 = vdwg.mxu0
        %v2088 = vmul.f32 %v2085, 0.35355338
        %v2089 = vadd.f32 %v2088, %v315
        %v2090 = vsel %vm428, %v2089, -inf
        %2091 = vmax.xlane.f32.xlu0 %v2090
        %v2092 = vpop.xlane.xlu0 %2091
        %v2093 = vsub.f32 %v2089, %v2092
        %v2094 = vmul.f32 %v2093, 1.442695
        %v2095 = vpow.pop %v2094
        %v2096 = vsel %vm428, %v2095, 0.0
        %2097 = vadd.xlane.f32.xlu0 %v2096
        %v2098 = vpop.xlane.xlu0 %2097
        %v2099 = vrcp.pop %v2098
        %v2100 = vmul.f32 %v2095, %v2099
        %2101 = vrot.lane.b32.xlu0 %v1507, 40
        %v2102 = vpop.permute.xlu0 %2101
        %v2105 = vsel %vm428, %v2100, 0
        %2107 = vmatprep.subr.mxu0 0.0
        %2108 = vmatpush1.msra.mxu0 %v2102
        %2109 = vmatprep.subr.mxu0 0.0
        %2110 = vmatpush1.msra.mxu0 0.0
        %2111 = vmatprep.subr.mxu0 0.0
        %2112 = vmatpush1.msra.mxu0 0.0
        %2113 = vmatprep.subr.mxu0 0.0
        %2114 = vmatpush1.msra.mxu0 0.0
        %2115 = vmatprep.subr.mxu0 0.0
        %2116 = vmatpush1.msra.mxu0 0.0
        %2117 = vmatprep.subr.mxu0 0.0
        %2118 = vmatpush1.msra.mxu0 0.0
        %2119 = vmatprep.subr.mxu0 0.0
        %2120 = vmatpush1.msra.mxu0 0.0
        %2121 = vmatprep.subr.mxu0 0.0
        %2122 = vmatpush1.msra.mxu0 0.0
        %2123 = vmatprep.subr.mxu0 0.0
        %2124 = vmatpush1.msra.mxu0 0.0
        %2125 = vmatprep.subr.mxu0 0.0
        %2126 = vmatpush1.msra.mxu0 0.0
        %2127 = vmatprep.subr.mxu0 0.0
        %2128 = vmatpush1.msra.mxu0 0.0
        %2129 = vmatprep.subr.mxu0 0.0
        %2130 = vmatpush1.msra.mxu0 0.0
        %2131 = vmatprep.subr.mxu0 0.0
        %2132 = vmatpush1.msra.mxu0 0.0
        %2133 = vmatprep.subr.mxu0 0.0
        %2134 = vmatpush1.msra.mxu0 0.0
        %2135 = vmatprep.subr.mxu0 0.0
        %2136 = vmatpush1.msra.mxu0 0.0
        %2137 = vmatprep.subr.mxu0 0.0
        %2138 = vmatpush1.msra.mxu0 0.0
        %2139 = vmatprep.subr.mxu0 0.0
        %2140 = vmatpush1.msra.mxu0 0.0
        %2141 = vmatprep.subr.mxu0 0.0
        %2142 = vmatpush1.msra.mxu0 0.0
        %2143 = vmatprep.subr.mxu0 0.0
        %2144 = vmatpush1.msra.mxu0 0.0
        %2145 = vmatprep.subr.mxu0 0.0
        %2146 = vmatpush1.msra.mxu0 0.0
        %2147 = vmatprep.subr.mxu0 0.0
        %2148 = vmatpush1.msra.mxu0 0.0
        %2149 = vmatprep.subr.mxu0 0.0
        %2150 = vmatpush1.msra.mxu0 0.0
        %2151 = vmatprep.subr.mxu0 0.0
        %2152 = vmatpush1.msra.mxu0 0.0
        %2153 = vmatprep.subr.mxu0 0.0
        %2154 = vmatpush1.msra.mxu0 0.0
        %2155 = vmatprep.subr.mxu0 0.0
        %2156 = vmatpush1.msra.mxu0 0.0
        %2157 = vmatprep.subr.mxu0 0.0
        %2158 = vmatpush1.msra.mxu0 0.0
        %2159 = vmatprep.subr.mxu0 0.0
        %2160 = vmatpush1.msra.mxu0 0.0
        %2161 = vmatprep.subr.mxu0 0.0
        %2162 = vmatpush1.msra.mxu0 0.0
        %2163 = vmatprep.subr.mxu0 0.0
        %2164 = vmatpush1.msra.mxu0 0.0
        %2165 = vmatprep.subr.mxu0 0.0
        %2166 = vmatpush1.msra.mxu0 0.0
        %2167 = vmatprep.subr.mxu0 0.0
        %2168 = vmatpush1.msra.mxu0 0.0
        %2169 = vmatprep.subr.mxu0 0.0
        %2170 = vmatpush1.msra.mxu0 0.0
        %2171 = vmatprep.mubr.f32.mxu0 0.0
        %2172 = vmatmul.mubr.f32.gmra.mrb[0].mxu0 %v2105
        %v2173 = vpop.f32.mrb[0].mxu0
        %v2174 = vadd.f32 0.0, %v2173
        %v2175 = vpop.f32.mrb[0].mxu0
        %2176 = vdwg.mxu0
        %2178 = vrot.lane.b32.xlu0 %v1840, 8
        %v2179 = vpop.permute.xlu0 %2178
        %2182 = vrot.lane.b32.xlu0 %v2007, 16
        %v2183 = vpop.permute.xlu0 %2182
        %2186 = vrot.lane.b32.xlu0 %v2174, 24
        %v2187 = vpop.permute.xlu0 %2186
        %v2189 = vsel %vm428, %v1673, %v2179
        %v2190 = vsel %vm1106, %v2189, %v2183
        %v2191 = vsel %vm1108, %v2190, %v2187
        %2196 = vrot.lane.b32.xlu0 %v1433, 32
        %v2197 = vpop.permute.xlu0 %2196
        %2198 = vrot.lane.b32.xlu0 %v1434, 32
        %v2199 = vpop.permute.xlu0 %2198
        %2200 = vrot.lane.b32.xlu0 %v1435, 32
        %v2201 = vpop.permute.xlu0 %2200
        %2202 = vrot.lane.b32.xlu0 %v1436, 32
        %v2203 = vpop.permute.xlu0 %2202
        %v2209 = vsel %vm323, %v2191, 0
        %2211 = vmatprep.subr.mxu0 0.0
        %2212 = vmatpush1.msra.mxu0 %v2197
        %2213 = vmatprep.subr.mxu0 0.0
        %2214 = vmatpush1.msra.mxu0 %v2199
        %2215 = vmatprep.subr.mxu0 0.0
        %2216 = vmatpush1.msra.mxu0 %v2201
        %2217 = vmatprep.subr.mxu0 0.0
        %2218 = vmatpush1.msra.mxu0 %v2203
        %2219 = vmatprep.subr.mxu0 0.0
        %2220 = vmatpush1.msra.mxu0 0.0
        %2221 = vmatprep.subr.mxu0 0.0
        %2222 = vmatpush1.msra.mxu0 0.0
        %2223 = vmatprep.subr.mxu0 0.0
        %2224 = vmatpush1.msra.mxu0 0.0
        %2225 = vmatprep.subr.mxu0 0.0
        %2226 = vmatpush1.msra.mxu0 0.0
        %2227 = vmatprep.subr.mxu0 0.0
        %2228 = vmatpush1.msra.mxu0 0.0
        %2229 = vmatprep.subr.mxu0 0.0
        %2230 = vmatpush1.msra.mxu0 0.0
        %2231 = vmatprep.subr.mxu0 0.0
        %2232 = vmatpush1.msra.mxu0 0.0
        %2233 = vmatprep.subr.mxu0 0.0
        %2234 = vmatpush1.msra.mxu0 0.0
        %2235 = vmatprep.subr.mxu0 0.0
        %2236 = vmatpush1.msra.mxu0 0.0
        %2237 = vmatprep.subr.mxu0 0.0
        %2238 = vmatpush1.msra.mxu0 0.0
        %2239 = vmatprep.subr.mxu0 0.0
        %2240 = vmatpush1.msra.mxu0 0.0
        %2241 = vmatprep.subr.mxu0 0.0
        %2242 = vmatpush1.msra.mxu0 0.0
        %2243 = vmatprep.subr.mxu0 0.0
        %2244 = vmatpush1.msra.mxu0 0.0
        %2245 = vmatprep.subr.mxu0 0.0
        %2246 = vmatpush1.msra.mxu0 0.0
        %2247 = vmatprep.subr.mxu0 0.0
        %2248 = vmatpush1.msra.mxu0 0.0
        %2249 = vmatprep.subr.mxu0 0.0
        %2250 = vmatpush1.msra.mxu0 0.0
        %2251 = vmatprep.subr.mxu0 0.0
        %2252 = vmatpush1.msra.mxu0 0.0
        %2253 = vmatprep.subr.mxu0 0.0
        %2254 = vmatpush1.msra.mxu0 0.0
        %2255 = vmatprep.subr.mxu0 0.0
        %2256 = vmatpush1.msra.mxu0 0.0
        %2257 = vmatprep.subr.mxu0 0.0
        %2258 = vmatpush1.msra.mxu0 0.0
        %2259 = vmatprep.subr.mxu0 0.0
        %2260 = vmatpush1.msra.mxu0 0.0
        %2261 = vmatprep.subr.mxu0 0.0
        %2262 = vmatpush1.msra.mxu0 0.0
        %2263 = vmatprep.subr.mxu0 0.0
        %2264 = vmatpush1.msra.mxu0 0.0
        %2265 = vmatprep.subr.mxu0 0.0
        %2266 = vmatpush1.msra.mxu0 0.0
        %2267 = vmatprep.subr.mxu0 0.0
        %2268 = vmatpush1.msra.mxu0 0.0
        %2269 = vmatprep.subr.mxu0 0.0
        %2270 = vmatpush1.msra.mxu0 0.0
        %2271 = vmatprep.subr.mxu0 0.0
        %2272 = vmatpush1.msra.mxu0 0.0
        %2273 = vmatprep.subr.mxu0 0.0
        %2274 = vmatpush1.msra.mxu0 0.0
        %2275 = vmatprep.mubr.f32.mxu0 0.0
        %2276 = vmatmul.mubr.f32.gmra.mrb[0].mxu0 %v2209
        %v2277 = vpop.f32.mrb[0].mxu0
        %v2278 = vadd.f32 0.0, %v2277
        %v2279 = vpop.f32.mrb[0].mxu0
        %2280 = vdwg.mxu0
        %v2281 = vadd.f32 %v1401, %v2278
        %v2282 = vlaneseq
        %v2283 = vshrl.u32 %v2282, 7
        %v2284 = vsub.s32 0, %v2283
        %v2285 = vrot.slane %v1404, %v2284
        %v2286 = vadd.f32 %v2281, %v2285
        %v2287 = vsel %vm323, %v2286, 0.0
        %2288 = vadd.xlane.f32.xlu0 %v2287
        %v2289 = vpop.xlane.xlu0 %2288
        %v2290 = vmul.f32 %v2289, %v327
        %v2291 = vsub.f32 %v2286, %v2290
        %v2292 = vmul.f32 %v2291, %v2291
        %v2293 = vsel %vm323, %v2292, 0.0
        %2294 = vadd.xlane.f32.xlu0 %v2293
        %v2295 = vpop.xlane.xlu0 %2294
        %v2296 = vmul.f32 %v2295, %v327
        %v2297 = vadd.f32 %v2296, 1e-05
        %v2298 = vrsqrt.pop %v2297
        %v2299 = vmul.f32 %v2291, %v2298
        %v2300 = vlaneseq
        %v2301 = vshrl.u32 %v2300, 7
        %v2302 = vsub.s32 0, %v2301
        %v2303 = vrot.slane %v1405, %v2302
        %v2304 = vmul.f32 %v2299, %v2303
        %v2305 = vlaneseq
        %v2306 = vshrl.u32 %v2305, 7
        %v2307 = vsub.s32 0, %v2306
        %v2308 = vrot.slane %v1406, %v2307
        %v2309 = vadd.f32 %v2304, %v2308
        %s2310 = scalar_lea.vmem %s2, 32
        %v2311 = vld [vmem:[%s2310] sm:$0xff]
        %v2312 = vld [vmem:[%s2310 + $0x8] sm:$0xff]
        %v2313 = vld [vmem:[%s2310 + $0x10] sm:$0xff]
        %v2314 = vld [vmem:[%s2310 + $0x18] sm:$0xff]
        %v2315 = vlaneseq
        %v2316 = vshrl.u32 %v2315, 7
        %v2317 = vsub.s32 0, %v2316
        %v2318 = vrot.slane %v1407, %v2317
        %v2320 = vsel %vm323, %v2309, 0
        %2322 = vmatprep.subr.mxu0 0.0
        %2323 = vmatpush1.msra.mxu0 %v2311
        %2324 = vmatprep.subr.mxu0 0.0
        %2325 = vmatpush1.msra.mxu0 %v2312
        %2326 = vmatprep.subr.mxu0 0.0
        %2327 = vmatpush1.msra.mxu0 %v2313
        %2328 = vmatprep.subr.mxu0 0.0
        %2329 = vmatpush1.msra.mxu0 %v2314
        %2330 = vmatprep.subr.mxu0 0.0
        %2331 = vmatpush1.msra.mxu0 0.0
        %2332 = vmatprep.subr.mxu0 0.0
        %2333 = vmatpush1.msra.mxu0 0.0
        %2334 = vmatprep.subr.mxu0 0.0
        %2335 = vmatpush1.msra.mxu0 0.0
        %2336 = vmatprep.subr.mxu0 0.0
        %2337 = vmatpush1.msra.mxu0 0.0
        %2338 = vmatprep.subr.mxu0 0.0
        %2339 = vmatpush1.msra.mxu0 0.0
        %2340 = vmatprep.subr.mxu0 0.0
        %2341 = vmatpush1.msra.mxu0 0.0
        %2342 = vmatprep.subr.mxu0 0.0
        %2343 = vmatpush1.msra.mxu0 0.0
        %2344 = vmatprep.subr.mxu0 0.0
        %2345 = vmatpush1.msra.mxu0 0.0
        %2346 = vmatprep.subr.mxu0 0.0
        %2347 = vmatpush1.msra.mxu0 0.0
        %2348 = vmatprep.subr.mxu0 0.0
        %2349 = vmatpush1.msra.mxu0 0.0
        %2350 = vmatprep.subr.mxu0 0.0
        %2351 = vmatpush1.msra.mxu0 0.0
        %2352 = vmatprep.subr.mxu0 0.0
        %2353 = vmatpush1.msra.mxu0 0.0
        %2354 = vmatprep.subr.mxu0 0.0
        %2355 = vmatpush1.msra.mxu0 0.0
        %2356 = vmatprep.subr.mxu0 0.0
        %2357 = vmatpush1.msra.mxu0 0.0
        %2358 = vmatprep.subr.mxu0 0.0
        %2359 = vmatpush1.msra.mxu0 0.0
        %2360 = vmatprep.subr.mxu0 0.0
        %2361 = vmatpush1.msra.mxu0 0.0
        %2362 = vmatprep.subr.mxu0 0.0
        %2363 = vmatpush1.msra.mxu0 0.0
        %2364 = vmatprep.subr.mxu0 0.0
        %2365 = vmatpush1.msra.mxu0 0.0
        %2366 = vmatprep.subr.mxu0 0.0
        %2367 = vmatpush1.msra.mxu0 0.0
        %2368 = vmatprep.subr.mxu0 0.0
        %2369 = vmatpush1.msra.mxu0 0.0
        %2370 = vmatprep.subr.mxu0 0.0
        %2371 = vmatpush1.msra.mxu0 0.0
        %2372 = vmatprep.subr.mxu0 0.0
        %2373 = vmatpush1.msra.mxu0 0.0
        %2374 = vmatprep.subr.mxu0 0.0
        %2375 = vmatpush1.msra.mxu0 0.0
        %2376 = vmatprep.subr.mxu0 0.0
        %2377 = vmatpush1.msra.mxu0 0.0
        %2378 = vmatprep.subr.mxu0 0.0
        %2379 = vmatpush1.msra.mxu0 0.0
        %2380 = vmatprep.subr.mxu0 0.0
        %2381 = vmatpush1.msra.mxu0 0.0
        %2382 = vmatprep.subr.mxu0 0.0
        %2383 = vmatpush1.msra.mxu0 0.0
        %2384 = vmatprep.subr.mxu0 0.0
        %2385 = vmatpush1.msra.mxu0 0.0
        %2386 = vmatprep.mubr.f32.mxu0 0.0
        %2387 = vmatmul.mubr.f32.gmra.mrb[0].mxu0 %v2320
        %v2388 = vpop.f32.mrb[0].mxu0
        %v2389 = vadd.f32 %v2318, %v2388
        %v2390 = vpop.f32.mrb[0].mxu0
        %2391 = vdwg.mxu0
        %v2392 = vmax.f32 %v2389, 0.0
        %s2393 = scalar_lea.vmem %s3, 128
        %v2394 = vld [vmem:[%s2393] sm:$0xff]
        %v2395 = vld [vmem:[%s2393 + $0x8] sm:$0xff]
        %v2396 = vld [vmem:[%s2393 + $0x10] sm:$0xff]
        %v2397 = vld [vmem:[%s2393 + $0x18] sm:$0xff]
        %v2398 = vld [vmem:[%s2393 + $0x20] sm:$0xff]
        %v2399 = vld [vmem:[%s2393 + $0x28] sm:$0xff]
        %v2400 = vld [vmem:[%s2393 + $0x30] sm:$0xff]
        %v2401 = vld [vmem:[%s2393 + $0x38] sm:$0xff]
        %v2402 = vld [vmem:[%s2393 + $0x40] sm:$0xff]
        %v2403 = vld [vmem:[%s2393 + $0x48] sm:$0xff]
        %v2404 = vld [vmem:[%s2393 + $0x50] sm:$0xff]
        %v2405 = vld [vmem:[%s2393 + $0x58] sm:$0xff]
        %v2406 = vld [vmem:[%s2393 + $0x60] sm:$0xff]
        %v2407 = vld [vmem:[%s2393 + $0x68] sm:$0xff]
        %v2408 = vld [vmem:[%s2393 + $0x70] sm:$0xff]
        %v2409 = vld [vmem:[%s2393 + $0x78] sm:$0xff]
        %2410 = vmatprep.subr.mxu0 0.0
        %2411 = vmatpush1.msra.mxu0 %v2394
        %2412 = vmatprep.subr.mxu0 0.0
        %2413 = vmatpush1.msra.mxu0 %v2395
        %2414 = vmatprep.subr.mxu0 0.0
        %2415 = vmatpush1.msra.mxu0 %v2396
        %2416 = vmatprep.subr.mxu0 0.0
        %2417 = vmatpush1.msra.mxu0 %v2397
        %2418 = vmatprep.subr.mxu0 0.0
        %2419 = vmatpush1.msra.mxu0 %v2398
        %2420 = vmatprep.subr.mxu0 0.0
        %2421 = vmatpush1.msra.mxu0 %v2399
        %2422 = vmatprep.subr.mxu0 0.0
        %2423 = vmatpush1.msra.mxu0 %v2400
        %2424 = vmatprep.subr.mxu0 0.0
        %2425 = vmatpush1.msra.mxu0 %v2401
        %2426 = vmatprep.subr.mxu0 0.0
        %2427 = vmatpush1.msra.mxu0 %v2402
        %2428 = vmatprep.subr.mxu0 0.0
        %2429 = vmatpush1.msra.mxu0 %v2403
        %2430 = vmatprep.subr.mxu0 0.0
        %2431 = vmatpush1.msra.mxu0 %v2404
        %2432 = vmatprep.subr.mxu0 0.0
        %2433 = vmatpush1.msra.mxu0 %v2405
        %2434 = vmatprep.subr.mxu0 0.0
        %2435 = vmatpush1.msra.mxu0 %v2406
        %2436 = vmatprep.subr.mxu0 0.0
        %2437 = vmatpush1.msra.mxu0 %v2407
        %2438 = vmatprep.subr.mxu0 0.0
        %2439 = vmatpush1.msra.mxu0 %v2408
        %2440 = vmatprep.subr.mxu0 0.0
        %2441 = vmatpush1.msra.mxu0 %v2409
        %2442 = vmatprep.subr.mxu0 0.0
        %2443 = vmatpush1.msra.mxu0 0.0
        %2444 = vmatprep.subr.mxu0 0.0
        %2445 = vmatpush1.msra.mxu0 0.0
        %2446 = vmatprep.subr.mxu0 0.0
        %2447 = vmatpush1.msra.mxu0 0.0
        %2448 = vmatprep.subr.mxu0 0.0
        %2449 = vmatpush1.msra.mxu0 0.0
        %2450 = vmatprep.subr.mxu0 0.0
        %2451 = vmatpush1.msra.mxu0 0.0
        %2452 = vmatprep.subr.mxu0 0.0
        %2453 = vmatpush1.msra.mxu0 0.0
        %2454 = vmatprep.subr.mxu0 0.0
        %2455 = vmatpush1.msra.mxu0 0.0
        %2456 = vmatprep.subr.mxu0 0.0
        %2457 = vmatpush1.msra.mxu0 0.0
        %2458 = vmatprep.subr.mxu0 0.0
        %2459 = vmatpush1.msra.mxu0 0.0
        %2460 = vmatprep.subr.mxu0 0.0
        %2461 = vmatpush1.msra.mxu0 0.0
        %2462 = vmatprep.subr.mxu0 0.0
        %2463 = vmatpush1.msra.mxu0 0.0
        %2464 = vmatprep.subr.mxu0 0.0
        %2465 = vmatpush1.msra.mxu0 0.0
        %2466 = vmatprep.subr.mxu0 0.0
        %2467 = vmatpush1.msra.mxu0 0.0
        %2468 = vmatprep.subr.mxu0 0.0
        %2469 = vmatpush1.msra.mxu0 0.0
        %2470 = vmatprep.subr.mxu0 0.0
        %2471 = vmatpush1.msra.mxu0 0.0
        %2472 = vmatprep.subr.mxu0 0.0
        %2473 = vmatpush1.msra.mxu0 0.0
        %2474 = vmatprep.mubr.f32.mxu0 0.0
        %2475 = vmatmul.mubr.f32.gmra.mrb[0].mxu0 %v2392
        %v2476 = vpop.f32.mrb[0].mxu0
        %v2477 = vadd.f32 0.0, %v2476
        %v2478 = vpop.f32.mrb[0].mxu0
        %2479 = vdwg.mxu0
        %v2480 = vadd.f32 %v2286, %v2477
        %v2481 = vlaneseq
        %v2482 = vshrl.u32 %v2481, 7
        %v2483 = vsub.s32 0, %v2482
        %v2484 = vrot.slane %v1408, %v2483
        %v2485 = vadd.f32 %v2480, %v2484
        %v2486 = vld [vmem:[%s4 + $0x76] sm:$0x1]
        %v2487 = vld [vmem:[%s4 + $0x77] sm:$0x1]
        %v2488 = vld [vmem:[%s4 + $0x78] sm:$0x1]
        %v2489 = vsel %vm323, %v2485, 0.0
        %2490 = vadd.xlane.f32.xlu0 %v2489
        %v2491 = vpop.xlane.xlu0 %2490
        %v2492 = vmul.f32 %v2491, %v327
        %v2493 = vsub.f32 %v2485, %v2492
        %v2494 = vmul.f32 %v2493, %v2493
        %v2495 = vsel %vm323, %v2494, 0.0
        %2496 = vadd.xlane.f32.xlu0 %v2495
        %v2497 = vpop.xlane.xlu0 %2496
        %v2498 = vmul.f32 %v2497, %v327
        %v2499 = vadd.f32 %v2498, 1e-05
        %v2500 = vrsqrt.pop %v2499
        %v2501 = vmul.f32 %v2493, %v2500
        %v2502 = vlaneseq
        %v2503 = vshrl.u32 %v2502, 7
        %v2504 = vsub.s32 0, %v2503
        %v2505 = vrot.slane %v2486, %v2504
        %v2506 = vmul.f32 %v2501, %v2505
        %v2507 = vlaneseq
        %v2508 = vshrl.u32 %v2507, 7
        %v2509 = vsub.s32 0, %v2508
        %v2510 = vrot.slane %v2487, %v2509
        %v2511 = vadd.f32 %v2506, %v2510
        %v2512 = vld [vmem:[%s4 + $0x40] sm:$0xff]
        %v2513 = vld [vmem:[%s4 + $0x48] sm:$0xff]
        %v2514 = vld [vmem:[%s4 + $0x50] sm:$0xff]
        %v2515 = vld [vmem:[%s4 + $0x58] sm:$0xff]
        %v2516 = vlaneseq
        %v2517 = vshrl.u32 %v2516, 7
        %v2518 = vsub.s32 0, %v2517
        %v2519 = vrot.slane %v2488, %v2518
        %v2521 = vsel %vm323, %v2511, 0
        %2523 = vmatprep.subr.mxu0 0.0
        %2524 = vmatpush1.msra.mxu0 %v2512
        %2525 = vmatprep.subr.mxu0 0.0
        %2526 = vmatpush1.msra.mxu0 %v2513
        %2527 = vmatprep.subr.mxu0 0.0
        %2528 = vmatpush1.msra.mxu0 %v2514
        %2529 = vmatprep.subr.mxu0 0.0
        %2530 = vmatpush1.msra.mxu0 %v2515
        %2531 = vmatprep.subr.mxu0 0.0
        %2532 = vmatpush1.msra.mxu0 0.0
        %2533 = vmatprep.subr.mxu0 0.0
        %2534 = vmatpush1.msra.mxu0 0.0
        %2535 = vmatprep.subr.mxu0 0.0
        %2536 = vmatpush1.msra.mxu0 0.0
        %2537 = vmatprep.subr.mxu0 0.0
        %2538 = vmatpush1.msra.mxu0 0.0
        %2539 = vmatprep.subr.mxu0 0.0
        %2540 = vmatpush1.msra.mxu0 0.0
        %2541 = vmatprep.subr.mxu0 0.0
        %2542 = vmatpush1.msra.mxu0 0.0
        %2543 = vmatprep.subr.mxu0 0.0
        %2544 = vmatpush1.msra.mxu0 0.0
        %2545 = vmatprep.subr.mxu0 0.0
        %2546 = vmatpush1.msra.mxu0 0.0
        %2547 = vmatprep.subr.mxu0 0.0
        %2548 = vmatpush1.msra.mxu0 0.0
        %2549 = vmatprep.subr.mxu0 0.0
        %2550 = vmatpush1.msra.mxu0 0.0
        %2551 = vmatprep.subr.mxu0 0.0
        %2552 = vmatpush1.msra.mxu0 0.0
        %2553 = vmatprep.subr.mxu0 0.0
        %2554 = vmatpush1.msra.mxu0 0.0
        %2555 = vmatprep.subr.mxu0 0.0
        %2556 = vmatpush1.msra.mxu0 0.0
        %2557 = vmatprep.subr.mxu0 0.0
        %2558 = vmatpush1.msra.mxu0 0.0
        %2559 = vmatprep.subr.mxu0 0.0
        %2560 = vmatpush1.msra.mxu0 0.0
        %2561 = vmatprep.subr.mxu0 0.0
        %2562 = vmatpush1.msra.mxu0 0.0
        %2563 = vmatprep.subr.mxu0 0.0
        %2564 = vmatpush1.msra.mxu0 0.0
        %2565 = vmatprep.subr.mxu0 0.0
        %2566 = vmatpush1.msra.mxu0 0.0
        %2567 = vmatprep.subr.mxu0 0.0
        %2568 = vmatpush1.msra.mxu0 0.0
        %2569 = vmatprep.subr.mxu0 0.0
        %2570 = vmatpush1.msra.mxu0 0.0
        %2571 = vmatprep.subr.mxu0 0.0
        %2572 = vmatpush1.msra.mxu0 0.0
        %2573 = vmatprep.subr.mxu0 0.0
        %2574 = vmatpush1.msra.mxu0 0.0
        %2575 = vmatprep.subr.mxu0 0.0
        %2576 = vmatpush1.msra.mxu0 0.0
        %2577 = vmatprep.subr.mxu0 0.0
        %2578 = vmatpush1.msra.mxu0 0.0
        %2579 = vmatprep.subr.mxu0 0.0
        %2580 = vmatpush1.msra.mxu0 0.0
        %2581 = vmatprep.subr.mxu0 0.0
        %2582 = vmatpush1.msra.mxu0 0.0
        %2583 = vmatprep.subr.mxu0 0.0
        %2584 = vmatpush1.msra.mxu0 0.0
        %2585 = vmatprep.subr.mxu0 0.0
        %2586 = vmatpush1.msra.mxu0 0.0
        %2587 = vmatprep.mubr.f32.mxu0 0.0
        %2588 = vmatmul.mubr.f32.gmra.mrb[0].mxu0 %v2521
        %v2589 = vpop.f32.mrb[0].mxu0
        %v2590 = vadd.f32 %v2519, %v2589
        %v2591 = vpop.f32.mrb[0].mxu0
        %2592 = vdwg.mxu0
        %2593 = vst [vmem:[%s215] sm:$0xff] %v2590
        %s2594 = sand.u32 %s137, 1
        %s2595 = scalar_lea.sflag [#allocation3], %s2594
        %s2596 = sand.u32 %s137, 1
        %s2597 = smul.addr %s2596, 8
        %s2598 = scalar_lea.vmem [#allocation2], %s2597
        // Predicated region
        $region41: #{decoder_forward.1} parent=39 // pred_check
          %p2599 = pneg %p147
        $region42: #{decoder_forward.1} parent=39 // pred_check_branch
          %2601 = sbr.rel (%p2599) target = $region44
        $region43: #{decoder_forward.1} parent=39 // pred_region
          %s2603 = ssub.s32 128, 128
          %2604 = vsyncadd %s2595, %s2603
          %s2605 = smul.addr %s19, 128
          %s2606 = scalar_lea.hbm %s5, %s2605
          %s2608 = sshll.u32 %s2598, 4
          %s2609 = int_to_ptr.vmem [resolvable:$true] %s2608
          %2611 = dma.vmem_to_hbm [thread:$0]  %s2609, 128, %s2606, %s2595
        $region44: #{decoder_forward.1} parent=39 // pred_fallthru
          _
      $region40: #{decoder_forward.1} parent=5 // pred_fallthru
        _
      %p2612 = scmp.le.s32.totalorder 2, %s14
      // Predicated region
      $region45: #{decoder_forward.1} parent=5 // pred_check
        %p2613 = pneg %p2612
      $region46: #{decoder_forward.1} parent=5 // pred_check_branch
        %2615 = sbr.rel (%p2613) target = $region48
      $region47: #{decoder_forward.1} parent=5 // pred_region
        %s2616 = ssub.s32 %s14, 2
        // Predicated region
        $region49: #{decoder_forward.1} parent=47 // pred_check
          %p2617 = pneg %p153
        $region50: #{decoder_forward.1} parent=47 // pred_check_branch
          %2619 = sbr.rel (%p2617) target = $region52
        $region51: #{decoder_forward.1} parent=47 // pred_region
          %s2620 = sand.u32 %s138, 1
          %s2621 = scalar_lea.sflag [#allocation3], %s2620
          %s2622 = sand.u32 %s138, 1
          %s2623 = smul.addr %s2622, 8
          %s2624 = scalar_lea.vmem [#allocation2], %s2623
          %2625 = dma.done %s2621, 128
        $region52: #{decoder_forward.1} parent=47 // pred_fallthru
          _
      $region48: #{decoder_forward.1} parent=5 // pred_fallthru
        _
    $region6: #{decoder_forward.1} parent=1 // loop_footer
      %s18 = sadd.s32 1, %s14
    $region7: #{decoder_forward.1} parent=1 // loop_footer_branch
      %13 = sbr.rel target = $region3
    $region8: #{decoder_forward.1} parent=1 // loop_exit
      _
    %2626 = vsyncpa [#allocation3], 1
    %s2627 = scalar_lea.sflag [#allocation3], 1
    %2628 = vsyncpa %s2627, 1

</llo_original>
